<compile_context>
chip_gen: v7x
topology: tpu7x:2x2x1
jax: 0.10.0
libtpu: 0.0.40
codegen_flags: <defaults>
</compile_context>

<pallas_src>
import functools

import jax
import jax.numpy as jnp
from jax.experimental import pallas as pl
from jax.experimental.pallas import tpu as pltpu


def _log_sigmoid(x):
    # Numerically stable log(sigmoid(x)) = min(x, 0) - log(1 + exp(-|x|)).
    return jnp.minimum(x, 0.0) - jnp.log(1.0 + jnp.exp(-jnp.abs(x)))


def _skipgram_loss_kernel(ctx_idx_ref,      # SMEM  [bw_pad * num_ctx] int32 (scalar prefetch)
                          in_emb_ref,       # VMEM  [tbw, d]   input-embedding tile
                          out_table_ref,    # HBM   [vocab, d] out_embed table (pl.ANY)
                          loss_ref,         # VMEM  [1, 8, 128] per-tile partial loss
                          ctx_buf,          # VMEM  [tbw, num_ctx, d] gathered context rows
                          copy_sems,        # DMA sems [tbw, num_ctx]
                          *, tbw, num_ctx, bw_total):
    i = pl.program_id(0)
    base = i * (tbw * num_ctx)

    # ---- Fused gather: DMA the (1 label + S noise) context rows for every row of
    # this BW tile straight from the HBM-resident out_embed table into VMEM.
    copies = []
    for r in range(tbw):
        for k in range(num_ctx):
            row = ctx_idx_ref[base + r * num_ctx + k]
            cp = pltpu.make_async_copy(out_table_ref.at[row],
                                       ctx_buf.at[r, k],
                                       copy_sems.at[r, k])
            cp.start()
            copies.append(cp)
    # TODO(synk): double-buffer this gather across grid steps (prefetch tile i+1's
    # rows while computing tile i) to fully hide the DMA latency.
    for cp in copies:
        cp.wait()

    inp = in_emb_ref[...].astype(jnp.float32)          # [tbw, d]
    ctx = ctx_buf[...]                                 # [tbw, num_ctx, d] f32

    # One batched MXU contraction for the positive (k == 0) and all negative
    # (k >= 1) context rows at once.
    scores = jnp.einsum("bqd,bkd->bqk", inp[:, None, :], ctx,
                        preferred_element_type=jnp.float32)   # [tbw, 1, num_ctx]

    # Negate only the small score tensor (torch negates the noise embeddings).
    k_ids = jax.lax.broadcasted_iota(jnp.int32, (1, 1, num_ctx), 2)
    signs = jnp.where(k_ids == 0, 1.0, -1.0).astype(jnp.float32)
    log_sig = _log_sigmoid(scores * signs)                    # [tbw, 1, num_ctx]

    # Mask any rows that are only BW-axis padding.
    row_ids = i * tbw + jax.lax.broadcasted_iota(jnp.int32, (tbw, 1, 1), 0)
    masked = jnp.where(row_ids < bw_total, log_sig, 0.0)

    partial = jnp.sum(masked)                                 # scalar per tile
    loss_ref[...] = jnp.full((1, 8, 128), partial, dtype=jnp.float32)


def skipgram_loss(input_emb, ctx_idx, out_embed_table, batch_size, *, tbw=8):
    """input_emb: [BW, D] f32 (D multiple of 128), ctx_idx: [BW, S+1] int32
    (column 0 = label index, columns 1.. = noise indices),
    out_embed_table: [vocab, D] f32.  Returns the scalar skip-gram NEG loss."""
    bw, d = input_emb.shape
    num_ctx = ctx_idx.shape[1]
    assert d % 128 == 0, "embedding dim must be padded to a multiple of 128"
    assert tbw % 8 == 0

    n_tiles = pl.cdiv(bw, tbw)
    bw_pad = n_tiles * tbw
    if bw_pad != bw:
        input_emb = jnp.pad(input_emb, ((0, bw_pad - bw), (0, 0)))
        ctx_idx = jnp.pad(ctx_idx, ((0, bw_pad - bw), (0, 0)))
    ctx_idx_flat = ctx_idx.reshape(-1).astype(jnp.int32)

    kernel = functools.partial(_skipgram_loss_kernel,
                               tbw=tbw, num_ctx=num_ctx, bw_total=bw)

    grid_spec = pltpu.PrefetchScalarGridSpec(
        num_scalar_prefetch=1,
        grid=(n_tiles,),
        in_specs=[
            pl.BlockSpec((tbw, d), lambda i, idx: (i, 0)),    # input embeddings (pipelined)
            pl.BlockSpec(memory_space=pl.ANY),                # out_embed table stays in HBM
        ],
        out_specs=pl.BlockSpec((1, 8, 128), lambda i, idx: (i, 0, 0)),
        scratch_shapes=[
            pltpu.VMEM((tbw, num_ctx, d), jnp.float32),
            pltpu.SemaphoreType.DMA((tbw, num_ctx)),
        ],
    )

    cost = pl.CostEstimate(
        flops=2 * bw_pad * num_ctx * d,
        transcendentals=2 * bw_pad * num_ctx,
        bytes_accessed=4 * (bw_pad * d + bw_pad * num_ctx * d
                            + bw_pad * num_ctx + n_tiles * 8 * 128),
    )

    partials = pl.pallas_call(
        kernel,
        out_shape=jax.ShapeDtypeStruct((n_tiles, 8, 128), jnp.float32),
        grid_spec=grid_spec,
        compiler_params=pltpu.CompilerParams(
            dimension_semantics=("parallel",),           # lets v7x shard tiles over 2 TCs
            vmem_limit_bytes=32 * 1024 * 1024,           # safe on v5e/v6e/v7x
        ),
        cost_estimate=cost,
    )(ctx_idx_flat, input_emb, out_embed_table)

    # Tiny trailing reduction + batch normalization in plain JAX.
    return -jnp.sum(partials[:, 0, 0]) / batch_size


class SkipgramModelerPallas:
    """JAX/Pallas re-implementation of the PyTorch SkipgramModeler forward."""

    def __init__(self, vocab_size, embed_dim, key):
        self.vocab_size = vocab_size
        self.embed_dim = embed_dim
        # Lane-dense storage: pad the embed dim up to a multiple of 128 with zeros
        # (zero columns contribute nothing to any dot product).
        self.embed_dim_padded = ((embed_dim + 127) // 128) * 128
        pad = self.embed_dim_padded - embed_dim
        k_out, k_in = jax.random.split(key)
        out_w = jax.random.uniform(k_out, (vocab_size, embed_dim), jnp.float32, -1.0, 1.0)
        in_w = jax.random.uniform(k_in, (vocab_size, embed_dim), jnp.float32, -1.0, 1.0)
        self.out_embed = jnp.pad(out_w, ((0, 0), (0, pad)))
        self.input_embed = jnp.pad(in_w, ((0, 0), (0, pad)))

    def forward(self, inputs, labels, num_sampled, noise_key):
        # inputs: [batch_size, 1] int, labels: [batch_size, window_size] int.
        batch_size, window_size = labels.shape
        bw = batch_size * window_size

        # inputs.repeat(1, window_size).view(-1) -> [BW]
        input_idx = jnp.tile(inputs, (1, window_size)).reshape(-1)
        label_idx = labels.reshape(-1).astype(jnp.int32)

        # Small [BW, D] input-embedding lookup stays as JAX glue; the big
        # [BW, S, D] noise gather happens inside the kernel.
        input_emb = jnp.take(self.input_embed, input_idx, axis=0)

        # torch.Tensor(BW, num_sampled).uniform_(0, vocab_size - 1).long()
        # (random every call in torch; deterministic here via an explicit key)
        noise_idx = jax.random.uniform(
            noise_key, (bw, num_sampled), jnp.float32,
            0.0, float(self.vocab_size - 1)).astype(jnp.int32)

        # Column 0 = positive (label) context, columns 1.. = negative samples.
        ctx_idx = jnp.concatenate([label_idx[:, None], noise_idx], axis=1)

        return skipgram_loss(input_emb, ctx_idx, self.out_embed, batch_size)


def _reference_loss(input_emb, out_embed_table, ctx_idx, batch_size):
    """Pure-JAX reference of the same math (no Pallas)."""
    ctx = jnp.take(out_embed_table, ctx_idx, axis=0)            # [BW, S+1, D]
    scores = jnp.einsum("bkd,bd->bk", ctx, input_emb)
    signs = jnp.where(jnp.arange(ctx.shape[1]) == 0, 1.0, -1.0)
    return -jnp.sum(_log_sigmoid(scores * signs[None, :])) / batch_size


if __name__ == "__main__":
    vocab_size = 50
    embed_dim = 32
    batch_size = 2
    window_size = 8
    num_sampled = 4

    root = jax.random.PRNGKey(0)
    k_params, k_inputs, k_labels, k_noise = jax.random.split(root, 4)

    model = SkipgramModelerPallas(vocab_size, embed_dim, k_params)

    inputs = jax.random.randint(k_inputs, (batch_size, 1), 0, vocab_size,
                                dtype=jnp.int32)
    labels = jax.random.randint(k_labels, (batch_size, window_size), 0, vocab_size,
                                dtype=jnp.int32)

    loss = model.forward(inputs, labels, num_sampled, k_noise)
    jax.block_until_ready(loss)
    assert loss.shape == () and loss.dtype == jnp.float32

    # Correctness check against a pure-JAX reference with the same noise draw.
    bw = batch_size * window_size
    input_idx = jnp.tile(inputs, (1, window_size)).reshape(-1)
    input_emb = jnp.take(model.input_embed, input_idx, axis=0)
    label_idx = labels.reshape(-1).astype(jnp.int32)
    noise_idx = jax.random.uniform(k_noise, (bw, num_sampled), jnp.float32,
                                   0.0, float(vocab_size - 1)).astype(jnp.int32)
    ctx_idx = jnp.concatenate([label_idx[:, None], noise_idx], axis=1)
    ref = _reference_loss(input_emb, model.out_embed, ctx_idx, batch_size)
    assert jnp.allclose(loss, ref, rtol=1e-3, atol=1e-3), (loss, ref)

    print("KERNEL_OK")
</pallas_src>

<mosaic_0001>
module attributes {stable_mosaic.version = 11 : i64} {
  func.func @_skipgram_loss_kernel(%arg0: i32, %arg1: memref<80xi32, #tpu.memory_space<smem>>, %arg2: memref<8x128xf32, #tpu.memory_space<vmem>>, %arg3: memref<50x128xf32, #tpu.memory_space<any>>, %arg4: memref<1x8x128xf32, #tpu.memory_space<vmem>>, %arg5: memref<8x5x128xf32, #tpu.memory_space<vmem>>, %arg6: memref<8x5x!tpu.dma_semaphore, #tpu.memory_space<semaphore_mem>>) attributes {dimension_semantics = [#tpu.dimension_semantics<parallel>], iteration_bounds = array<i64: 2>, scalar_prefetch = 1 : i64, scratch_operands = 2 : i64, tpu.core_type = #tpu.core_type<tc>, window_params = [{transform_indices = @transform_0, window_bounds = array<i64: 8, 128>}, {}, {transform_indices = @transform_2, window_bounds = array<i64: 1, 8, 128>}]} {
    %c40_i32 = arith.constant 40 : i32
    %0 = arith.muli %arg0, %c40_i32 : i32
    %c0_i32 = arith.constant 0 : i32
    %1 = arith.addi %0, %c0_i32 : i32
    %c0_i32_0 = arith.constant 0 : i32
    %2 = arith.addi %1, %c0_i32_0 : i32
    %3 = arith.index_cast %2 : i32 to index
    %4 = memref.load %arg1[%3] : memref<80xi32, #tpu.memory_space<smem>>
    %c0_i32_1 = arith.constant 0 : i32
    %c0_i32_2 = arith.constant 0 : i32
    %c0_i32_3 = arith.constant 0 : i32
    %c0_i32_4 = arith.constant 0 : i32
    %c0_i32_5 = arith.constant 0 : i32
    %5 = tpu.memref_slice %arg3[%4, %c0_i32_5] : memref<50x128xf32, #tpu.memory_space<any>> -> memref<1x128xf32, #tpu.memory_space<any>>
    %6 = tpu.memref_squeeze %5 : memref<1x128xf32, #tpu.memory_space<any>> -> memref<128xf32, #tpu.memory_space<any>>
    %c0_i32_6 = arith.constant 0 : i32
    %7 = tpu.memref_slice %arg5[%c0_i32_1, %c0_i32_2, %c0_i32_6] : memref<8x5x128xf32, #tpu.memory_space<vmem>> -> memref<1x1x128xf32, #tpu.memory_space<vmem>>
    %8 = tpu.memref_squeeze %7 : memref<1x1x128xf32, #tpu.memory_space<vmem>> -> memref<128xf32, #tpu.memory_space<vmem>>
    %9 = tpu.memref_slice %arg6[%c0_i32_3, %c0_i32_4] : memref<8x5x!tpu.dma_semaphore, #tpu.memory_space<semaphore_mem>> -> memref<1x1x!tpu.dma_semaphore, #tpu.memory_space<semaphore_mem>>
    %10 = tpu.memref_squeeze %9 : memref<1x1x!tpu.dma_semaphore, #tpu.memory_space<semaphore_mem>> -> memref<!tpu.dma_semaphore, #tpu.memory_space<semaphore_mem>>
    tpu.enqueue_dma source(%6 : memref<128xf32, #tpu.memory_space<any>>) target(%8 : memref<128xf32, #tpu.memory_space<vmem>>) target_semaphore(%10 : memref<!tpu.dma_semaphore, #tpu.memory_space<semaphore_mem>>)
    %c0_i32_7 = arith.constant 0 : i32
    %11 = arith.addi %0, %c0_i32_7 : i32
    %c1_i32 = arith.constant 1 : i32
    %12 = arith.addi %11, %c1_i32 : i32
    %13 = arith.index_cast %12 : i32 to index
    %14 = memref.load %arg1[%13] : memref<80xi32, #tpu.memory_space<smem>>
    %c0_i32_8 = arith.constant 0 : i32
    %c1_i32_9 = arith.constant 1 : i32
    %c0_i32_10 = arith.constant 0 : i32
    %c1_i32_11 = arith.constant 1 : i32
    %c0_i32_12 = arith.constant 0 : i32
    %15 = tpu.memref_slice %arg3[%14, %c0_i32_12] : memref<50x128xf32, #tpu.memory_space<any>> -> memref<1x128xf32, #tpu.memory_space<any>>
    %16 = tpu.memref_squeeze %15 : memref<1x128xf32, #tpu.memory_space<any>> -> memref<128xf32, #tpu.memory_space<any>>
    %c0_i32_13 = arith.constant 0 : i32
    %17 = tpu.memref_slice %arg5[%c0_i32_8, %c1_i32_9, %c0_i32_13] : memref<8x5x128xf32, #tpu.memory_space<vmem>> -> memref<1x1x128xf32, #tpu.memory_space<vmem>>
    %18 = tpu.memref_squeeze %17 : memref<1x1x128xf32, #tpu.memory_space<vmem>> -> memref<128xf32, #tpu.memory_space<vmem>>
    %19 = tpu.memref_slice %arg6[%c0_i32_10, %c1_i32_11] : memref<8x5x!tpu.dma_semaphore, #tpu.memory_space<semaphore_mem>> -> memref<1x1x!tpu.dma_semaphore, #tpu.memory_space<semaphore_mem>>
    %20 = tpu.memref_squeeze %19 : memref<1x1x!tpu.dma_semaphore, #tpu.memory_space<semaphore_mem>> -> memref<!tpu.dma_semaphore, #tpu.memory_space<semaphore_mem>>
    tpu.enqueue_dma source(%16 : memref<128xf32, #tpu.memory_space<any>>) target(%18 : memref<128xf32, #tpu.memory_space<vmem>>) target_semaphore(%20 : memref<!tpu.dma_semaphore, #tpu.memory_space<semaphore_mem>>)
    %c0_i32_14 = arith.constant 0 : i32
    %21 = arith.addi %0, %c0_i32_14 : i32
    %c2_i32 = arith.constant 2 : i32
    %22 = arith.addi %21, %c2_i32 : i32
    %23 = arith.index_cast %22 : i32 to index
    %24 = memref.load %arg1[%23] : memref<80xi32, #tpu.memory_space<smem>>
    %c0_i32_15 = arith.constant 0 : i32
    %c2_i32_16 = arith.constant 2 : i32
    %c0_i32_17 = arith.constant 0 : i32
    %c2_i32_18 = arith.constant 2 : i32
    %c0_i32_19 = arith.constant 0 : i32
    %25 = tpu.memref_slice %arg3[%24, %c0_i32_19] : memref<50x128xf32, #tpu.memory_space<any>> -> memref<1x128xf32, #tpu.memory_space<any>>
    %26 = tpu.memref_squeeze %25 : memref<1x128xf32, #tpu.memory_space<any>> -> memref<128xf32, #tpu.memory_space<any>>
    %c0_i32_20 = arith.constant 0 : i32
    %27 = tpu.memref_slice %arg5[%c0_i32_15, %c2_i32_16, %c0_i32_20] : memref<8x5x128xf32, #tpu.memory_space<vmem>> -> memref<1x1x128xf32, #tpu.memory_space<vmem>>
    %28 = tpu.memref_squeeze %27 : memref<1x1x128xf32, #tpu.memory_space<vmem>> -> memref<128xf32, #tpu.memory_space<vmem>>
    %29 = tpu.memref_slice %arg6[%c0_i32_17, %c2_i32_18] : memref<8x5x!tpu.dma_semaphore, #tpu.memory_space<semaphore_mem>> -> memref<1x1x!tpu.dma_semaphore, #tpu.memory_space<semaphore_mem>>
    %30 = tpu.memref_squeeze %29 : memref<1x1x!tpu.dma_semaphore, #tpu.memory_space<semaphore_mem>> -> memref<!tpu.dma_semaphore, #tpu.memory_space<semaphore_mem>>
    tpu.enqueue_dma source(%26 : memref<128xf32, #tpu.memory_space<any>>) target(%28 : memref<128xf32, #tpu.memory_space<vmem>>) target_semaphore(%30 : memref<!tpu.dma_semaphore, #tpu.memory_space<semaphore_mem>>)
    %c0_i32_21 = arith.constant 0 : i32
    %31 = arith.addi %0, %c0_i32_21 : i32
    %c3_i32 = arith.constant 3 : i32
    %32 = arith.addi %31, %c3_i32 : i32
    %33 = arith.index_cast %32 : i32 to index
    %34 = memref.load %arg1[%33] : memref<80xi32, #tpu.memory_space<smem>>
    %c0_i32_22 = arith.constant 0 : i32
    %c3_i32_23 = arith.constant 3 : i32
    %c0_i32_24 = arith.constant 0 : i32
    %c3_i32_25 = arith.constant 3 : i32
    %c0_i32_26 = arith.constant 0 : i32
    %35 = tpu.memref_slice %arg3[%34, %c0_i32_26] : memref<50x128xf32, #tpu.memory_space<any>> -> memref<1x128xf32, #tpu.memory_space<any>>
    %36 = tpu.memref_squeeze %35 : memref<1x128xf32, #tpu.memory_space<any>> -> memref<128xf32, #tpu.memory_space<any>>
    %c0_i32_27 = arith.constant 0 : i32
    %37 = tpu.memref_slice %arg5[%c0_i32_22, %c3_i32_23, %c0_i32_27] : memref<8x5x128xf32, #tpu.memory_space<vmem>> -> memref<1x1x128xf32, #tpu.memory_space<vmem>>
    %38 = tpu.memref_squeeze %37 : memref<1x1x128xf32, #tpu.memory_space<vmem>> -> memref<128xf32, #tpu.memory_space<vmem>>
    %39 = tpu.memref_slice %arg6[%c0_i32_24, %c3_i32_25] : memref<8x5x!tpu.dma_semaphore, #tpu.memory_space<semaphore_mem>> -> memref<1x1x!tpu.dma_semaphore, #tpu.memory_space<semaphore_mem>>
    %40 = tpu.memref_squeeze %39 : memref<1x1x!tpu.dma_semaphore, #tpu.memory_space<semaphore_mem>> -> memref<!tpu.dma_semaphore, #tpu.memory_space<semaphore_mem>>
    tpu.enqueue_dma source(%36 : memref<128xf32, #tpu.memory_space<any>>) target(%38 : memref<128xf32, #tpu.memory_space<vmem>>) target_semaphore(%40 : memref<!tpu.dma_semaphore, #tpu.memory_space<semaphore_mem>>)
    %c0_i32_28 = arith.constant 0 : i32
    %41 = arith.addi %0, %c0_i32_28 : i32
    %c4_i32 = arith.constant 4 : i32
    %42 = arith.addi %41, %c4_i32 : i32
    %43 = arith.index_cast %42 : i32 to index
    %44 = memref.load %arg1[%43] : memref<80xi32, #tpu.memory_space<smem>>
    %c0_i32_29 = arith.constant 0 : i32
    %c4_i32_30 = arith.constant 4 : i32
    %c0_i32_31 = arith.constant 0 : i32
    %c4_i32_32 = arith.constant 4 : i32
    %c0_i32_33 = arith.constant 0 : i32
    %45 = tpu.memref_slice %arg3[%44, %c0_i32_33] : memref<50x128xf32, #tpu.memory_space<any>> -> memref<1x128xf32, #tpu.memory_space<any>>
    %46 = tpu.memref_squeeze %45 : memref<1x128xf32, #tpu.memory_space<any>> -> memref<128xf32, #tpu.memory_space<any>>
    %c0_i32_34 = arith.constant 0 : i32
    %47 = tpu.memref_slice %arg5[%c0_i32_29, %c4_i32_30, %c0_i32_34] : memref<8x5x128xf32, #tpu.memory_space<vmem>> -> memref<1x1x128xf32, #tpu.memory_space<vmem>>
    %48 = tpu.memref_squeeze %47 : memref<1x1x128xf32, #tpu.memory_space<vmem>> -> memref<128xf32, #tpu.memory_space<vmem>>
    %49 = tpu.memref_slice %arg6[%c0_i32_31, %c4_i32_32] : memref<8x5x!tpu.dma_semaphore, #tpu.memory_space<semaphore_mem>> -> memref<1x1x!tpu.dma_semaphore, #tpu.memory_space<semaphore_mem>>
    %50 = tpu.memref_squeeze %49 : memref<1x1x!tpu.dma_semaphore, #tpu.memory_space<semaphore_mem>> -> memref<!tpu.dma_semaphore, #tpu.memory_space<semaphore_mem>>
    tpu.enqueue_dma source(%46 : memref<128xf32, #tpu.memory_space<any>>) target(%48 : memref<128xf32, #tpu.memory_space<vmem>>) target_semaphore(%50 : memref<!tpu.dma_semaphore, #tpu.memory_space<semaphore_mem>>)
    %c5_i32 = arith.constant 5 : i32
    %51 = arith.addi %0, %c5_i32 : i32
    %c0_i32_35 = arith.constant 0 : i32
    %52 = arith.addi %51, %c0_i32_35 : i32
    %53 = arith.index_cast %52 : i32 to index
    %54 = memref.load %arg1[%53] : memref<80xi32, #tpu.memory_space<smem>>
    %c1_i32_36 = arith.constant 1 : i32
    %c0_i32_37 = arith.constant 0 : i32
    %c1_i32_38 = arith.constant 1 : i32
    %c0_i32_39 = arith.constant 0 : i32
    %c0_i32_40 = arith.constant 0 : i32
    %55 = tpu.memref_slice %arg3[%54, %c0_i32_40] : memref<50x128xf32, #tpu.memory_space<any>> -> memref<1x128xf32, #tpu.memory_space<any>>
    %56 = tpu.memref_squeeze %55 : memref<1x128xf32, #tpu.memory_space<any>> -> memref<128xf32, #tpu.memory_space<any>>
    %c0_i32_41 = arith.constant 0 : i32
    %57 = tpu.memref_slice %arg5[%c1_i32_36, %c0_i32_37, %c0_i32_41] : memref<8x5x128xf32, #tpu.memory_space<vmem>> -> memref<1x1x128xf32, #tpu.memory_space<vmem>>
    %58 = tpu.memref_squeeze %57 : memref<1x1x128xf32, #tpu.memory_space<vmem>> -> memref<128xf32, #tpu.memory_space<vmem>>
    %59 = tpu.memref_slice %arg6[%c1_i32_38, %c0_i32_39] : memref<8x5x!tpu.dma_semaphore, #tpu.memory_space<semaphore_mem>> -> memref<1x1x!tpu.dma_semaphore, #tpu.memory_space<semaphore_mem>>
    %60 = tpu.memref_squeeze %59 : memref<1x1x!tpu.dma_semaphore, #tpu.memory_space<semaphore_mem>> -> memref<!tpu.dma_semaphore, #tpu.memory_space<semaphore_mem>>
    tpu.enqueue_dma source(%56 : memref<128xf32, #tpu.memory_space<any>>) target(%58 : memref<128xf32, #tpu.memory_space<vmem>>) target_semaphore(%60 : memref<!tpu.dma_semaphore, #tpu.memory_space<semaphore_mem>>)
    %c5_i32_42 = arith.constant 5 : i32
    %61 = arith.addi %0, %c5_i32_42 : i32
    %c1_i32_43 = arith.constant 1 : i32
    %62 = arith.addi %61, %c1_i32_43 : i32
    %63 = arith.index_cast %62 : i32 to index
    %64 = memref.load %arg1[%63] : memref<80xi32, #tpu.memory_space<smem>>
    %c1_i32_44 = arith.constant 1 : i32
    %c1_i32_45 = arith.constant 1 : i32
    %c1_i32_46 = arith.constant 1 : i32
    %c1_i32_47 = arith.constant 1 : i32
    %c0_i32_48 = arith.constant 0 : i32
    %65 = tpu.memref_slice %arg3[%64, %c0_i32_48] : memref<50x128xf32, #tpu.memory_space<any>> -> memref<1x128xf32, #tpu.memory_space<any>>
    %66 = tpu.memref_squeeze %65 : memref<1x128xf32, #tpu.memory_space<any>> -> memref<128xf32, #tpu.memory_space<any>>
    %c0_i32_49 = arith.constant 0 : i32
    %67 = tpu.memref_slice %arg5[%c1_i32_44, %c1_i32_45, %c0_i32_49] : memref<8x5x128xf32, #tpu.memory_space<vmem>> -> memref<1x1x128xf32, #tpu.memory_space<vmem>>
    %68 = tpu.memref_squeeze %67 : memref<1x1x128xf32, #tpu.memory_space<vmem>> -> memref<128xf32, #tpu.memory_space<vmem>>
    %69 = tpu.memref_slice %arg6[%c1_i32_46, %c1_i32_47] : memref<8x5x!tpu.dma_semaphore, #tpu.memory_space<semaphore_mem>> -> memref<1x1x!tpu.dma_semaphore, #tpu.memory_space<semaphore_mem>>
    %70 = tpu.memref_squeeze %69 : memref<1x1x!tpu.dma_semaphore, #tpu.memory_space<semaphore_mem>> -> memref<!tpu.dma_semaphore, #tpu.memory_space<semaphore_mem>>
    tpu.enqueue_dma source(%66 : memref<128xf32, #tpu.memory_space<any>>) target(%68 : memref<128xf32, #tpu.memory_space<vmem>>) target_semaphore(%70 : memref<!tpu.dma_semaphore, #tpu.memory_space<semaphore_mem>>)
    %c5_i32_50 = arith.constant 5 : i32
    %71 = arith.addi %0, %c5_i32_50 : i32
    %c2_i32_51 = arith.constant 2 : i32
    %72 = arith.addi %71, %c2_i32_51 : i32
    %73 = arith.index_cast %72 : i32 to index
    %74 = memref.load %arg1[%73] : memref<80xi32, #tpu.memory_space<smem>>
    %c1_i32_52 = arith.constant 1 : i32
    %c2_i32_53 = arith.constant 2 : i32
    %c1_i32_54 = arith.constant 1 : i32
    %c2_i32_55 = arith.constant 2 : i32
    %c0_i32_56 = arith.constant 0 : i32
    %75 = tpu.memref_slice %arg3[%74, %c0_i32_56] : memref<50x128xf32, #tpu.memory_space<any>> -> memref<1x128xf32, #tpu.memory_space<any>>
    %76 = tpu.memref_squeeze %75 : memref<1x128xf32, #tpu.memory_space<any>> -> memref<128xf32, #tpu.memory_space<any>>
    %c0_i32_57 = arith.constant 0 : i32
    %77 = tpu.memref_slice %arg5[%c1_i32_52, %c2_i32_53, %c0_i32_57] : memref<8x5x128xf32, #tpu.memory_space<vmem>> -> memref<1x1x128xf32, #tpu.memory_space<vmem>>
    %78 = tpu.memref_squeeze %77 : memref<1x1x128xf32, #tpu.memory_space<vmem>> -> memref<128xf32, #tpu.memory_space<vmem>>
    %79 = tpu.memref_slice %arg6[%c1_i32_54, %c2_i32_55] : memref<8x5x!tpu.dma_semaphore, #tpu.memory_space<semaphore_mem>> -> memref<1x1x!tpu.dma_semaphore, #tpu.memory_space<semaphore_mem>>
    %80 = tpu.memref_squeeze %79 : memref<1x1x!tpu.dma_semaphore, #tpu.memory_space<semaphore_mem>> -> memref<!tpu.dma_semaphore, #tpu.memory_space<semaphore_mem>>
    tpu.enqueue_dma source(%76 : memref<128xf32, #tpu.memory_space<any>>) target(%78 : memref<128xf32, #tpu.memory_space<vmem>>) target_semaphore(%80 : memref<!tpu.dma_semaphore, #tpu.memory_space<semaphore_mem>>)
    %c5_i32_58 = arith.constant 5 : i32
    %81 = arith.addi %0, %c5_i32_58 : i32
    %c3_i32_59 = arith.constant 3 : i32
    %82 = arith.addi %81, %c3_i32_59 : i32
    %83 = arith.index_cast %82 : i32 to index
    %84 = memref.load %arg1[%83] : memref<80xi32, #tpu.memory_space<smem>>
    %c1_i32_60 = arith.constant 1 : i32
    %c3_i32_61 = arith.constant 3 : i32
    %c1_i32_62 = arith.constant 1 : i32
    %c3_i32_63 = arith.constant 3 : i32
    %c0_i32_64 = arith.constant 0 : i32
    %85 = tpu.memref_slice %arg3[%84, %c0_i32_64] : memref<50x128xf32, #tpu.memory_space<any>> -> memref<1x128xf32, #tpu.memory_space<any>>
    %86 = tpu.memref_squeeze %85 : memref<1x128xf32, #tpu.memory_space<any>> -> memref<128xf32, #tpu.memory_space<any>>
    %c0_i32_65 = arith.constant 0 : i32
    %87 = tpu.memref_slice %arg5[%c1_i32_60, %c3_i32_61, %c0_i32_65] : memref<8x5x128xf32, #tpu.memory_space<vmem>> -> memref<1x1x128xf32, #tpu.memory_space<vmem>>
    %88 = tpu.memref_squeeze %87 : memref<1x1x128xf32, #tpu.memory_space<vmem>> -> memref<128xf32, #tpu.memory_space<vmem>>
    %89 = tpu.memref_slice %arg6[%c1_i32_62, %c3_i32_63] : memref<8x5x!tpu.dma_semaphore, #tpu.memory_space<semaphore_mem>> -> memref<1x1x!tpu.dma_semaphore, #tpu.memory_space<semaphore_mem>>
    %90 = tpu.memref_squeeze %89 : memref<1x1x!tpu.dma_semaphore, #tpu.memory_space<semaphore_mem>> -> memref<!tpu.dma_semaphore, #tpu.memory_space<semaphore_mem>>
    tpu.enqueue_dma source(%86 : memref<128xf32, #tpu.memory_space<any>>) target(%88 : memref<128xf32, #tpu.memory_space<vmem>>) target_semaphore(%90 : memref<!tpu.dma_semaphore, #tpu.memory_space<semaphore_mem>>)
    %c5_i32_66 = arith.constant 5 : i32
    %91 = arith.addi %0, %c5_i32_66 : i32
    %c4_i32_67 = arith.constant 4 : i32
    %92 = arith.addi %91, %c4_i32_67 : i32
    %93 = arith.index_cast %92 : i32 to index
    %94 = memref.load %arg1[%93] : memref<80xi32, #tpu.memory_space<smem>>
    %c1_i32_68 = arith.constant 1 : i32
    %c4_i32_69 = arith.constant 4 : i32
    %c1_i32_70 = arith.constant 1 : i32
    %c4_i32_71 = arith.constant 4 : i32
    %c0_i32_72 = arith.constant 0 : i32
    %95 = tpu.memref_slice %arg3[%94, %c0_i32_72] : memref<50x128xf32, #tpu.memory_space<any>> -> memref<1x128xf32, #tpu.memory_space<any>>
    %96 = tpu.memref_squeeze %95 : memref<1x128xf32, #tpu.memory_space<any>> -> memref<128xf32, #tpu.memory_space<any>>
    %c0_i32_73 = arith.constant 0 : i32
    %97 = tpu.memref_slice %arg5[%c1_i32_68, %c4_i32_69, %c0_i32_73] : memref<8x5x128xf32, #tpu.memory_space<vmem>> -> memref<1x1x128xf32, #tpu.memory_space<vmem>>
    %98 = tpu.memref_squeeze %97 : memref<1x1x128xf32, #tpu.memory_space<vmem>> -> memref<128xf32, #tpu.memory_space<vmem>>
    %99 = tpu.memref_slice %arg6[%c1_i32_70, %c4_i32_71] : memref<8x5x!tpu.dma_semaphore, #tpu.memory_space<semaphore_mem>> -> memref<1x1x!tpu.dma_semaphore, #tpu.memory_space<semaphore_mem>>
    %100 = tpu.memref_squeeze %99 : memref<1x1x!tpu.dma_semaphore, #tpu.memory_space<semaphore_mem>> -> memref<!tpu.dma_semaphore, #tpu.memory_space<semaphore_mem>>
    tpu.enqueue_dma source(%96 : memref<128xf32, #tpu.memory_space<any>>) target(%98 : memref<128xf32, #tpu.memory_space<vmem>>) target_semaphore(%100 : memref<!tpu.dma_semaphore, #tpu.memory_space<semaphore_mem>>)
    %c10_i32 = arith.constant 10 : i32
    %101 = arith.addi %0, %c10_i32 : i32
    %c0_i32_74 = arith.constant 0 : i32
    %102 = arith.addi %101, %c0_i32_74 : i32
    %103 = arith.index_cast %102 : i32 to index
    %104 = memref.load %arg1[%103] : memref<80xi32, #tpu.memory_space<smem>>
    %c2_i32_75 = arith.constant 2 : i32
    %c0_i32_76 = arith.constant 0 : i32
    %c2_i32_77 = arith.constant 2 : i32
    %c0_i32_78 = arith.constant 0 : i32
    %c0_i32_79 = arith.constant 0 : i32
    %105 = tpu.memref_slice %arg3[%104, %c0_i32_79] : memref<50x128xf32, #tpu.memory_space<any>> -> memref<1x128xf32, #tpu.memory_space<any>>
    %106 = tpu.memref_squeeze %105 : memref<1x128xf32, #tpu.memory_space<any>> -> memref<128xf32, #tpu.memory_space<any>>
    %c0_i32_80 = arith.constant 0 : i32
    %107 = tpu.memref_slice %arg5[%c2_i32_75, %c0_i32_76, %c0_i32_80] : memref<8x5x128xf32, #tpu.memory_space<vmem>> -> memref<1x1x128xf32, #tpu.memory_space<vmem>>
    %108 = tpu.memref_squeeze %107 : memref<1x1x128xf32, #tpu.memory_space<vmem>> -> memref<128xf32, #tpu.memory_space<vmem>>
    %109 = tpu.memref_slice %arg6[%c2_i32_77, %c0_i32_78] : memref<8x5x!tpu.dma_semaphore, #tpu.memory_space<semaphore_mem>> -> memref<1x1x!tpu.dma_semaphore, #tpu.memory_space<semaphore_mem>>
    %110 = tpu.memref_squeeze %109 : memref<1x1x!tpu.dma_semaphore, #tpu.memory_space<semaphore_mem>> -> memref<!tpu.dma_semaphore, #tpu.memory_space<semaphore_mem>>
    tpu.enqueue_dma source(%106 : memref<128xf32, #tpu.memory_space<any>>) target(%108 : memref<128xf32, #tpu.memory_space<vmem>>) target_semaphore(%110 : memref<!tpu.dma_semaphore, #tpu.memory_space<semaphore_mem>>)
    %c10_i32_81 = arith.constant 10 : i32
    %111 = arith.addi %0, %c10_i32_81 : i32
    %c1_i32_82 = arith.constant 1 : i32
    %112 = arith.addi %111, %c1_i32_82 : i32
    %113 = arith.index_cast %112 : i32 to index
    %114 = memref.load %arg1[%113] : memref<80xi32, #tpu.memory_space<smem>>
    %c2_i32_83 = arith.constant 2 : i32
    %c1_i32_84 = arith.constant 1 : i32
    %c2_i32_85 = arith.constant 2 : i32
    %c1_i32_86 = arith.constant 1 : i32
    %c0_i32_87 = arith.constant 0 : i32
    %115 = tpu.memref_slice %arg3[%114, %c0_i32_87] : memref<50x128xf32, #tpu.memory_space<any>> -> memref<1x128xf32, #tpu.memory_space<any>>
    %116 = tpu.memref_squeeze %115 : memref<1x128xf32, #tpu.memory_space<any>> -> memref<128xf32, #tpu.memory_space<any>>
    %c0_i32_88 = arith.constant 0 : i32
    %117 = tpu.memref_slice %arg5[%c2_i32_83, %c1_i32_84, %c0_i32_88] : memref<8x5x128xf32, #tpu.memory_space<vmem>> -> memref<1x1x128xf32, #tpu.memory_space<vmem>>
    %118 = tpu.memref_squeeze %117 : memref<1x1x128xf32, #tpu.memory_space<vmem>> -> memref<128xf32, #tpu.memory_space<vmem>>
    %119 = tpu.memref_slice %arg6[%c2_i32_85, %c1_i32_86] : memref<8x5x!tpu.dma_semaphore, #tpu.memory_space<semaphore_mem>> -> memref<1x1x!tpu.dma_semaphore, #tpu.memory_space<semaphore_mem>>
    %120 = tpu.memref_squeeze %119 : memref<1x1x!tpu.dma_semaphore, #tpu.memory_space<semaphore_mem>> -> memref<!tpu.dma_semaphore, #tpu.memory_space<semaphore_mem>>
    tpu.enqueue_dma source(%116 : memref<128xf32, #tpu.memory_space<any>>) target(%118 : memref<128xf32, #tpu.memory_space<vmem>>) target_semaphore(%120 : memref<!tpu.dma_semaphore, #tpu.memory_space<semaphore_mem>>)
    %c10_i32_89 = arith.constant 10 : i32
    %121 = arith.addi %0, %c10_i32_89 : i32
    %c2_i32_90 = arith.constant 2 : i32
    %122 = arith.addi %121, %c2_i32_90 : i32
    %123 = arith.index_cast %122 : i32 to index
    %124 = memref.load %arg1[%123] : memref<80xi32, #tpu.memory_space<smem>>
    %c2_i32_91 = arith.constant 2 : i32
    %c2_i32_92 = arith.constant 2 : i32
    %c2_i32_93 = arith.constant 2 : i32
    %c2_i32_94 = arith.constant 2 : i32
    %c0_i32_95 = arith.constant 0 : i32
    %125 = tpu.memref_slice %arg3[%124, %c0_i32_95] : memref<50x128xf32, #tpu.memory_space<any>> -> memref<1x128xf32, #tpu.memory_space<any>>
    %126 = tpu.memref_squeeze %125 : memref<1x128xf32, #tpu.memory_space<any>> -> memref<128xf32, #tpu.memory_space<any>>
    %c0_i32_96 = arith.constant 0 : i32
    %127 = tpu.memref_slice %arg5[%c2_i32_91, %c2_i32_92, %c0_i32_96] : memref<8x5x128xf32, #tpu.memory_space<vmem>> -> memref<1x1x128xf32, #tpu.memory_space<vmem>>
    %128 = tpu.memref_squeeze %127 : memref<1x1x128xf32, #tpu.memory_space<vmem>> -> memref<128xf32, #tpu.memory_space<vmem>>
    %129 = tpu.memref_slice %arg6[%c2_i32_93, %c2_i32_94] : memref<8x5x!tpu.dma_semaphore, #tpu.memory_space<semaphore_mem>> -> memref<1x1x!tpu.dma_semaphore, #tpu.memory_space<semaphore_mem>>
    %130 = tpu.memref_squeeze %129 : memref<1x1x!tpu.dma_semaphore, #tpu.memory_space<semaphore_mem>> -> memref<!tpu.dma_semaphore, #tpu.memory_space<semaphore_mem>>
    tpu.enqueue_dma source(%126 : memref<128xf32, #tpu.memory_space<any>>) target(%128 : memref<128xf32, #tpu.memory_space<vmem>>) target_semaphore(%130 : memref<!tpu.dma_semaphore, #tpu.memory_space<semaphore_mem>>)
    %c10_i32_97 = arith.constant 10 : i32
    %131 = arith.addi %0, %c10_i32_97 : i32
    %c3_i32_98 = arith.constant 3 : i32
    %132 = arith.addi %131, %c3_i32_98 : i32
    %133 = arith.index_cast %132 : i32 to index
    %134 = memref.load %arg1[%133] : memref<80xi32, #tpu.memory_space<smem>>
    %c2_i32_99 = arith.constant 2 : i32
    %c3_i32_100 = arith.constant 3 : i32
    %c2_i32_101 = arith.constant 2 : i32
    %c3_i32_102 = arith.constant 3 : i32
    %c0_i32_103 = arith.constant 0 : i32
    %135 = tpu.memref_slice %arg3[%134, %c0_i32_103] : memref<50x128xf32, #tpu.memory_space<any>> -> memref<1x128xf32, #tpu.memory_space<any>>
    %136 = tpu.memref_squeeze %135 : memref<1x128xf32, #tpu.memory_space<any>> -> memref<128xf32, #tpu.memory_space<any>>
    %c0_i32_104 = arith.constant 0 : i32
    %137 = tpu.memref_slice %arg5[%c2_i32_99, %c3_i32_100, %c0_i32_104] : memref<8x5x128xf32, #tpu.memory_space<vmem>> -> memref<1x1x128xf32, #tpu.memory_space<vmem>>
    %138 = tpu.memref_squeeze %137 : memref<1x1x128xf32, #tpu.memory_space<vmem>> -> memref<128xf32, #tpu.memory_space<vmem>>
    %139 = tpu.memref_slice %arg6[%c2_i32_101, %c3_i32_102] : memref<8x5x!tpu.dma_semaphore, #tpu.memory_space<semaphore_mem>> -> memref<1x1x!tpu.dma_semaphore, #tpu.memory_space<semaphore_mem>>
    %140 = tpu.memref_squeeze %139 : memref<1x1x!tpu.dma_semaphore, #tpu.memory_space<semaphore_mem>> -> memref<!tpu.dma_semaphore, #tpu.memory_space<semaphore_mem>>
    tpu.enqueue_dma source(%136 : memref<128xf32, #tpu.memory_space<any>>) target(%138 : memref<128xf32, #tpu.memory_space<vmem>>) target_semaphore(%140 : memref<!tpu.dma_semaphore, #tpu.memory_space<semaphore_mem>>)
    %c10_i32_105 = arith.constant 10 : i32
    %141 = arith.addi %0, %c10_i32_105 : i32
    %c4_i32_106 = arith.constant 4 : i32
    %142 = arith.addi %141, %c4_i32_106 : i32
    %143 = arith.index_cast %142 : i32 to index
    %144 = memref.load %arg1[%143] : memref<80xi32, #tpu.memory_space<smem>>
    %c2_i32_107 = arith.constant 2 : i32
    %c4_i32_108 = arith.constant 4 : i32
    %c2_i32_109 = arith.constant 2 : i32
    %c4_i32_110 = arith.constant 4 : i32
    %c0_i32_111 = arith.constant 0 : i32
    %145 = tpu.memref_slice %arg3[%144, %c0_i32_111] : memref<50x128xf32, #tpu.memory_space<any>> -> memref<1x128xf32, #tpu.memory_space<any>>
    %146 = tpu.memref_squeeze %145 : memref<1x128xf32, #tpu.memory_space<any>> -> memref<128xf32, #tpu.memory_space<any>>
    %c0_i32_112 = arith.constant 0 : i32
    %147 = tpu.memref_slice %arg5[%c2_i32_107, %c4_i32_108, %c0_i32_112] : memref<8x5x128xf32, #tpu.memory_space<vmem>> -> memref<1x1x128xf32, #tpu.memory_space<vmem>>
    %148 = tpu.memref_squeeze %147 : memref<1x1x128xf32, #tpu.memory_space<vmem>> -> memref<128xf32, #tpu.memory_space<vmem>>
    %149 = tpu.memref_slice %arg6[%c2_i32_109, %c4_i32_110] : memref<8x5x!tpu.dma_semaphore, #tpu.memory_space<semaphore_mem>> -> memref<1x1x!tpu.dma_semaphore, #tpu.memory_space<semaphore_mem>>
    %150 = tpu.memref_squeeze %149 : memref<1x1x!tpu.dma_semaphore, #tpu.memory_space<semaphore_mem>> -> memref<!tpu.dma_semaphore, #tpu.memory_space<semaphore_mem>>
    tpu.enqueue_dma source(%146 : memref<128xf32, #tpu.memory_space<any>>) target(%148 : memref<128xf32, #tpu.memory_space<vmem>>) target_semaphore(%150 : memref<!tpu.dma_semaphore, #tpu.memory_space<semaphore_mem>>)
    %c15_i32 = arith.constant 15 : i32
    %151 = arith.addi %0, %c15_i32 : i32
    %c0_i32_113 = arith.constant 0 : i32
    %152 = arith.addi %151, %c0_i32_113 : i32
    %153 = arith.index_cast %152 : i32 to index
    %154 = memref.load %arg1[%153] : memref<80xi32, #tpu.memory_space<smem>>
    %c3_i32_114 = arith.constant 3 : i32
    %c0_i32_115 = arith.constant 0 : i32
    %c3_i32_116 = arith.constant 3 : i32
    %c0_i32_117 = arith.constant 0 : i32
    %c0_i32_118 = arith.constant 0 : i32
    %155 = tpu.memref_slice %arg3[%154, %c0_i32_118] : memref<50x128xf32, #tpu.memory_space<any>> -> memref<1x128xf32, #tpu.memory_space<any>>
    %156 = tpu.memref_squeeze %155 : memref<1x128xf32, #tpu.memory_space<any>> -> memref<128xf32, #tpu.memory_space<any>>
    %c0_i32_119 = arith.constant 0 : i32
    %157 = tpu.memref_slice %arg5[%c3_i32_114, %c0_i32_115, %c0_i32_119] : memref<8x5x128xf32, #tpu.memory_space<vmem>> -> memref<1x1x128xf32, #tpu.memory_space<vmem>>
    %158 = tpu.memref_squeeze %157 : memref<1x1x128xf32, #tpu.memory_space<vmem>> -> memref<128xf32, #tpu.memory_space<vmem>>
    %159 = tpu.memref_slice %arg6[%c3_i32_116, %c0_i32_117] : memref<8x5x!tpu.dma_semaphore, #tpu.memory_space<semaphore_mem>> -> memref<1x1x!tpu.dma_semaphore, #tpu.memory_space<semaphore_mem>>
    %160 = tpu.memref_squeeze %159 : memref<1x1x!tpu.dma_semaphore, #tpu.memory_space<semaphore_mem>> -> memref<!tpu.dma_semaphore, #tpu.memory_space<semaphore_mem>>
    tpu.enqueue_dma source(%156 : memref<128xf32, #tpu.memory_space<any>>) target(%158 : memref<128xf32, #tpu.memory_space<vmem>>) target_semaphore(%160 : memref<!tpu.dma_semaphore, #tpu.memory_space<semaphore_mem>>)
    %c15_i32_120 = arith.constant 15 : i32
    %161 = arith.addi %0, %c15_i32_120 : i32
    %c1_i32_121 = arith.constant 1 : i32
    %162 = arith.addi %161, %c1_i32_121 : i32
    %163 = arith.index_cast %162 : i32 to index
    %164 = memref.load %arg1[%163] : memref<80xi32, #tpu.memory_space<smem>>
    %c3_i32_122 = arith.constant 3 : i32
    %c1_i32_123 = arith.constant 1 : i32
    %c3_i32_124 = arith.constant 3 : i32
    %c1_i32_125 = arith.constant 1 : i32
    %c0_i32_126 = arith.constant 0 : i32
    %165 = tpu.memref_slice %arg3[%164, %c0_i32_126] : memref<50x128xf32, #tpu.memory_space<any>> -> memref<1x128xf32, #tpu.memory_space<any>>
    %166 = tpu.memref_squeeze %165 : memref<1x128xf32, #tpu.memory_space<any>> -> memref<128xf32, #tpu.memory_space<any>>
    %c0_i32_127 = arith.constant 0 : i32
    %167 = tpu.memref_slice %arg5[%c3_i32_122, %c1_i32_123, %c0_i32_127] : memref<8x5x128xf32, #tpu.memory_space<vmem>> -> memref<1x1x128xf32, #tpu.memory_space<vmem>>
    %168 = tpu.memref_squeeze %167 : memref<1x1x128xf32, #tpu.memory_space<vmem>> -> memref<128xf32, #tpu.memory_space<vmem>>
    %169 = tpu.memref_slice %arg6[%c3_i32_124, %c1_i32_125] : memref<8x5x!tpu.dma_semaphore, #tpu.memory_space<semaphore_mem>> -> memref<1x1x!tpu.dma_semaphore, #tpu.memory_space<semaphore_mem>>
    %170 = tpu.memref_squeeze %169 : memref<1x1x!tpu.dma_semaphore, #tpu.memory_space<semaphore_mem>> -> memref<!tpu.dma_semaphore, #tpu.memory_space<semaphore_mem>>
    tpu.enqueue_dma source(%166 : memref<128xf32, #tpu.memory_space<any>>) target(%168 : memref<128xf32, #tpu.memory_space<vmem>>) target_semaphore(%170 : memref<!tpu.dma_semaphore, #tpu.memory_space<semaphore_mem>>)
    %c15_i32_128 = arith.constant 15 : i32
    %171 = arith.addi %0, %c15_i32_128 : i32
    %c2_i32_129 = arith.constant 2 : i32
    %172 = arith.addi %171, %c2_i32_129 : i32
    %173 = arith.index_cast %172 : i32 to index
    %174 = memref.load %arg1[%173] : memref<80xi32, #tpu.memory_space<smem>>
    %c3_i32_130 = arith.constant 3 : i32
    %c2_i32_131 = arith.constant 2 : i32
    %c3_i32_132 = arith.constant 3 : i32
    %c2_i32_133 = arith.constant 2 : i32
    %c0_i32_134 = arith.constant 0 : i32
    %175 = tpu.memref_slice %arg3[%174, %c0_i32_134] : memref<50x128xf32, #tpu.memory_space<any>> -> memref<1x128xf32, #tpu.memory_space<any>>
    %176 = tpu.memref_squeeze %175 : memref<1x128xf32, #tpu.memory_space<any>> -> memref<128xf32, #tpu.memory_space<any>>
    %c0_i32_135 = arith.constant 0 : i32
    %177 = tpu.memref_slice %arg5[%c3_i32_130, %c2_i32_131, %c0_i32_135] : memref<8x5x128xf32, #tpu.memory_space<vmem>> -> memref<1x1x128xf32, #tpu.memory_space<vmem>>
    %178 = tpu.memref_squeeze %177 : memref<1x1x128xf32, #tpu.memory_space<vmem>> -> memref<128xf32, #tpu.memory_space<vmem>>
    %179 = tpu.memref_slice %arg6[%c3_i32_132, %c2_i32_133] : memref<8x5x!tpu.dma_semaphore, #tpu.memory_space<semaphore_mem>> -> memref<1x1x!tpu.dma_semaphore, #tpu.memory_space<semaphore_mem>>
    %180 = tpu.memref_squeeze %179 : memref<1x1x!tpu.dma_semaphore, #tpu.memory_space<semaphore_mem>> -> memref<!tpu.dma_semaphore, #tpu.memory_space<semaphore_mem>>
    tpu.enqueue_dma source(%176 : memref<128xf32, #tpu.memory_space<any>>) target(%178 : memref<128xf32, #tpu.memory_space<vmem>>) target_semaphore(%180 : memref<!tpu.dma_semaphore, #tpu.memory_space<semaphore_mem>>)
    %c15_i32_136 = arith.constant 15 : i32
    %181 = arith.addi %0, %c15_i32_136 : i32
    %c3_i32_137 = arith.constant 3 : i32
    %182 = arith.addi %181, %c3_i32_137 : i32
    %183 = arith.index_cast %182 : i32 to index
    %184 = memref.load %arg1[%183] : memref<80xi32, #tpu.memory_space<smem>>
    %c3_i32_138 = arith.constant 3 : i32
    %c3_i32_139 = arith.constant 3 : i32
    %c3_i32_140 = arith.constant 3 : i32
    %c3_i32_141 = arith.constant 3 : i32
    %c0_i32_142 = arith.constant 0 : i32
    %185 = tpu.memref_slice %arg3[%184, %c0_i32_142] : memref<50x128xf32, #tpu.memory_space<any>> -> memref<1x128xf32, #tpu.memory_space<any>>
    %186 = tpu.memref_squeeze %185 : memref<1x128xf32, #tpu.memory_space<any>> -> memref<128xf32, #tpu.memory_space<any>>
    %c0_i32_143 = arith.constant 0 : i32
    %187 = tpu.memref_slice %arg5[%c3_i32_138, %c3_i32_139, %c0_i32_143] : memref<8x5x128xf32, #tpu.memory_space<vmem>> -> memref<1x1x128xf32, #tpu.memory_space<vmem>>
    %188 = tpu.memref_squeeze %187 : memref<1x1x128xf32, #tpu.memory_space<vmem>> -> memref<128xf32, #tpu.memory_space<vmem>>
    %189 = tpu.memref_slice %arg6[%c3_i32_140, %c3_i32_141] : memref<8x5x!tpu.dma_semaphore, #tpu.memory_space<semaphore_mem>> -> memref<1x1x!tpu.dma_semaphore, #tpu.memory_space<semaphore_mem>>
    %190 = tpu.memref_squeeze %189 : memref<1x1x!tpu.dma_semaphore, #tpu.memory_space<semaphore_mem>> -> memref<!tpu.dma_semaphore, #tpu.memory_space<semaphore_mem>>
    tpu.enqueue_dma source(%186 : memref<128xf32, #tpu.memory_space<any>>) target(%188 : memref<128xf32, #tpu.memory_space<vmem>>) target_semaphore(%190 : memref<!tpu.dma_semaphore, #tpu.memory_space<semaphore_mem>>)
    %c15_i32_144 = arith.constant 15 : i32
    %191 = arith.addi %0, %c15_i32_144 : i32
    %c4_i32_145 = arith.constant 4 : i32
    %192 = arith.addi %191, %c4_i32_145 : i32
    %193 = arith.index_cast %192 : i32 to index
    %194 = memref.load %arg1[%193] : memref<80xi32, #tpu.memory_space<smem>>
    %c3_i32_146 = arith.constant 3 : i32
    %c4_i32_147 = arith.constant 4 : i32
    %c3_i32_148 = arith.constant 3 : i32
    %c4_i32_149 = arith.constant 4 : i32
    %c0_i32_150 = arith.constant 0 : i32
    %195 = tpu.memref_slice %arg3[%194, %c0_i32_150] : memref<50x128xf32, #tpu.memory_space<any>> -> memref<1x128xf32, #tpu.memory_space<any>>
    %196 = tpu.memref_squeeze %195 : memref<1x128xf32, #tpu.memory_space<any>> -> memref<128xf32, #tpu.memory_space<any>>
    %c0_i32_151 = arith.constant 0 : i32
    %197 = tpu.memref_slice %arg5[%c3_i32_146, %c4_i32_147, %c0_i32_151] : memref<8x5x128xf32, #tpu.memory_space<vmem>> -> memref<1x1x128xf32, #tpu.memory_space<vmem>>
    %198 = tpu.memref_squeeze %197 : memref<1x1x128xf32, #tpu.memory_space<vmem>> -> memref<128xf32, #tpu.memory_space<vmem>>
    %199 = tpu.memref_slice %arg6[%c3_i32_148, %c4_i32_149] : memref<8x5x!tpu.dma_semaphore, #tpu.memory_space<semaphore_mem>> -> memref<1x1x!tpu.dma_semaphore, #tpu.memory_space<semaphore_mem>>
    %200 = tpu.memref_squeeze %199 : memref<1x1x!tpu.dma_semaphore, #tpu.memory_space<semaphore_mem>> -> memref<!tpu.dma_semaphore, #tpu.memory_space<semaphore_mem>>
    tpu.enqueue_dma source(%196 : memref<128xf32, #tpu.memory_space<any>>) target(%198 : memref<128xf32, #tpu.memory_space<vmem>>) target_semaphore(%200 : memref<!tpu.dma_semaphore, #tpu.memory_space<semaphore_mem>>)
    %c20_i32 = arith.constant 20 : i32
    %201 = arith.addi %0, %c20_i32 : i32
    %c0_i32_152 = arith.constant 0 : i32
    %202 = arith.addi %201, %c0_i32_152 : i32
    %203 = arith.index_cast %202 : i32 to index
    %204 = memref.load %arg1[%203] : memref<80xi32, #tpu.memory_space<smem>>
    %c4_i32_153 = arith.constant 4 : i32
    %c0_i32_154 = arith.constant 0 : i32
    %c4_i32_155 = arith.constant 4 : i32
    %c0_i32_156 = arith.constant 0 : i32
    %c0_i32_157 = arith.constant 0 : i32
    %205 = tpu.memref_slice %arg3[%204, %c0_i32_157] : memref<50x128xf32, #tpu.memory_space<any>> -> memref<1x128xf32, #tpu.memory_space<any>>
    %206 = tpu.memref_squeeze %205 : memref<1x128xf32, #tpu.memory_space<any>> -> memref<128xf32, #tpu.memory_space<any>>
    %c0_i32_158 = arith.constant 0 : i32
    %207 = tpu.memref_slice %arg5[%c4_i32_153, %c0_i32_154, %c0_i32_158] : memref<8x5x128xf32, #tpu.memory_space<vmem>> -> memref<1x1x128xf32, #tpu.memory_space<vmem>>
    %208 = tpu.memref_squeeze %207 : memref<1x1x128xf32, #tpu.memory_space<vmem>> -> memref<128xf32, #tpu.memory_space<vmem>>
    %209 = tpu.memref_slice %arg6[%c4_i32_155, %c0_i32_156] : memref<8x5x!tpu.dma_semaphore, #tpu.memory_space<semaphore_mem>> -> memref<1x1x!tpu.dma_semaphore, #tpu.memory_space<semaphore_mem>>
    %210 = tpu.memref_squeeze %209 : memref<1x1x!tpu.dma_semaphore, #tpu.memory_space<semaphore_mem>> -> memref<!tpu.dma_semaphore, #tpu.memory_space<semaphore_mem>>
    tpu.enqueue_dma source(%206 : memref<128xf32, #tpu.memory_space<any>>) target(%208 : memref<128xf32, #tpu.memory_space<vmem>>) target_semaphore(%210 : memref<!tpu.dma_semaphore, #tpu.memory_space<semaphore_mem>>)
    %c20_i32_159 = arith.constant 20 : i32
    %211 = arith.addi %0, %c20_i32_159 : i32
    %c1_i32_160 = arith.constant 1 : i32
    %212 = arith.addi %211, %c1_i32_160 : i32
    %213 = arith.index_cast %212 : i32 to index
    %214 = memref.load %arg1[%213] : memref<80xi32, #tpu.memory_space<smem>>
    %c4_i32_161 = arith.constant 4 : i32
    %c1_i32_162 = arith.constant 1 : i32
    %c4_i32_163 = arith.constant 4 : i32
    %c1_i32_164 = arith.constant 1 : i32
    %c0_i32_165 = arith.constant 0 : i32
    %215 = tpu.memref_slice %arg3[%214, %c0_i32_165] : memref<50x128xf32, #tpu.memory_space<any>> -> memref<1x128xf32, #tpu.memory_space<any>>
    %216 = tpu.memref_squeeze %215 : memref<1x128xf32, #tpu.memory_space<any>> -> memref<128xf32, #tpu.memory_space<any>>
    %c0_i32_166 = arith.constant 0 : i32
    %217 = tpu.memref_slice %arg5[%c4_i32_161, %c1_i32_162, %c0_i32_166] : memref<8x5x128xf32, #tpu.memory_space<vmem>> -> memref<1x1x128xf32, #tpu.memory_space<vmem>>
    %218 = tpu.memref_squeeze %217 : memref<1x1x128xf32, #tpu.memory_space<vmem>> -> memref<128xf32, #tpu.memory_space<vmem>>
    %219 = tpu.memref_slice %arg6[%c4_i32_163, %c1_i32_164] : memref<8x5x!tpu.dma_semaphore, #tpu.memory_space<semaphore_mem>> -> memref<1x1x!tpu.dma_semaphore, #tpu.memory_space<semaphore_mem>>
    %220 = tpu.memref_squeeze %219 : memref<1x1x!tpu.dma_semaphore, #tpu.memory_space<semaphore_mem>> -> memref<!tpu.dma_semaphore, #tpu.memory_space<semaphore_mem>>
    tpu.enqueue_dma source(%216 : memref<128xf32, #tpu.memory_space<any>>) target(%218 : memref<128xf32, #tpu.memory_space<vmem>>) target_semaphore(%220 : memref<!tpu.dma_semaphore, #tpu.memory_space<semaphore_mem>>)
    %c20_i32_167 = arith.constant 20 : i32
    %221 = arith.addi %0, %c20_i32_167 : i32
    %c2_i32_168 = arith.constant 2 : i32
    %222 = arith.addi %221, %c2_i32_168 : i32
    %223 = arith.index_cast %222 : i32 to index
    %224 = memref.load %arg1[%223] : memref<80xi32, #tpu.memory_space<smem>>
    %c4_i32_169 = arith.constant 4 : i32
    %c2_i32_170 = arith.constant 2 : i32
    %c4_i32_171 = arith.constant 4 : i32
    %c2_i32_172 = arith.constant 2 : i32
    %c0_i32_173 = arith.constant 0 : i32
    %225 = tpu.memref_slice %arg3[%224, %c0_i32_173] : memref<50x128xf32, #tpu.memory_space<any>> -> memref<1x128xf32, #tpu.memory_space<any>>
    %226 = tpu.memref_squeeze %225 : memref<1x128xf32, #tpu.memory_space<any>> -> memref<128xf32, #tpu.memory_space<any>>
    %c0_i32_174 = arith.constant 0 : i32
    %227 = tpu.memref_slice %arg5[%c4_i32_169, %c2_i32_170, %c0_i32_174] : memref<8x5x128xf32, #tpu.memory_space<vmem>> -> memref<1x1x128xf32, #tpu.memory_space<vmem>>
    %228 = tpu.memref_squeeze %227 : memref<1x1x128xf32, #tpu.memory_space<vmem>> -> memref<128xf32, #tpu.memory_space<vmem>>
    %229 = tpu.memref_slice %arg6[%c4_i32_171, %c2_i32_172] : memref<8x5x!tpu.dma_semaphore, #tpu.memory_space<semaphore_mem>> -> memref<1x1x!tpu.dma_semaphore, #tpu.memory_space<semaphore_mem>>
    %230 = tpu.memref_squeeze %229 : memref<1x1x!tpu.dma_semaphore, #tpu.memory_space<semaphore_mem>> -> memref<!tpu.dma_semaphore, #tpu.memory_space<semaphore_mem>>
    tpu.enqueue_dma source(%226 : memref<128xf32, #tpu.memory_space<any>>) target(%228 : memref<128xf32, #tpu.memory_space<vmem>>) target_semaphore(%230 : memref<!tpu.dma_semaphore, #tpu.memory_space<semaphore_mem>>)
    %c20_i32_175 = arith.constant 20 : i32
    %231 = arith.addi %0, %c20_i32_175 : i32
    %c3_i32_176 = arith.constant 3 : i32
    %232 = arith.addi %231, %c3_i32_176 : i32
    %233 = arith.index_cast %232 : i32 to index
    %234 = memref.load %arg1[%233] : memref<80xi32, #tpu.memory_space<smem>>
    %c4_i32_177 = arith.constant 4 : i32
    %c3_i32_178 = arith.constant 3 : i32
    %c4_i32_179 = arith.constant 4 : i32
    %c3_i32_180 = arith.constant 3 : i32
    %c0_i32_181 = arith.constant 0 : i32
    %235 = tpu.memref_slice %arg3[%234, %c0_i32_181] : memref<50x128xf32, #tpu.memory_space<any>> -> memref<1x128xf32, #tpu.memory_space<any>>
    %236 = tpu.memref_squeeze %235 : memref<1x128xf32, #tpu.memory_space<any>> -> memref<128xf32, #tpu.memory_space<any>>
    %c0_i32_182 = arith.constant 0 : i32
    %237 = tpu.memref_slice %arg5[%c4_i32_177, %c3_i32_178, %c0_i32_182] : memref<8x5x128xf32, #tpu.memory_space<vmem>> -> memref<1x1x128xf32, #tpu.memory_space<vmem>>
    %238 = tpu.memref_squeeze %237 : memref<1x1x128xf32, #tpu.memory_space<vmem>> -> memref<128xf32, #tpu.memory_space<vmem>>
    %239 = tpu.memref_slice %arg6[%c4_i32_179, %c3_i32_180] : memref<8x5x!tpu.dma_semaphore, #tpu.memory_space<semaphore_mem>> -> memref<1x1x!tpu.dma_semaphore, #tpu.memory_space<semaphore_mem>>
    %240 = tpu.memref_squeeze %239 : memref<1x1x!tpu.dma_semaphore, #tpu.memory_space<semaphore_mem>> -> memref<!tpu.dma_semaphore, #tpu.memory_space<semaphore_mem>>
    tpu.enqueue_dma source(%236 : memref<128xf32, #tpu.memory_space<any>>) target(%238 : memref<128xf32, #tpu.memory_space<vmem>>) target_semaphore(%240 : memref<!tpu.dma_semaphore, #tpu.memory_space<semaphore_mem>>)
    %c20_i32_183 = arith.constant 20 : i32
    %241 = arith.addi %0, %c20_i32_183 : i32
    %c4_i32_184 = arith.constant 4 : i32
    %242 = arith.addi %241, %c4_i32_184 : i32
    %243 = arith.index_cast %242 : i32 to index
    %244 = memref.load %arg1[%243] : memref<80xi32, #tpu.memory_space<smem>>
    %c4_i32_185 = arith.constant 4 : i32
    %c4_i32_186 = arith.constant 4 : i32
    %c4_i32_187 = arith.constant 4 : i32
    %c4_i32_188 = arith.constant 4 : i32
    %c0_i32_189 = arith.constant 0 : i32
    %245 = tpu.memref_slice %arg3[%244, %c0_i32_189] : memref<50x128xf32, #tpu.memory_space<any>> -> memref<1x128xf32, #tpu.memory_space<any>>
    %246 = tpu.memref_squeeze %245 : memref<1x128xf32, #tpu.memory_space<any>> -> memref<128xf32, #tpu.memory_space<any>>
    %c0_i32_190 = arith.constant 0 : i32
    %247 = tpu.memref_slice %arg5[%c4_i32_185, %c4_i32_186, %c0_i32_190] : memref<8x5x128xf32, #tpu.memory_space<vmem>> -> memref<1x1x128xf32, #tpu.memory_space<vmem>>
    %248 = tpu.memref_squeeze %247 : memref<1x1x128xf32, #tpu.memory_space<vmem>> -> memref<128xf32, #tpu.memory_space<vmem>>
    %249 = tpu.memref_slice %arg6[%c4_i32_187, %c4_i32_188] : memref<8x5x!tpu.dma_semaphore, #tpu.memory_space<semaphore_mem>> -> memref<1x1x!tpu.dma_semaphore, #tpu.memory_space<semaphore_mem>>
    %250 = tpu.memref_squeeze %249 : memref<1x1x!tpu.dma_semaphore, #tpu.memory_space<semaphore_mem>> -> memref<!tpu.dma_semaphore, #tpu.memory_space<semaphore_mem>>
    tpu.enqueue_dma source(%246 : memref<128xf32, #tpu.memory_space<any>>) target(%248 : memref<128xf32, #tpu.memory_space<vmem>>) target_semaphore(%250 : memref<!tpu.dma_semaphore, #tpu.memory_space<semaphore_mem>>)
    %c25_i32 = arith.constant 25 : i32
    %251 = arith.addi %0, %c25_i32 : i32
    %c0_i32_191 = arith.constant 0 : i32
    %252 = arith.addi %251, %c0_i32_191 : i32
    %253 = arith.index_cast %252 : i32 to index
    %254 = memref.load %arg1[%253] : memref<80xi32, #tpu.memory_space<smem>>
    %c5_i32_192 = arith.constant 5 : i32
    %c0_i32_193 = arith.constant 0 : i32
    %c5_i32_194 = arith.constant 5 : i32
    %c0_i32_195 = arith.constant 0 : i32
    %c0_i32_196 = arith.constant 0 : i32
    %255 = tpu.memref_slice %arg3[%254, %c0_i32_196] : memref<50x128xf32, #tpu.memory_space<any>> -> memref<1x128xf32, #tpu.memory_space<any>>
    %256 = tpu.memref_squeeze %255 : memref<1x128xf32, #tpu.memory_space<any>> -> memref<128xf32, #tpu.memory_space<any>>
    %c0_i32_197 = arith.constant 0 : i32
    %257 = tpu.memref_slice %arg5[%c5_i32_192, %c0_i32_193, %c0_i32_197] : memref<8x5x128xf32, #tpu.memory_space<vmem>> -> memref<1x1x128xf32, #tpu.memory_space<vmem>>
    %258 = tpu.memref_squeeze %257 : memref<1x1x128xf32, #tpu.memory_space<vmem>> -> memref<128xf32, #tpu.memory_space<vmem>>
    %259 = tpu.memref_slice %arg6[%c5_i32_194, %c0_i32_195] : memref<8x5x!tpu.dma_semaphore, #tpu.memory_space<semaphore_mem>> -> memref<1x1x!tpu.dma_semaphore, #tpu.memory_space<semaphore_mem>>
    %260 = tpu.memref_squeeze %259 : memref<1x1x!tpu.dma_semaphore, #tpu.memory_space<semaphore_mem>> -> memref<!tpu.dma_semaphore, #tpu.memory_space<semaphore_mem>>
    tpu.enqueue_dma source(%256 : memref<128xf32, #tpu.memory_space<any>>) target(%258 : memref<128xf32, #tpu.memory_space<vmem>>) target_semaphore(%260 : memref<!tpu.dma_semaphore, #tpu.memory_space<semaphore_mem>>)
    %c25_i32_198 = arith.constant 25 : i32
    %261 = arith.addi %0, %c25_i32_198 : i32
    %c1_i32_199 = arith.constant 1 : i32
    %262 = arith.addi %261, %c1_i32_199 : i32
    %263 = arith.index_cast %262 : i32 to index
    %264 = memref.load %arg1[%263] : memref<80xi32, #tpu.memory_space<smem>>
    %c5_i32_200 = arith.constant 5 : i32
    %c1_i32_201 = arith.constant 1 : i32
    %c5_i32_202 = arith.constant 5 : i32
    %c1_i32_203 = arith.constant 1 : i32
    %c0_i32_204 = arith.constant 0 : i32
    %265 = tpu.memref_slice %arg3[%264, %c0_i32_204] : memref<50x128xf32, #tpu.memory_space<any>> -> memref<1x128xf32, #tpu.memory_space<any>>
    %266 = tpu.memref_squeeze %265 : memref<1x128xf32, #tpu.memory_space<any>> -> memref<128xf32, #tpu.memory_space<any>>
    %c0_i32_205 = arith.constant 0 : i32
    %267 = tpu.memref_slice %arg5[%c5_i32_200, %c1_i32_201, %c0_i32_205] : memref<8x5x128xf32, #tpu.memory_space<vmem>> -> memref<1x1x128xf32, #tpu.memory_space<vmem>>
    %268 = tpu.memref_squeeze %267 : memref<1x1x128xf32, #tpu.memory_space<vmem>> -> memref<128xf32, #tpu.memory_space<vmem>>
    %269 = tpu.memref_slice %arg6[%c5_i32_202, %c1_i32_203] : memref<8x5x!tpu.dma_semaphore, #tpu.memory_space<semaphore_mem>> -> memref<1x1x!tpu.dma_semaphore, #tpu.memory_space<semaphore_mem>>
    %270 = tpu.memref_squeeze %269 : memref<1x1x!tpu.dma_semaphore, #tpu.memory_space<semaphore_mem>> -> memref<!tpu.dma_semaphore, #tpu.memory_space<semaphore_mem>>
    tpu.enqueue_dma source(%266 : memref<128xf32, #tpu.memory_space<any>>) target(%268 : memref<128xf32, #tpu.memory_space<vmem>>) target_semaphore(%270 : memref<!tpu.dma_semaphore, #tpu.memory_space<semaphore_mem>>)
    %c25_i32_206 = arith.constant 25 : i32
    %271 = arith.addi %0, %c25_i32_206 : i32
    %c2_i32_207 = arith.constant 2 : i32
    %272 = arith.addi %271, %c2_i32_207 : i32
    %273 = arith.index_cast %272 : i32 to index
    %274 = memref.load %arg1[%273] : memref<80xi32, #tpu.memory_space<smem>>
    %c5_i32_208 = arith.constant 5 : i32
    %c2_i32_209 = arith.constant 2 : i32
    %c5_i32_210 = arith.constant 5 : i32
    %c2_i32_211 = arith.constant 2 : i32
    %c0_i32_212 = arith.constant 0 : i32
    %275 = tpu.memref_slice %arg3[%274, %c0_i32_212] : memref<50x128xf32, #tpu.memory_space<any>> -> memref<1x128xf32, #tpu.memory_space<any>>
    %276 = tpu.memref_squeeze %275 : memref<1x128xf32, #tpu.memory_space<any>> -> memref<128xf32, #tpu.memory_space<any>>
    %c0_i32_213 = arith.constant 0 : i32
    %277 = tpu.memref_slice %arg5[%c5_i32_208, %c2_i32_209, %c0_i32_213] : memref<8x5x128xf32, #tpu.memory_space<vmem>> -> memref<1x1x128xf32, #tpu.memory_space<vmem>>
    %278 = tpu.memref_squeeze %277 : memref<1x1x128xf32, #tpu.memory_space<vmem>> -> memref<128xf32, #tpu.memory_space<vmem>>
    %279 = tpu.memref_slice %arg6[%c5_i32_210, %c2_i32_211] : memref<8x5x!tpu.dma_semaphore, #tpu.memory_space<semaphore_mem>> -> memref<1x1x!tpu.dma_semaphore, #tpu.memory_space<semaphore_mem>>
    %280 = tpu.memref_squeeze %279 : memref<1x1x!tpu.dma_semaphore, #tpu.memory_space<semaphore_mem>> -> memref<!tpu.dma_semaphore, #tpu.memory_space<semaphore_mem>>
    tpu.enqueue_dma source(%276 : memref<128xf32, #tpu.memory_space<any>>) target(%278 : memref<128xf32, #tpu.memory_space<vmem>>) target_semaphore(%280 : memref<!tpu.dma_semaphore, #tpu.memory_space<semaphore_mem>>)
    %c25_i32_214 = arith.constant 25 : i32
    %281 = arith.addi %0, %c25_i32_214 : i32
    %c3_i32_215 = arith.constant 3 : i32
    %282 = arith.addi %281, %c3_i32_215 : i32
    %283 = arith.index_cast %282 : i32 to index
    %284 = memref.load %arg1[%283] : memref<80xi32, #tpu.memory_space<smem>>
    %c5_i32_216 = arith.constant 5 : i32
    %c3_i32_217 = arith.constant 3 : i32
    %c5_i32_218 = arith.constant 5 : i32
    %c3_i32_219 = arith.constant 3 : i32
    %c0_i32_220 = arith.constant 0 : i32
    %285 = tpu.memref_slice %arg3[%284, %c0_i32_220] : memref<50x128xf32, #tpu.memory_space<any>> -> memref<1x128xf32, #tpu.memory_space<any>>
    %286 = tpu.memref_squeeze %285 : memref<1x128xf32, #tpu.memory_space<any>> -> memref<128xf32, #tpu.memory_space<any>>
    %c0_i32_221 = arith.constant 0 : i32
    %287 = tpu.memref_slice %arg5[%c5_i32_216, %c3_i32_217, %c0_i32_221] : memref<8x5x128xf32, #tpu.memory_space<vmem>> -> memref<1x1x128xf32, #tpu.memory_space<vmem>>
    %288 = tpu.memref_squeeze %287 : memref<1x1x128xf32, #tpu.memory_space<vmem>> -> memref<128xf32, #tpu.memory_space<vmem>>
    %289 = tpu.memref_slice %arg6[%c5_i32_218, %c3_i32_219] : memref<8x5x!tpu.dma_semaphore, #tpu.memory_space<semaphore_mem>> -> memref<1x1x!tpu.dma_semaphore, #tpu.memory_space<semaphore_mem>>
    %290 = tpu.memref_squeeze %289 : memref<1x1x!tpu.dma_semaphore, #tpu.memory_space<semaphore_mem>> -> memref<!tpu.dma_semaphore, #tpu.memory_space<semaphore_mem>>
    tpu.enqueue_dma source(%286 : memref<128xf32, #tpu.memory_space<any>>) target(%288 : memref<128xf32, #tpu.memory_space<vmem>>) target_semaphore(%290 : memref<!tpu.dma_semaphore, #tpu.memory_space<semaphore_mem>>)
    %c25_i32_222 = arith.constant 25 : i32
    %291 = arith.addi %0, %c25_i32_222 : i32
    %c4_i32_223 = arith.constant 4 : i32
    %292 = arith.addi %291, %c4_i32_223 : i32
    %293 = arith.index_cast %292 : i32 to index
    %294 = memref.load %arg1[%293] : memref<80xi32, #tpu.memory_space<smem>>
    %c5_i32_224 = arith.constant 5 : i32
    %c4_i32_225 = arith.constant 4 : i32
    %c5_i32_226 = arith.constant 5 : i32
    %c4_i32_227 = arith.constant 4 : i32
    %c0_i32_228 = arith.constant 0 : i32
    %295 = tpu.memref_slice %arg3[%294, %c0_i32_228] : memref<50x128xf32, #tpu.memory_space<any>> -> memref<1x128xf32, #tpu.memory_space<any>>
    %296 = tpu.memref_squeeze %295 : memref<1x128xf32, #tpu.memory_space<any>> -> memref<128xf32, #tpu.memory_space<any>>
    %c0_i32_229 = arith.constant 0 : i32
    %297 = tpu.memref_slice %arg5[%c5_i32_224, %c4_i32_225, %c0_i32_229] : memref<8x5x128xf32, #tpu.memory_space<vmem>> -> memref<1x1x128xf32, #tpu.memory_space<vmem>>
    %298 = tpu.memref_squeeze %297 : memref<1x1x128xf32, #tpu.memory_space<vmem>> -> memref<128xf32, #tpu.memory_space<vmem>>
    %299 = tpu.memref_slice %arg6[%c5_i32_226, %c4_i32_227] : memref<8x5x!tpu.dma_semaphore, #tpu.memory_space<semaphore_mem>> -> memref<1x1x!tpu.dma_semaphore, #tpu.memory_space<semaphore_mem>>
    %300 = tpu.memref_squeeze %299 : memref<1x1x!tpu.dma_semaphore, #tpu.memory_space<semaphore_mem>> -> memref<!tpu.dma_semaphore, #tpu.memory_space<semaphore_mem>>
    tpu.enqueue_dma source(%296 : memref<128xf32, #tpu.memory_space<any>>) target(%298 : memref<128xf32, #tpu.memory_space<vmem>>) target_semaphore(%300 : memref<!tpu.dma_semaphore, #tpu.memory_space<semaphore_mem>>)
    %c30_i32 = arith.constant 30 : i32
    %301 = arith.addi %0, %c30_i32 : i32
    %c0_i32_230 = arith.constant 0 : i32
    %302 = arith.addi %301, %c0_i32_230 : i32
    %303 = arith.index_cast %302 : i32 to index
    %304 = memref.load %arg1[%303] : memref<80xi32, #tpu.memory_space<smem>>
    %c6_i32 = arith.constant 6 : i32
    %c0_i32_231 = arith.constant 0 : i32
    %c6_i32_232 = arith.constant 6 : i32
    %c0_i32_233 = arith.constant 0 : i32
    %c0_i32_234 = arith.constant 0 : i32
    %305 = tpu.memref_slice %arg3[%304, %c0_i32_234] : memref<50x128xf32, #tpu.memory_space<any>> -> memref<1x128xf32, #tpu.memory_space<any>>
    %306 = tpu.memref_squeeze %305 : memref<1x128xf32, #tpu.memory_space<any>> -> memref<128xf32, #tpu.memory_space<any>>
    %c0_i32_235 = arith.constant 0 : i32
    %307 = tpu.memref_slice %arg5[%c6_i32, %c0_i32_231, %c0_i32_235] : memref<8x5x128xf32, #tpu.memory_space<vmem>> -> memref<1x1x128xf32, #tpu.memory_space<vmem>>
    %308 = tpu.memref_squeeze %307 : memref<1x1x128xf32, #tpu.memory_space<vmem>> -> memref<128xf32, #tpu.memory_space<vmem>>
    %309 = tpu.memref_slice %arg6[%c6_i32_232, %c0_i32_233] : memref<8x5x!tpu.dma_semaphore, #tpu.memory_space<semaphore_mem>> -> memref<1x1x!tpu.dma_semaphore, #tpu.memory_space<semaphore_mem>>
    %310 = tpu.memref_squeeze %309 : memref<1x1x!tpu.dma_semaphore, #tpu.memory_space<semaphore_mem>> -> memref<!tpu.dma_semaphore, #tpu.memory_space<semaphore_mem>>
    tpu.enqueue_dma source(%306 : memref<128xf32, #tpu.memory_space<any>>) target(%308 : memref<128xf32, #tpu.memory_space<vmem>>) target_semaphore(%310 : memref<!tpu.dma_semaphore, #tpu.memory_space<semaphore_mem>>)
    %c30_i32_236 = arith.constant 30 : i32
    %311 = arith.addi %0, %c30_i32_236 : i32
    %c1_i32_237 = arith.constant 1 : i32
    %312 = arith.addi %311, %c1_i32_237 : i32
    %313 = arith.index_cast %312 : i32 to index
    %314 = memref.load %arg1[%313] : memref<80xi32, #tpu.memory_space<smem>>
    %c6_i32_238 = arith.constant 6 : i32
    %c1_i32_239 = arith.constant 1 : i32
    %c6_i32_240 = arith.constant 6 : i32
    %c1_i32_241 = arith.constant 1 : i32
    %c0_i32_242 = arith.constant 0 : i32
    %315 = tpu.memref_slice %arg3[%314, %c0_i32_242] : memref<50x128xf32, #tpu.memory_space<any>> -> memref<1x128xf32, #tpu.memory_space<any>>
    %316 = tpu.memref_squeeze %315 : memref<1x128xf32, #tpu.memory_space<any>> -> memref<128xf32, #tpu.memory_space<any>>
    %c0_i32_243 = arith.constant 0 : i32
    %317 = tpu.memref_slice %arg5[%c6_i32_238, %c1_i32_239, %c0_i32_243] : memref<8x5x128xf32, #tpu.memory_space<vmem>> -> memref<1x1x128xf32, #tpu.memory_space<vmem>>
    %318 = tpu.memref_squeeze %317 : memref<1x1x128xf32, #tpu.memory_space<vmem>> -> memref<128xf32, #tpu.memory_space<vmem>>
    %319 = tpu.memref_slice %arg6[%c6_i32_240, %c1_i32_241] : memref<8x5x!tpu.dma_semaphore, #tpu.memory_space<semaphore_mem>> -> memref<1x1x!tpu.dma_semaphore, #tpu.memory_space<semaphore_mem>>
    %320 = tpu.memref_squeeze %319 : memref<1x1x!tpu.dma_semaphore, #tpu.memory_space<semaphore_mem>> -> memref<!tpu.dma_semaphore, #tpu.memory_space<semaphore_mem>>
    tpu.enqueue_dma source(%316 : memref<128xf32, #tpu.memory_space<any>>) target(%318 : memref<128xf32, #tpu.memory_space<vmem>>) target_semaphore(%320 : memref<!tpu.dma_semaphore, #tpu.memory_space<semaphore_mem>>)
    %c30_i32_244 = arith.constant 30 : i32
    %321 = arith.addi %0, %c30_i32_244 : i32
    %c2_i32_245 = arith.constant 2 : i32
    %322 = arith.addi %321, %c2_i32_245 : i32
    %323 = arith.index_cast %322 : i32 to index
    %324 = memref.load %arg1[%323] : memref<80xi32, #tpu.memory_space<smem>>
    %c6_i32_246 = arith.constant 6 : i32
    %c2_i32_247 = arith.constant 2 : i32
    %c6_i32_248 = arith.constant 6 : i32
    %c2_i32_249 = arith.constant 2 : i32
    %c0_i32_250 = arith.constant 0 : i32
    %325 = tpu.memref_slice %arg3[%324, %c0_i32_250] : memref<50x128xf32, #tpu.memory_space<any>> -> memref<1x128xf32, #tpu.memory_space<any>>
    %326 = tpu.memref_squeeze %325 : memref<1x128xf32, #tpu.memory_space<any>> -> memref<128xf32, #tpu.memory_space<any>>
    %c0_i32_251 = arith.constant 0 : i32
    %327 = tpu.memref_slice %arg5[%c6_i32_246, %c2_i32_247, %c0_i32_251] : memref<8x5x128xf32, #tpu.memory_space<vmem>> -> memref<1x1x128xf32, #tpu.memory_space<vmem>>
    %328 = tpu.memref_squeeze %327 : memref<1x1x128xf32, #tpu.memory_space<vmem>> -> memref<128xf32, #tpu.memory_space<vmem>>
    %329 = tpu.memref_slice %arg6[%c6_i32_248, %c2_i32_249] : memref<8x5x!tpu.dma_semaphore, #tpu.memory_space<semaphore_mem>> -> memref<1x1x!tpu.dma_semaphore, #tpu.memory_space<semaphore_mem>>
    %330 = tpu.memref_squeeze %329 : memref<1x1x!tpu.dma_semaphore, #tpu.memory_space<semaphore_mem>> -> memref<!tpu.dma_semaphore, #tpu.memory_space<semaphore_mem>>
    tpu.enqueue_dma source(%326 : memref<128xf32, #tpu.memory_space<any>>) target(%328 : memref<128xf32, #tpu.memory_space<vmem>>) target_semaphore(%330 : memref<!tpu.dma_semaphore, #tpu.memory_space<semaphore_mem>>)
    %c30_i32_252 = arith.constant 30 : i32
    %331 = arith.addi %0, %c30_i32_252 : i32
    %c3_i32_253 = arith.constant 3 : i32
    %332 = arith.addi %331, %c3_i32_253 : i32
    %333 = arith.index_cast %332 : i32 to index
    %334 = memref.load %arg1[%333] : memref<80xi32, #tpu.memory_space<smem>>
    %c6_i32_254 = arith.constant 6 : i32
    %c3_i32_255 = arith.constant 3 : i32
    %c6_i32_256 = arith.constant 6 : i32
    %c3_i32_257 = arith.constant 3 : i32
    %c0_i32_258 = arith.constant 0 : i32
    %335 = tpu.memref_slice %arg3[%334, %c0_i32_258] : memref<50x128xf32, #tpu.memory_space<any>> -> memref<1x128xf32, #tpu.memory_space<any>>
    %336 = tpu.memref_squeeze %335 : memref<1x128xf32, #tpu.memory_space<any>> -> memref<128xf32, #tpu.memory_space<any>>
    %c0_i32_259 = arith.constant 0 : i32
    %337 = tpu.memref_slice %arg5[%c6_i32_254, %c3_i32_255, %c0_i32_259] : memref<8x5x128xf32, #tpu.memory_space<vmem>> -> memref<1x1x128xf32, #tpu.memory_space<vmem>>
    %338 = tpu.memref_squeeze %337 : memref<1x1x128xf32, #tpu.memory_space<vmem>> -> memref<128xf32, #tpu.memory_space<vmem>>
    %339 = tpu.memref_slice %arg6[%c6_i32_256, %c3_i32_257] : memref<8x5x!tpu.dma_semaphore, #tpu.memory_space<semaphore_mem>> -> memref<1x1x!tpu.dma_semaphore, #tpu.memory_space<semaphore_mem>>
    %340 = tpu.memref_squeeze %339 : memref<1x1x!tpu.dma_semaphore, #tpu.memory_space<semaphore_mem>> -> memref<!tpu.dma_semaphore, #tpu.memory_space<semaphore_mem>>
    tpu.enqueue_dma source(%336 : memref<128xf32, #tpu.memory_space<any>>) target(%338 : memref<128xf32, #tpu.memory_space<vmem>>) target_semaphore(%340 : memref<!tpu.dma_semaphore, #tpu.memory_space<semaphore_mem>>)
    %c30_i32_260 = arith.constant 30 : i32
    %341 = arith.addi %0, %c30_i32_260 : i32
    %c4_i32_261 = arith.constant 4 : i32
    %342 = arith.addi %341, %c4_i32_261 : i32
    %343 = arith.index_cast %342 : i32 to index
    %344 = memref.load %arg1[%343] : memref<80xi32, #tpu.memory_space<smem>>
    %c6_i32_262 = arith.constant 6 : i32
    %c4_i32_263 = arith.constant 4 : i32
    %c6_i32_264 = arith.constant 6 : i32
    %c4_i32_265 = arith.constant 4 : i32
    %c0_i32_266 = arith.constant 0 : i32
    %345 = tpu.memref_slice %arg3[%344, %c0_i32_266] : memref<50x128xf32, #tpu.memory_space<any>> -> memref<1x128xf32, #tpu.memory_space<any>>
    %346 = tpu.memref_squeeze %345 : memref<1x128xf32, #tpu.memory_space<any>> -> memref<128xf32, #tpu.memory_space<any>>
    %c0_i32_267 = arith.constant 0 : i32
    %347 = tpu.memref_slice %arg5[%c6_i32_262, %c4_i32_263, %c0_i32_267] : memref<8x5x128xf32, #tpu.memory_space<vmem>> -> memref<1x1x128xf32, #tpu.memory_space<vmem>>
    %348 = tpu.memref_squeeze %347 : memref<1x1x128xf32, #tpu.memory_space<vmem>> -> memref<128xf32, #tpu.memory_space<vmem>>
    %349 = tpu.memref_slice %arg6[%c6_i32_264, %c4_i32_265] : memref<8x5x!tpu.dma_semaphore, #tpu.memory_space<semaphore_mem>> -> memref<1x1x!tpu.dma_semaphore, #tpu.memory_space<semaphore_mem>>
    %350 = tpu.memref_squeeze %349 : memref<1x1x!tpu.dma_semaphore, #tpu.memory_space<semaphore_mem>> -> memref<!tpu.dma_semaphore, #tpu.memory_space<semaphore_mem>>
    tpu.enqueue_dma source(%346 : memref<128xf32, #tpu.memory_space<any>>) target(%348 : memref<128xf32, #tpu.memory_space<vmem>>) target_semaphore(%350 : memref<!tpu.dma_semaphore, #tpu.memory_space<semaphore_mem>>)
    %c35_i32 = arith.constant 35 : i32
    %351 = arith.addi %0, %c35_i32 : i32
    %c0_i32_268 = arith.constant 0 : i32
    %352 = arith.addi %351, %c0_i32_268 : i32
    %353 = arith.index_cast %352 : i32 to index
    %354 = memref.load %arg1[%353] : memref<80xi32, #tpu.memory_space<smem>>
    %c7_i32 = arith.constant 7 : i32
    %c0_i32_269 = arith.constant 0 : i32
    %c7_i32_270 = arith.constant 7 : i32
    %c0_i32_271 = arith.constant 0 : i32
    %c0_i32_272 = arith.constant 0 : i32
    %355 = tpu.memref_slice %arg3[%354, %c0_i32_272] : memref<50x128xf32, #tpu.memory_space<any>> -> memref<1x128xf32, #tpu.memory_space<any>>
    %356 = tpu.memref_squeeze %355 : memref<1x128xf32, #tpu.memory_space<any>> -> memref<128xf32, #tpu.memory_space<any>>
    %c0_i32_273 = arith.constant 0 : i32
    %357 = tpu.memref_slice %arg5[%c7_i32, %c0_i32_269, %c0_i32_273] : memref<8x5x128xf32, #tpu.memory_space<vmem>> -> memref<1x1x128xf32, #tpu.memory_space<vmem>>
    %358 = tpu.memref_squeeze %357 : memref<1x1x128xf32, #tpu.memory_space<vmem>> -> memref<128xf32, #tpu.memory_space<vmem>>
    %359 = tpu.memref_slice %arg6[%c7_i32_270, %c0_i32_271] : memref<8x5x!tpu.dma_semaphore, #tpu.memory_space<semaphore_mem>> -> memref<1x1x!tpu.dma_semaphore, #tpu.memory_space<semaphore_mem>>
    %360 = tpu.memref_squeeze %359 : memref<1x1x!tpu.dma_semaphore, #tpu.memory_space<semaphore_mem>> -> memref<!tpu.dma_semaphore, #tpu.memory_space<semaphore_mem>>
    tpu.enqueue_dma source(%356 : memref<128xf32, #tpu.memory_space<any>>) target(%358 : memref<128xf32, #tpu.memory_space<vmem>>) target_semaphore(%360 : memref<!tpu.dma_semaphore, #tpu.memory_space<semaphore_mem>>)
    %c35_i32_274 = arith.constant 35 : i32
    %361 = arith.addi %0, %c35_i32_274 : i32
    %c1_i32_275 = arith.constant 1 : i32
    %362 = arith.addi %361, %c1_i32_275 : i32
    %363 = arith.index_cast %362 : i32 to index
    %364 = memref.load %arg1[%363] : memref<80xi32, #tpu.memory_space<smem>>
    %c7_i32_276 = arith.constant 7 : i32
    %c1_i32_277 = arith.constant 1 : i32
    %c7_i32_278 = arith.constant 7 : i32
    %c1_i32_279 = arith.constant 1 : i32
    %c0_i32_280 = arith.constant 0 : i32
    %365 = tpu.memref_slice %arg3[%364, %c0_i32_280] : memref<50x128xf32, #tpu.memory_space<any>> -> memref<1x128xf32, #tpu.memory_space<any>>
    %366 = tpu.memref_squeeze %365 : memref<1x128xf32, #tpu.memory_space<any>> -> memref<128xf32, #tpu.memory_space<any>>
    %c0_i32_281 = arith.constant 0 : i32
    %367 = tpu.memref_slice %arg5[%c7_i32_276, %c1_i32_277, %c0_i32_281] : memref<8x5x128xf32, #tpu.memory_space<vmem>> -> memref<1x1x128xf32, #tpu.memory_space<vmem>>
    %368 = tpu.memref_squeeze %367 : memref<1x1x128xf32, #tpu.memory_space<vmem>> -> memref<128xf32, #tpu.memory_space<vmem>>
    %369 = tpu.memref_slice %arg6[%c7_i32_278, %c1_i32_279] : memref<8x5x!tpu.dma_semaphore, #tpu.memory_space<semaphore_mem>> -> memref<1x1x!tpu.dma_semaphore, #tpu.memory_space<semaphore_mem>>
    %370 = tpu.memref_squeeze %369 : memref<1x1x!tpu.dma_semaphore, #tpu.memory_space<semaphore_mem>> -> memref<!tpu.dma_semaphore, #tpu.memory_space<semaphore_mem>>
    tpu.enqueue_dma source(%366 : memref<128xf32, #tpu.memory_space<any>>) target(%368 : memref<128xf32, #tpu.memory_space<vmem>>) target_semaphore(%370 : memref<!tpu.dma_semaphore, #tpu.memory_space<semaphore_mem>>)
    %c35_i32_282 = arith.constant 35 : i32
    %371 = arith.addi %0, %c35_i32_282 : i32
    %c2_i32_283 = arith.constant 2 : i32
    %372 = arith.addi %371, %c2_i32_283 : i32
    %373 = arith.index_cast %372 : i32 to index
    %374 = memref.load %arg1[%373] : memref<80xi32, #tpu.memory_space<smem>>
    %c7_i32_284 = arith.constant 7 : i32
    %c2_i32_285 = arith.constant 2 : i32
    %c7_i32_286 = arith.constant 7 : i32
    %c2_i32_287 = arith.constant 2 : i32
    %c0_i32_288 = arith.constant 0 : i32
    %375 = tpu.memref_slice %arg3[%374, %c0_i32_288] : memref<50x128xf32, #tpu.memory_space<any>> -> memref<1x128xf32, #tpu.memory_space<any>>
    %376 = tpu.memref_squeeze %375 : memref<1x128xf32, #tpu.memory_space<any>> -> memref<128xf32, #tpu.memory_space<any>>
    %c0_i32_289 = arith.constant 0 : i32
    %377 = tpu.memref_slice %arg5[%c7_i32_284, %c2_i32_285, %c0_i32_289] : memref<8x5x128xf32, #tpu.memory_space<vmem>> -> memref<1x1x128xf32, #tpu.memory_space<vmem>>
    %378 = tpu.memref_squeeze %377 : memref<1x1x128xf32, #tpu.memory_space<vmem>> -> memref<128xf32, #tpu.memory_space<vmem>>
    %379 = tpu.memref_slice %arg6[%c7_i32_286, %c2_i32_287] : memref<8x5x!tpu.dma_semaphore, #tpu.memory_space<semaphore_mem>> -> memref<1x1x!tpu.dma_semaphore, #tpu.memory_space<semaphore_mem>>
    %380 = tpu.memref_squeeze %379 : memref<1x1x!tpu.dma_semaphore, #tpu.memory_space<semaphore_mem>> -> memref<!tpu.dma_semaphore, #tpu.memory_space<semaphore_mem>>
    tpu.enqueue_dma source(%376 : memref<128xf32, #tpu.memory_space<any>>) target(%378 : memref<128xf32, #tpu.memory_space<vmem>>) target_semaphore(%380 : memref<!tpu.dma_semaphore, #tpu.memory_space<semaphore_mem>>)
    %c35_i32_290 = arith.constant 35 : i32
    %381 = arith.addi %0, %c35_i32_290 : i32
    %c3_i32_291 = arith.constant 3 : i32
    %382 = arith.addi %381, %c3_i32_291 : i32
    %383 = arith.index_cast %382 : i32 to index
    %384 = memref.load %arg1[%383] : memref<80xi32, #tpu.memory_space<smem>>
    %c7_i32_292 = arith.constant 7 : i32
    %c3_i32_293 = arith.constant 3 : i32
    %c7_i32_294 = arith.constant 7 : i32
    %c3_i32_295 = arith.constant 3 : i32
    %c0_i32_296 = arith.constant 0 : i32
    %385 = tpu.memref_slice %arg3[%384, %c0_i32_296] : memref<50x128xf32, #tpu.memory_space<any>> -> memref<1x128xf32, #tpu.memory_space<any>>
    %386 = tpu.memref_squeeze %385 : memref<1x128xf32, #tpu.memory_space<any>> -> memref<128xf32, #tpu.memory_space<any>>
    %c0_i32_297 = arith.constant 0 : i32
    %387 = tpu.memref_slice %arg5[%c7_i32_292, %c3_i32_293, %c0_i32_297] : memref<8x5x128xf32, #tpu.memory_space<vmem>> -> memref<1x1x128xf32, #tpu.memory_space<vmem>>
    %388 = tpu.memref_squeeze %387 : memref<1x1x128xf32, #tpu.memory_space<vmem>> -> memref<128xf32, #tpu.memory_space<vmem>>
    %389 = tpu.memref_slice %arg6[%c7_i32_294, %c3_i32_295] : memref<8x5x!tpu.dma_semaphore, #tpu.memory_space<semaphore_mem>> -> memref<1x1x!tpu.dma_semaphore, #tpu.memory_space<semaphore_mem>>
    %390 = tpu.memref_squeeze %389 : memref<1x1x!tpu.dma_semaphore, #tpu.memory_space<semaphore_mem>> -> memref<!tpu.dma_semaphore, #tpu.memory_space<semaphore_mem>>
    tpu.enqueue_dma source(%386 : memref<128xf32, #tpu.memory_space<any>>) target(%388 : memref<128xf32, #tpu.memory_space<vmem>>) target_semaphore(%390 : memref<!tpu.dma_semaphore, #tpu.memory_space<semaphore_mem>>)
    %c35_i32_298 = arith.constant 35 : i32
    %391 = arith.addi %0, %c35_i32_298 : i32
    %c4_i32_299 = arith.constant 4 : i32
    %392 = arith.addi %391, %c4_i32_299 : i32
    %393 = arith.index_cast %392 : i32 to index
    %394 = memref.load %arg1[%393] : memref<80xi32, #tpu.memory_space<smem>>
    %c7_i32_300 = arith.constant 7 : i32
    %c4_i32_301 = arith.constant 4 : i32
    %c7_i32_302 = arith.constant 7 : i32
    %c4_i32_303 = arith.constant 4 : i32
    %c0_i32_304 = arith.constant 0 : i32
    %395 = tpu.memref_slice %arg3[%394, %c0_i32_304] : memref<50x128xf32, #tpu.memory_space<any>> -> memref<1x128xf32, #tpu.memory_space<any>>
    %396 = tpu.memref_squeeze %395 : memref<1x128xf32, #tpu.memory_space<any>> -> memref<128xf32, #tpu.memory_space<any>>
    %c0_i32_305 = arith.constant 0 : i32
    %397 = tpu.memref_slice %arg5[%c7_i32_300, %c4_i32_301, %c0_i32_305] : memref<8x5x128xf32, #tpu.memory_space<vmem>> -> memref<1x1x128xf32, #tpu.memory_space<vmem>>
    %398 = tpu.memref_squeeze %397 : memref<1x1x128xf32, #tpu.memory_space<vmem>> -> memref<128xf32, #tpu.memory_space<vmem>>
    %399 = tpu.memref_slice %arg6[%c7_i32_302, %c4_i32_303] : memref<8x5x!tpu.dma_semaphore, #tpu.memory_space<semaphore_mem>> -> memref<1x1x!tpu.dma_semaphore, #tpu.memory_space<semaphore_mem>>
    %400 = tpu.memref_squeeze %399 : memref<1x1x!tpu.dma_semaphore, #tpu.memory_space<semaphore_mem>> -> memref<!tpu.dma_semaphore, #tpu.memory_space<semaphore_mem>>
    tpu.enqueue_dma source(%396 : memref<128xf32, #tpu.memory_space<any>>) target(%398 : memref<128xf32, #tpu.memory_space<vmem>>) target_semaphore(%400 : memref<!tpu.dma_semaphore, #tpu.memory_space<semaphore_mem>>)
    %c0_i32_306 = arith.constant 0 : i32
    %c0_i32_307 = arith.constant 0 : i32
    %c0_i32_308 = arith.constant 0 : i32
    %c0_i32_309 = arith.constant 0 : i32
    %c0_i32_310 = arith.constant 0 : i32
    %401 = tpu.memref_slice %arg3[%4, %c0_i32_310] : memref<50x128xf32, #tpu.memory_space<any>> -> memref<1x128xf32, #tpu.memory_space<any>>
    %402 = tpu.memref_squeeze %401 : memref<1x128xf32, #tpu.memory_space<any>> -> memref<128xf32, #tpu.memory_space<any>>
    %c0_i32_311 = arith.constant 0 : i32
    %403 = tpu.memref_slice %arg5[%c0_i32_306, %c0_i32_307, %c0_i32_311] : memref<8x5x128xf32, #tpu.memory_space<vmem>> -> memref<1x1x128xf32, #tpu.memory_space<vmem>>
    %404 = tpu.memref_squeeze %403 : memref<1x1x128xf32, #tpu.memory_space<vmem>> -> memref<128xf32, #tpu.memory_space<vmem>>
    %405 = tpu.memref_slice %arg6[%c0_i32_308, %c0_i32_309] : memref<8x5x!tpu.dma_semaphore, #tpu.memory_space<semaphore_mem>> -> memref<1x1x!tpu.dma_semaphore, #tpu.memory_space<semaphore_mem>>
    %406 = tpu.memref_squeeze %405 : memref<1x1x!tpu.dma_semaphore, #tpu.memory_space<semaphore_mem>> -> memref<!tpu.dma_semaphore, #tpu.memory_space<semaphore_mem>>
    tpu.wait_dma2 semaphore(%406 : memref<!tpu.dma_semaphore, #tpu.memory_space<semaphore_mem>>) src(%402 : memref<128xf32, #tpu.memory_space<any>>) dst(%404 : memref<128xf32, #tpu.memory_space<vmem>>)
    %c0_i32_312 = arith.constant 0 : i32
    %c1_i32_313 = arith.constant 1 : i32
    %c0_i32_314 = arith.constant 0 : i32
    %c1_i32_315 = arith.constant 1 : i32
    %c0_i32_316 = arith.constant 0 : i32
    %407 = tpu.memref_slice %arg3[%14, %c0_i32_316] : memref<50x128xf32, #tpu.memory_space<any>> -> memref<1x128xf32, #tpu.memory_space<any>>
    %408 = tpu.memref_squeeze %407 : memref<1x128xf32, #tpu.memory_space<any>> -> memref<128xf32, #tpu.memory_space<any>>
    %c0_i32_317 = arith.constant 0 : i32
    %409 = tpu.memref_slice %arg5[%c0_i32_312, %c1_i32_313, %c0_i32_317] : memref<8x5x128xf32, #tpu.memory_space<vmem>> -> memref<1x1x128xf32, #tpu.memory_space<vmem>>
    %410 = tpu.memref_squeeze %409 : memref<1x1x128xf32, #tpu.memory_space<vmem>> -> memref<128xf32, #tpu.memory_space<vmem>>
    %411 = tpu.memref_slice %arg6[%c0_i32_314, %c1_i32_315] : memref<8x5x!tpu.dma_semaphore, #tpu.memory_space<semaphore_mem>> -> memref<1x1x!tpu.dma_semaphore, #tpu.memory_space<semaphore_mem>>
    %412 = tpu.memref_squeeze %411 : memref<1x1x!tpu.dma_semaphore, #tpu.memory_space<semaphore_mem>> -> memref<!tpu.dma_semaphore, #tpu.memory_space<semaphore_mem>>
    tpu.wait_dma2 semaphore(%412 : memref<!tpu.dma_semaphore, #tpu.memory_space<semaphore_mem>>) src(%408 : memref<128xf32, #tpu.memory_space<any>>) dst(%410 : memref<128xf32, #tpu.memory_space<vmem>>)
    %c0_i32_318 = arith.constant 0 : i32
    %c2_i32_319 = arith.constant 2 : i32
    %c0_i32_320 = arith.constant 0 : i32
    %c2_i32_321 = arith.constant 2 : i32
    %c0_i32_322 = arith.constant 0 : i32
    %413 = tpu.memref_slice %arg3[%24, %c0_i32_322] : memref<50x128xf32, #tpu.memory_space<any>> -> memref<1x128xf32, #tpu.memory_space<any>>
    %414 = tpu.memref_squeeze %413 : memref<1x128xf32, #tpu.memory_space<any>> -> memref<128xf32, #tpu.memory_space<any>>
    %c0_i32_323 = arith.constant 0 : i32
    %415 = tpu.memref_slice %arg5[%c0_i32_318, %c2_i32_319, %c0_i32_323] : memref<8x5x128xf32, #tpu.memory_space<vmem>> -> memref<1x1x128xf32, #tpu.memory_space<vmem>>
    %416 = tpu.memref_squeeze %415 : memref<1x1x128xf32, #tpu.memory_space<vmem>> -> memref<128xf32, #tpu.memory_space<vmem>>
    %417 = tpu.memref_slice %arg6[%c0_i32_320, %c2_i32_321] : memref<8x5x!tpu.dma_semaphore, #tpu.memory_space<semaphore_mem>> -> memref<1x1x!tpu.dma_semaphore, #tpu.memory_space<semaphore_mem>>
    %418 = tpu.memref_squeeze %417 : memref<1x1x!tpu.dma_semaphore, #tpu.memory_space<semaphore_mem>> -> memref<!tpu.dma_semaphore, #tpu.memory_space<semaphore_mem>>
    tpu.wait_dma2 semaphore(%418 : memref<!tpu.dma_semaphore, #tpu.memory_space<semaphore_mem>>) src(%414 : memref<128xf32, #tpu.memory_space<any>>) dst(%416 : memref<128xf32, #tpu.memory_space<vmem>>)
    %c0_i32_324 = arith.constant 0 : i32
    %c3_i32_325 = arith.constant 3 : i32
    %c0_i32_326 = arith.constant 0 : i32
    %c3_i32_327 = arith.constant 3 : i32
    %c0_i32_328 = arith.constant 0 : i32
    %419 = tpu.memref_slice %arg3[%34, %c0_i32_328] : memref<50x128xf32, #tpu.memory_space<any>> -> memref<1x128xf32, #tpu.memory_space<any>>
    %420 = tpu.memref_squeeze %419 : memref<1x128xf32, #tpu.memory_space<any>> -> memref<128xf32, #tpu.memory_space<any>>
    %c0_i32_329 = arith.constant 0 : i32
    %421 = tpu.memref_slice %arg5[%c0_i32_324, %c3_i32_325, %c0_i32_329] : memref<8x5x128xf32, #tpu.memory_space<vmem>> -> memref<1x1x128xf32, #tpu.memory_space<vmem>>
    %422 = tpu.memref_squeeze %421 : memref<1x1x128xf32, #tpu.memory_space<vmem>> -> memref<128xf32, #tpu.memory_space<vmem>>
    %423 = tpu.memref_slice %arg6[%c0_i32_326, %c3_i32_327] : memref<8x5x!tpu.dma_semaphore, #tpu.memory_space<semaphore_mem>> -> memref<1x1x!tpu.dma_semaphore, #tpu.memory_space<semaphore_mem>>
    %424 = tpu.memref_squeeze %423 : memref<1x1x!tpu.dma_semaphore, #tpu.memory_space<semaphore_mem>> -> memref<!tpu.dma_semaphore, #tpu.memory_space<semaphore_mem>>
    tpu.wait_dma2 semaphore(%424 : memref<!tpu.dma_semaphore, #tpu.memory_space<semaphore_mem>>) src(%420 : memref<128xf32, #tpu.memory_space<any>>) dst(%422 : memref<128xf32, #tpu.memory_space<vmem>>)
    %c0_i32_330 = arith.constant 0 : i32
    %c4_i32_331 = arith.constant 4 : i32
    %c0_i32_332 = arith.constant 0 : i32
    %c4_i32_333 = arith.constant 4 : i32
    %c0_i32_334 = arith.constant 0 : i32
    %425 = tpu.memref_slice %arg3[%44, %c0_i32_334] : memref<50x128xf32, #tpu.memory_space<any>> -> memref<1x128xf32, #tpu.memory_space<any>>
    %426 = tpu.memref_squeeze %425 : memref<1x128xf32, #tpu.memory_space<any>> -> memref<128xf32, #tpu.memory_space<any>>
    %c0_i32_335 = arith.constant 0 : i32
    %427 = tpu.memref_slice %arg5[%c0_i32_330, %c4_i32_331, %c0_i32_335] : memref<8x5x128xf32, #tpu.memory_space<vmem>> -> memref<1x1x128xf32, #tpu.memory_space<vmem>>
    %428 = tpu.memref_squeeze %427 : memref<1x1x128xf32, #tpu.memory_space<vmem>> -> memref<128xf32, #tpu.memory_space<vmem>>
    %429 = tpu.memref_slice %arg6[%c0_i32_332, %c4_i32_333] : memref<8x5x!tpu.dma_semaphore, #tpu.memory_space<semaphore_mem>> -> memref<1x1x!tpu.dma_semaphore, #tpu.memory_space<semaphore_mem>>
    %430 = tpu.memref_squeeze %429 : memref<1x1x!tpu.dma_semaphore, #tpu.memory_space<semaphore_mem>> -> memref<!tpu.dma_semaphore, #tpu.memory_space<semaphore_mem>>
    tpu.wait_dma2 semaphore(%430 : memref<!tpu.dma_semaphore, #tpu.memory_space<semaphore_mem>>) src(%426 : memref<128xf32, #tpu.memory_space<any>>) dst(%428 : memref<128xf32, #tpu.memory_space<vmem>>)
    %c1_i32_336 = arith.constant 1 : i32
    %c0_i32_337 = arith.constant 0 : i32
    %c1_i32_338 = arith.constant 1 : i32
    %c0_i32_339 = arith.constant 0 : i32
    %c0_i32_340 = arith.constant 0 : i32
    %431 = tpu.memref_slice %arg3[%54, %c0_i32_340] : memref<50x128xf32, #tpu.memory_space<any>> -> memref<1x128xf32, #tpu.memory_space<any>>
    %432 = tpu.memref_squeeze %431 : memref<1x128xf32, #tpu.memory_space<any>> -> memref<128xf32, #tpu.memory_space<any>>
    %c0_i32_341 = arith.constant 0 : i32
    %433 = tpu.memref_slice %arg5[%c1_i32_336, %c0_i32_337, %c0_i32_341] : memref<8x5x128xf32, #tpu.memory_space<vmem>> -> memref<1x1x128xf32, #tpu.memory_space<vmem>>
    %434 = tpu.memref_squeeze %433 : memref<1x1x128xf32, #tpu.memory_space<vmem>> -> memref<128xf32, #tpu.memory_space<vmem>>
    %435 = tpu.memref_slice %arg6[%c1_i32_338, %c0_i32_339] : memref<8x5x!tpu.dma_semaphore, #tpu.memory_space<semaphore_mem>> -> memref<1x1x!tpu.dma_semaphore, #tpu.memory_space<semaphore_mem>>
    %436 = tpu.memref_squeeze %435 : memref<1x1x!tpu.dma_semaphore, #tpu.memory_space<semaphore_mem>> -> memref<!tpu.dma_semaphore, #tpu.memory_space<semaphore_mem>>
    tpu.wait_dma2 semaphore(%436 : memref<!tpu.dma_semaphore, #tpu.memory_space<semaphore_mem>>) src(%432 : memref<128xf32, #tpu.memory_space<any>>) dst(%434 : memref<128xf32, #tpu.memory_space<vmem>>)
    %c1_i32_342 = arith.constant 1 : i32
    %c1_i32_343 = arith.constant 1 : i32
    %c1_i32_344 = arith.constant 1 : i32
    %c1_i32_345 = arith.constant 1 : i32
    %c0_i32_346 = arith.constant 0 : i32
    %437 = tpu.memref_slice %arg3[%64, %c0_i32_346] : memref<50x128xf32, #tpu.memory_space<any>> -> memref<1x128xf32, #tpu.memory_space<any>>
    %438 = tpu.memref_squeeze %437 : memref<1x128xf32, #tpu.memory_space<any>> -> memref<128xf32, #tpu.memory_space<any>>
    %c0_i32_347 = arith.constant 0 : i32
    %439 = tpu.memref_slice %arg5[%c1_i32_342, %c1_i32_343, %c0_i32_347] : memref<8x5x128xf32, #tpu.memory_space<vmem>> -> memref<1x1x128xf32, #tpu.memory_space<vmem>>
    %440 = tpu.memref_squeeze %439 : memref<1x1x128xf32, #tpu.memory_space<vmem>> -> memref<128xf32, #tpu.memory_space<vmem>>
    %441 = tpu.memref_slice %arg6[%c1_i32_344, %c1_i32_345] : memref<8x5x!tpu.dma_semaphore, #tpu.memory_space<semaphore_mem>> -> memref<1x1x!tpu.dma_semaphore, #tpu.memory_space<semaphore_mem>>
    %442 = tpu.memref_squeeze %441 : memref<1x1x!tpu.dma_semaphore, #tpu.memory_space<semaphore_mem>> -> memref<!tpu.dma_semaphore, #tpu.memory_space<semaphore_mem>>
    tpu.wait_dma2 semaphore(%442 : memref<!tpu.dma_semaphore, #tpu.memory_space<semaphore_mem>>) src(%438 : memref<128xf32, #tpu.memory_space<any>>) dst(%440 : memref<128xf32, #tpu.memory_space<vmem>>)
    %c1_i32_348 = arith.constant 1 : i32
    %c2_i32_349 = arith.constant 2 : i32
    %c1_i32_350 = arith.constant 1 : i32
    %c2_i32_351 = arith.constant 2 : i32
    %c0_i32_352 = arith.constant 0 : i32
    %443 = tpu.memref_slice %arg3[%74, %c0_i32_352] : memref<50x128xf32, #tpu.memory_space<any>> -> memref<1x128xf32, #tpu.memory_space<any>>
    %444 = tpu.memref_squeeze %443 : memref<1x128xf32, #tpu.memory_space<any>> -> memref<128xf32, #tpu.memory_space<any>>
    %c0_i32_353 = arith.constant 0 : i32
    %445 = tpu.memref_slice %arg5[%c1_i32_348, %c2_i32_349, %c0_i32_353] : memref<8x5x128xf32, #tpu.memory_space<vmem>> -> memref<1x1x128xf32, #tpu.memory_space<vmem>>
    %446 = tpu.memref_squeeze %445 : memref<1x1x128xf32, #tpu.memory_space<vmem>> -> memref<128xf32, #tpu.memory_space<vmem>>
    %447 = tpu.memref_slice %arg6[%c1_i32_350, %c2_i32_351] : memref<8x5x!tpu.dma_semaphore, #tpu.memory_space<semaphore_mem>> -> memref<1x1x!tpu.dma_semaphore, #tpu.memory_space<semaphore_mem>>
    %448 = tpu.memref_squeeze %447 : memref<1x1x!tpu.dma_semaphore, #tpu.memory_space<semaphore_mem>> -> memref<!tpu.dma_semaphore, #tpu.memory_space<semaphore_mem>>
    tpu.wait_dma2 semaphore(%448 : memref<!tpu.dma_semaphore, #tpu.memory_space<semaphore_mem>>) src(%444 : memref<128xf32, #tpu.memory_space<any>>) dst(%446 : memref<128xf32, #tpu.memory_space<vmem>>)
    %c1_i32_354 = arith.constant 1 : i32
    %c3_i32_355 = arith.constant 3 : i32
    %c1_i32_356 = arith.constant 1 : i32
    %c3_i32_357 = arith.constant 3 : i32
    %c0_i32_358 = arith.constant 0 : i32
    %449 = tpu.memref_slice %arg3[%84, %c0_i32_358] : memref<50x128xf32, #tpu.memory_space<any>> -> memref<1x128xf32, #tpu.memory_space<any>>
    %450 = tpu.memref_squeeze %449 : memref<1x128xf32, #tpu.memory_space<any>> -> memref<128xf32, #tpu.memory_space<any>>
    %c0_i32_359 = arith.constant 0 : i32
    %451 = tpu.memref_slice %arg5[%c1_i32_354, %c3_i32_355, %c0_i32_359] : memref<8x5x128xf32, #tpu.memory_space<vmem>> -> memref<1x1x128xf32, #tpu.memory_space<vmem>>
    %452 = tpu.memref_squeeze %451 : memref<1x1x128xf32, #tpu.memory_space<vmem>> -> memref<128xf32, #tpu.memory_space<vmem>>
    %453 = tpu.memref_slice %arg6[%c1_i32_356, %c3_i32_357] : memref<8x5x!tpu.dma_semaphore, #tpu.memory_space<semaphore_mem>> -> memref<1x1x!tpu.dma_semaphore, #tpu.memory_space<semaphore_mem>>
    %454 = tpu.memref_squeeze %453 : memref<1x1x!tpu.dma_semaphore, #tpu.memory_space<semaphore_mem>> -> memref<!tpu.dma_semaphore, #tpu.memory_space<semaphore_mem>>
    tpu.wait_dma2 semaphore(%454 : memref<!tpu.dma_semaphore, #tpu.memory_space<semaphore_mem>>) src(%450 : memref<128xf32, #tpu.memory_space<any>>) dst(%452 : memref<128xf32, #tpu.memory_space<vmem>>)
    %c1_i32_360 = arith.constant 1 : i32
    %c4_i32_361 = arith.constant 4 : i32
    %c1_i32_362 = arith.constant 1 : i32
    %c4_i32_363 = arith.constant 4 : i32
    %c0_i32_364 = arith.constant 0 : i32
    %455 = tpu.memref_slice %arg3[%94, %c0_i32_364] : memref<50x128xf32, #tpu.memory_space<any>> -> memref<1x128xf32, #tpu.memory_space<any>>
    %456 = tpu.memref_squeeze %455 : memref<1x128xf32, #tpu.memory_space<any>> -> memref<128xf32, #tpu.memory_space<any>>
    %c0_i32_365 = arith.constant 0 : i32
    %457 = tpu.memref_slice %arg5[%c1_i32_360, %c4_i32_361, %c0_i32_365] : memref<8x5x128xf32, #tpu.memory_space<vmem>> -> memref<1x1x128xf32, #tpu.memory_space<vmem>>
    %458 = tpu.memref_squeeze %457 : memref<1x1x128xf32, #tpu.memory_space<vmem>> -> memref<128xf32, #tpu.memory_space<vmem>>
    %459 = tpu.memref_slice %arg6[%c1_i32_362, %c4_i32_363] : memref<8x5x!tpu.dma_semaphore, #tpu.memory_space<semaphore_mem>> -> memref<1x1x!tpu.dma_semaphore, #tpu.memory_space<semaphore_mem>>
    %460 = tpu.memref_squeeze %459 : memref<1x1x!tpu.dma_semaphore, #tpu.memory_space<semaphore_mem>> -> memref<!tpu.dma_semaphore, #tpu.memory_space<semaphore_mem>>
    tpu.wait_dma2 semaphore(%460 : memref<!tpu.dma_semaphore, #tpu.memory_space<semaphore_mem>>) src(%456 : memref<128xf32, #tpu.memory_space<any>>) dst(%458 : memref<128xf32, #tpu.memory_space<vmem>>)
    %c2_i32_366 = arith.constant 2 : i32
    %c0_i32_367 = arith.constant 0 : i32
    %c2_i32_368 = arith.constant 2 : i32
    %c0_i32_369 = arith.constant 0 : i32
    %c0_i32_370 = arith.constant 0 : i32
    %461 = tpu.memref_slice %arg3[%104, %c0_i32_370] : memref<50x128xf32, #tpu.memory_space<any>> -> memref<1x128xf32, #tpu.memory_space<any>>
    %462 = tpu.memref_squeeze %461 : memref<1x128xf32, #tpu.memory_space<any>> -> memref<128xf32, #tpu.memory_space<any>>
    %c0_i32_371 = arith.constant 0 : i32
    %463 = tpu.memref_slice %arg5[%c2_i32_366, %c0_i32_367, %c0_i32_371] : memref<8x5x128xf32, #tpu.memory_space<vmem>> -> memref<1x1x128xf32, #tpu.memory_space<vmem>>
    %464 = tpu.memref_squeeze %463 : memref<1x1x128xf32, #tpu.memory_space<vmem>> -> memref<128xf32, #tpu.memory_space<vmem>>
    %465 = tpu.memref_slice %arg6[%c2_i32_368, %c0_i32_369] : memref<8x5x!tpu.dma_semaphore, #tpu.memory_space<semaphore_mem>> -> memref<1x1x!tpu.dma_semaphore, #tpu.memory_space<semaphore_mem>>
    %466 = tpu.memref_squeeze %465 : memref<1x1x!tpu.dma_semaphore, #tpu.memory_space<semaphore_mem>> -> memref<!tpu.dma_semaphore, #tpu.memory_space<semaphore_mem>>
    tpu.wait_dma2 semaphore(%466 : memref<!tpu.dma_semaphore, #tpu.memory_space<semaphore_mem>>) src(%462 : memref<128xf32, #tpu.memory_space<any>>) dst(%464 : memref<128xf32, #tpu.memory_space<vmem>>)
    %c2_i32_372 = arith.constant 2 : i32
    %c1_i32_373 = arith.constant 1 : i32
    %c2_i32_374 = arith.constant 2 : i32
    %c1_i32_375 = arith.constant 1 : i32
    %c0_i32_376 = arith.constant 0 : i32
    %467 = tpu.memref_slice %arg3[%114, %c0_i32_376] : memref<50x128xf32, #tpu.memory_space<any>> -> memref<1x128xf32, #tpu.memory_space<any>>
    %468 = tpu.memref_squeeze %467 : memref<1x128xf32, #tpu.memory_space<any>> -> memref<128xf32, #tpu.memory_space<any>>
    %c0_i32_377 = arith.constant 0 : i32
    %469 = tpu.memref_slice %arg5[%c2_i32_372, %c1_i32_373, %c0_i32_377] : memref<8x5x128xf32, #tpu.memory_space<vmem>> -> memref<1x1x128xf32, #tpu.memory_space<vmem>>
    %470 = tpu.memref_squeeze %469 : memref<1x1x128xf32, #tpu.memory_space<vmem>> -> memref<128xf32, #tpu.memory_space<vmem>>
    %471 = tpu.memref_slice %arg6[%c2_i32_374, %c1_i32_375] : memref<8x5x!tpu.dma_semaphore, #tpu.memory_space<semaphore_mem>> -> memref<1x1x!tpu.dma_semaphore, #tpu.memory_space<semaphore_mem>>
    %472 = tpu.memref_squeeze %471 : memref<1x1x!tpu.dma_semaphore, #tpu.memory_space<semaphore_mem>> -> memref<!tpu.dma_semaphore, #tpu.memory_space<semaphore_mem>>
    tpu.wait_dma2 semaphore(%472 : memref<!tpu.dma_semaphore, #tpu.memory_space<semaphore_mem>>) src(%468 : memref<128xf32, #tpu.memory_space<any>>) dst(%470 : memref<128xf32, #tpu.memory_space<vmem>>)
    %c2_i32_378 = arith.constant 2 : i32
    %c2_i32_379 = arith.constant 2 : i32
    %c2_i32_380 = arith.constant 2 : i32
    %c2_i32_381 = arith.constant 2 : i32
    %c0_i32_382 = arith.constant 0 : i32
    %473 = tpu.memref_slice %arg3[%124, %c0_i32_382] : memref<50x128xf32, #tpu.memory_space<any>> -> memref<1x128xf32, #tpu.memory_space<any>>
    %474 = tpu.memref_squeeze %473 : memref<1x128xf32, #tpu.memory_space<any>> -> memref<128xf32, #tpu.memory_space<any>>
    %c0_i32_383 = arith.constant 0 : i32
    %475 = tpu.memref_slice %arg5[%c2_i32_378, %c2_i32_379, %c0_i32_383] : memref<8x5x128xf32, #tpu.memory_space<vmem>> -> memref<1x1x128xf32, #tpu.memory_space<vmem>>
    %476 = tpu.memref_squeeze %475 : memref<1x1x128xf32, #tpu.memory_space<vmem>> -> memref<128xf32, #tpu.memory_space<vmem>>
    %477 = tpu.memref_slice %arg6[%c2_i32_380, %c2_i32_381] : memref<8x5x!tpu.dma_semaphore, #tpu.memory_space<semaphore_mem>> -> memref<1x1x!tpu.dma_semaphore, #tpu.memory_space<semaphore_mem>>
    %478 = tpu.memref_squeeze %477 : memref<1x1x!tpu.dma_semaphore, #tpu.memory_space<semaphore_mem>> -> memref<!tpu.dma_semaphore, #tpu.memory_space<semaphore_mem>>
    tpu.wait_dma2 semaphore(%478 : memref<!tpu.dma_semaphore, #tpu.memory_space<semaphore_mem>>) src(%474 : memref<128xf32, #tpu.memory_space<any>>) dst(%476 : memref<128xf32, #tpu.memory_space<vmem>>)
    %c2_i32_384 = arith.constant 2 : i32
    %c3_i32_385 = arith.constant 3 : i32
    %c2_i32_386 = arith.constant 2 : i32
    %c3_i32_387 = arith.constant 3 : i32
    %c0_i32_388 = arith.constant 0 : i32
    %479 = tpu.memref_slice %arg3[%134, %c0_i32_388] : memref<50x128xf32, #tpu.memory_space<any>> -> memref<1x128xf32, #tpu.memory_space<any>>
    %480 = tpu.memref_squeeze %479 : memref<1x128xf32, #tpu.memory_space<any>> -> memref<128xf32, #tpu.memory_space<any>>
    %c0_i32_389 = arith.constant 0 : i32
    %481 = tpu.memref_slice %arg5[%c2_i32_384, %c3_i32_385, %c0_i32_389] : memref<8x5x128xf32, #tpu.memory_space<vmem>> -> memref<1x1x128xf32, #tpu.memory_space<vmem>>
    %482 = tpu.memref_squeeze %481 : memref<1x1x128xf32, #tpu.memory_space<vmem>> -> memref<128xf32, #tpu.memory_space<vmem>>
    %483 = tpu.memref_slice %arg6[%c2_i32_386, %c3_i32_387] : memref<8x5x!tpu.dma_semaphore, #tpu.memory_space<semaphore_mem>> -> memref<1x1x!tpu.dma_semaphore, #tpu.memory_space<semaphore_mem>>
    %484 = tpu.memref_squeeze %483 : memref<1x1x!tpu.dma_semaphore, #tpu.memory_space<semaphore_mem>> -> memref<!tpu.dma_semaphore, #tpu.memory_space<semaphore_mem>>
    tpu.wait_dma2 semaphore(%484 : memref<!tpu.dma_semaphore, #tpu.memory_space<semaphore_mem>>) src(%480 : memref<128xf32, #tpu.memory_space<any>>) dst(%482 : memref<128xf32, #tpu.memory_space<vmem>>)
    %c2_i32_390 = arith.constant 2 : i32
    %c4_i32_391 = arith.constant 4 : i32
    %c2_i32_392 = arith.constant 2 : i32
    %c4_i32_393 = arith.constant 4 : i32
    %c0_i32_394 = arith.constant 0 : i32
    %485 = tpu.memref_slice %arg3[%144, %c0_i32_394] : memref<50x128xf32, #tpu.memory_space<any>> -> memref<1x128xf32, #tpu.memory_space<any>>
    %486 = tpu.memref_squeeze %485 : memref<1x128xf32, #tpu.memory_space<any>> -> memref<128xf32, #tpu.memory_space<any>>
    %c0_i32_395 = arith.constant 0 : i32
    %487 = tpu.memref_slice %arg5[%c2_i32_390, %c4_i32_391, %c0_i32_395] : memref<8x5x128xf32, #tpu.memory_space<vmem>> -> memref<1x1x128xf32, #tpu.memory_space<vmem>>
    %488 = tpu.memref_squeeze %487 : memref<1x1x128xf32, #tpu.memory_space<vmem>> -> memref<128xf32, #tpu.memory_space<vmem>>
    %489 = tpu.memref_slice %arg6[%c2_i32_392, %c4_i32_393] : memref<8x5x!tpu.dma_semaphore, #tpu.memory_space<semaphore_mem>> -> memref<1x1x!tpu.dma_semaphore, #tpu.memory_space<semaphore_mem>>
    %490 = tpu.memref_squeeze %489 : memref<1x1x!tpu.dma_semaphore, #tpu.memory_space<semaphore_mem>> -> memref<!tpu.dma_semaphore, #tpu.memory_space<semaphore_mem>>
    tpu.wait_dma2 semaphore(%490 : memref<!tpu.dma_semaphore, #tpu.memory_space<semaphore_mem>>) src(%486 : memref<128xf32, #tpu.memory_space<any>>) dst(%488 : memref<128xf32, #tpu.memory_space<vmem>>)
    %c3_i32_396 = arith.constant 3 : i32
    %c0_i32_397 = arith.constant 0 : i32
    %c3_i32_398 = arith.constant 3 : i32
    %c0_i32_399 = arith.constant 0 : i32
    %c0_i32_400 = arith.constant 0 : i32
    %491 = tpu.memref_slice %arg3[%154, %c0_i32_400] : memref<50x128xf32, #tpu.memory_space<any>> -> memref<1x128xf32, #tpu.memory_space<any>>
    %492 = tpu.memref_squeeze %491 : memref<1x128xf32, #tpu.memory_space<any>> -> memref<128xf32, #tpu.memory_space<any>>
    %c0_i32_401 = arith.constant 0 : i32
    %493 = tpu.memref_slice %arg5[%c3_i32_396, %c0_i32_397, %c0_i32_401] : memref<8x5x128xf32, #tpu.memory_space<vmem>> -> memref<1x1x128xf32, #tpu.memory_space<vmem>>
    %494 = tpu.memref_squeeze %493 : memref<1x1x128xf32, #tpu.memory_space<vmem>> -> memref<128xf32, #tpu.memory_space<vmem>>
    %495 = tpu.memref_slice %arg6[%c3_i32_398, %c0_i32_399] : memref<8x5x!tpu.dma_semaphore, #tpu.memory_space<semaphore_mem>> -> memref<1x1x!tpu.dma_semaphore, #tpu.memory_space<semaphore_mem>>
    %496 = tpu.memref_squeeze %495 : memref<1x1x!tpu.dma_semaphore, #tpu.memory_space<semaphore_mem>> -> memref<!tpu.dma_semaphore, #tpu.memory_space<semaphore_mem>>
    tpu.wait_dma2 semaphore(%496 : memref<!tpu.dma_semaphore, #tpu.memory_space<semaphore_mem>>) src(%492 : memref<128xf32, #tpu.memory_space<any>>) dst(%494 : memref<128xf32, #tpu.memory_space<vmem>>)
    %c3_i32_402 = arith.constant 3 : i32
    %c1_i32_403 = arith.constant 1 : i32
    %c3_i32_404 = arith.constant 3 : i32
    %c1_i32_405 = arith.constant 1 : i32
    %c0_i32_406 = arith.constant 0 : i32
    %497 = tpu.memref_slice %arg3[%164, %c0_i32_406] : memref<50x128xf32, #tpu.memory_space<any>> -> memref<1x128xf32, #tpu.memory_space<any>>
    %498 = tpu.memref_squeeze %497 : memref<1x128xf32, #tpu.memory_space<any>> -> memref<128xf32, #tpu.memory_space<any>>
    %c0_i32_407 = arith.constant 0 : i32
    %499 = tpu.memref_slice %arg5[%c3_i32_402, %c1_i32_403, %c0_i32_407] : memref<8x5x128xf32, #tpu.memory_space<vmem>> -> memref<1x1x128xf32, #tpu.memory_space<vmem>>
    %500 = tpu.memref_squeeze %499 : memref<1x1x128xf32, #tpu.memory_space<vmem>> -> memref<128xf32, #tpu.memory_space<vmem>>
    %501 = tpu.memref_slice %arg6[%c3_i32_404, %c1_i32_405] : memref<8x5x!tpu.dma_semaphore, #tpu.memory_space<semaphore_mem>> -> memref<1x1x!tpu.dma_semaphore, #tpu.memory_space<semaphore_mem>>
    %502 = tpu.memref_squeeze %501 : memref<1x1x!tpu.dma_semaphore, #tpu.memory_space<semaphore_mem>> -> memref<!tpu.dma_semaphore, #tpu.memory_space<semaphore_mem>>
    tpu.wait_dma2 semaphore(%502 : memref<!tpu.dma_semaphore, #tpu.memory_space<semaphore_mem>>) src(%498 : memref<128xf32, #tpu.memory_space<any>>) dst(%500 : memref<128xf32, #tpu.memory_space<vmem>>)
    %c3_i32_408 = arith.constant 3 : i32
    %c2_i32_409 = arith.constant 2 : i32
    %c3_i32_410 = arith.constant 3 : i32
    %c2_i32_411 = arith.constant 2 : i32
    %c0_i32_412 = arith.constant 0 : i32
    %503 = tpu.memref_slice %arg3[%174, %c0_i32_412] : memref<50x128xf32, #tpu.memory_space<any>> -> memref<1x128xf32, #tpu.memory_space<any>>
    %504 = tpu.memref_squeeze %503 : memref<1x128xf32, #tpu.memory_space<any>> -> memref<128xf32, #tpu.memory_space<any>>
    %c0_i32_413 = arith.constant 0 : i32
    %505 = tpu.memref_slice %arg5[%c3_i32_408, %c2_i32_409, %c0_i32_413] : memref<8x5x128xf32, #tpu.memory_space<vmem>> -> memref<1x1x128xf32, #tpu.memory_space<vmem>>
    %506 = tpu.memref_squeeze %505 : memref<1x1x128xf32, #tpu.memory_space<vmem>> -> memref<128xf32, #tpu.memory_space<vmem>>
    %507 = tpu.memref_slice %arg6[%c3_i32_410, %c2_i32_411] : memref<8x5x!tpu.dma_semaphore, #tpu.memory_space<semaphore_mem>> -> memref<1x1x!tpu.dma_semaphore, #tpu.memory_space<semaphore_mem>>
    %508 = tpu.memref_squeeze %507 : memref<1x1x!tpu.dma_semaphore, #tpu.memory_space<semaphore_mem>> -> memref<!tpu.dma_semaphore, #tpu.memory_space<semaphore_mem>>
    tpu.wait_dma2 semaphore(%508 : memref<!tpu.dma_semaphore, #tpu.memory_space<semaphore_mem>>) src(%504 : memref<128xf32, #tpu.memory_space<any>>) dst(%506 : memref<128xf32, #tpu.memory_space<vmem>>)
    %c3_i32_414 = arith.constant 3 : i32
    %c3_i32_415 = arith.constant 3 : i32
    %c3_i32_416 = arith.constant 3 : i32
    %c3_i32_417 = arith.constant 3 : i32
    %c0_i32_418 = arith.constant 0 : i32
    %509 = tpu.memref_slice %arg3[%184, %c0_i32_418] : memref<50x128xf32, #tpu.memory_space<any>> -> memref<1x128xf32, #tpu.memory_space<any>>
    %510 = tpu.memref_squeeze %509 : memref<1x128xf32, #tpu.memory_space<any>> -> memref<128xf32, #tpu.memory_space<any>>
    %c0_i32_419 = arith.constant 0 : i32
    %511 = tpu.memref_slice %arg5[%c3_i32_414, %c3_i32_415, %c0_i32_419] : memref<8x5x128xf32, #tpu.memory_space<vmem>> -> memref<1x1x128xf32, #tpu.memory_space<vmem>>
    %512 = tpu.memref_squeeze %511 : memref<1x1x128xf32, #tpu.memory_space<vmem>> -> memref<128xf32, #tpu.memory_space<vmem>>
    %513 = tpu.memref_slice %arg6[%c3_i32_416, %c3_i32_417] : memref<8x5x!tpu.dma_semaphore, #tpu.memory_space<semaphore_mem>> -> memref<1x1x!tpu.dma_semaphore, #tpu.memory_space<semaphore_mem>>
    %514 = tpu.memref_squeeze %513 : memref<1x1x!tpu.dma_semaphore, #tpu.memory_space<semaphore_mem>> -> memref<!tpu.dma_semaphore, #tpu.memory_space<semaphore_mem>>
    tpu.wait_dma2 semaphore(%514 : memref<!tpu.dma_semaphore, #tpu.memory_space<semaphore_mem>>) src(%510 : memref<128xf32, #tpu.memory_space<any>>) dst(%512 : memref<128xf32, #tpu.memory_space<vmem>>)
    %c3_i32_420 = arith.constant 3 : i32
    %c4_i32_421 = arith.constant 4 : i32
    %c3_i32_422 = arith.constant 3 : i32
    %c4_i32_423 = arith.constant 4 : i32
    %c0_i32_424 = arith.constant 0 : i32
    %515 = tpu.memref_slice %arg3[%194, %c0_i32_424] : memref<50x128xf32, #tpu.memory_space<any>> -> memref<1x128xf32, #tpu.memory_space<any>>
    %516 = tpu.memref_squeeze %515 : memref<1x128xf32, #tpu.memory_space<any>> -> memref<128xf32, #tpu.memory_space<any>>
    %c0_i32_425 = arith.constant 0 : i32
    %517 = tpu.memref_slice %arg5[%c3_i32_420, %c4_i32_421, %c0_i32_425] : memref<8x5x128xf32, #tpu.memory_space<vmem>> -> memref<1x1x128xf32, #tpu.memory_space<vmem>>
    %518 = tpu.memref_squeeze %517 : memref<1x1x128xf32, #tpu.memory_space<vmem>> -> memref<128xf32, #tpu.memory_space<vmem>>
    %519 = tpu.memref_slice %arg6[%c3_i32_422, %c4_i32_423] : memref<8x5x!tpu.dma_semaphore, #tpu.memory_space<semaphore_mem>> -> memref<1x1x!tpu.dma_semaphore, #tpu.memory_space<semaphore_mem>>
    %520 = tpu.memref_squeeze %519 : memref<1x1x!tpu.dma_semaphore, #tpu.memory_space<semaphore_mem>> -> memref<!tpu.dma_semaphore, #tpu.memory_space<semaphore_mem>>
    tpu.wait_dma2 semaphore(%520 : memref<!tpu.dma_semaphore, #tpu.memory_space<semaphore_mem>>) src(%516 : memref<128xf32, #tpu.memory_space<any>>) dst(%518 : memref<128xf32, #tpu.memory_space<vmem>>)
    %c4_i32_426 = arith.constant 4 : i32
    %c0_i32_427 = arith.constant 0 : i32
    %c4_i32_428 = arith.constant 4 : i32
    %c0_i32_429 = arith.constant 0 : i32
    %c0_i32_430 = arith.constant 0 : i32
    %521 = tpu.memref_slice %arg3[%204, %c0_i32_430] : memref<50x128xf32, #tpu.memory_space<any>> -> memref<1x128xf32, #tpu.memory_space<any>>
    %522 = tpu.memref_squeeze %521 : memref<1x128xf32, #tpu.memory_space<any>> -> memref<128xf32, #tpu.memory_space<any>>
    %c0_i32_431 = arith.constant 0 : i32
    %523 = tpu.memref_slice %arg5[%c4_i32_426, %c0_i32_427, %c0_i32_431] : memref<8x5x128xf32, #tpu.memory_space<vmem>> -> memref<1x1x128xf32, #tpu.memory_space<vmem>>
    %524 = tpu.memref_squeeze %523 : memref<1x1x128xf32, #tpu.memory_space<vmem>> -> memref<128xf32, #tpu.memory_space<vmem>>
    %525 = tpu.memref_slice %arg6[%c4_i32_428, %c0_i32_429] : memref<8x5x!tpu.dma_semaphore, #tpu.memory_space<semaphore_mem>> -> memref<1x1x!tpu.dma_semaphore, #tpu.memory_space<semaphore_mem>>
    %526 = tpu.memref_squeeze %525 : memref<1x1x!tpu.dma_semaphore, #tpu.memory_space<semaphore_mem>> -> memref<!tpu.dma_semaphore, #tpu.memory_space<semaphore_mem>>
    tpu.wait_dma2 semaphore(%526 : memref<!tpu.dma_semaphore, #tpu.memory_space<semaphore_mem>>) src(%522 : memref<128xf32, #tpu.memory_space<any>>) dst(%524 : memref<128xf32, #tpu.memory_space<vmem>>)
    %c4_i32_432 = arith.constant 4 : i32
    %c1_i32_433 = arith.constant 1 : i32
    %c4_i32_434 = arith.constant 4 : i32
    %c1_i32_435 = arith.constant 1 : i32
    %c0_i32_436 = arith.constant 0 : i32
    %527 = tpu.memref_slice %arg3[%214, %c0_i32_436] : memref<50x128xf32, #tpu.memory_space<any>> -> memref<1x128xf32, #tpu.memory_space<any>>
    %528 = tpu.memref_squeeze %527 : memref<1x128xf32, #tpu.memory_space<any>> -> memref<128xf32, #tpu.memory_space<any>>
    %c0_i32_437 = arith.constant 0 : i32
    %529 = tpu.memref_slice %arg5[%c4_i32_432, %c1_i32_433, %c0_i32_437] : memref<8x5x128xf32, #tpu.memory_space<vmem>> -> memref<1x1x128xf32, #tpu.memory_space<vmem>>
    %530 = tpu.memref_squeeze %529 : memref<1x1x128xf32, #tpu.memory_space<vmem>> -> memref<128xf32, #tpu.memory_space<vmem>>
    %531 = tpu.memref_slice %arg6[%c4_i32_434, %c1_i32_435] : memref<8x5x!tpu.dma_semaphore, #tpu.memory_space<semaphore_mem>> -> memref<1x1x!tpu.dma_semaphore, #tpu.memory_space<semaphore_mem>>
    %532 = tpu.memref_squeeze %531 : memref<1x1x!tpu.dma_semaphore, #tpu.memory_space<semaphore_mem>> -> memref<!tpu.dma_semaphore, #tpu.memory_space<semaphore_mem>>
    tpu.wait_dma2 semaphore(%532 : memref<!tpu.dma_semaphore, #tpu.memory_space<semaphore_mem>>) src(%528 : memref<128xf32, #tpu.memory_space<any>>) dst(%530 : memref<128xf32, #tpu.memory_space<vmem>>)
    %c4_i32_438 = arith.constant 4 : i32
    %c2_i32_439 = arith.constant 2 : i32
    %c4_i32_440 = arith.constant 4 : i32
    %c2_i32_441 = arith.constant 2 : i32
    %c0_i32_442 = arith.constant 0 : i32
    %533 = tpu.memref_slice %arg3[%224, %c0_i32_442] : memref<50x128xf32, #tpu.memory_space<any>> -> memref<1x128xf32, #tpu.memory_space<any>>
    %534 = tpu.memref_squeeze %533 : memref<1x128xf32, #tpu.memory_space<any>> -> memref<128xf32, #tpu.memory_space<any>>
    %c0_i32_443 = arith.constant 0 : i32
    %535 = tpu.memref_slice %arg5[%c4_i32_438, %c2_i32_439, %c0_i32_443] : memref<8x5x128xf32, #tpu.memory_space<vmem>> -> memref<1x1x128xf32, #tpu.memory_space<vmem>>
    %536 = tpu.memref_squeeze %535 : memref<1x1x128xf32, #tpu.memory_space<vmem>> -> memref<128xf32, #tpu.memory_space<vmem>>
    %537 = tpu.memref_slice %arg6[%c4_i32_440, %c2_i32_441] : memref<8x5x!tpu.dma_semaphore, #tpu.memory_space<semaphore_mem>> -> memref<1x1x!tpu.dma_semaphore, #tpu.memory_space<semaphore_mem>>
    %538 = tpu.memref_squeeze %537 : memref<1x1x!tpu.dma_semaphore, #tpu.memory_space<semaphore_mem>> -> memref<!tpu.dma_semaphore, #tpu.memory_space<semaphore_mem>>
    tpu.wait_dma2 semaphore(%538 : memref<!tpu.dma_semaphore, #tpu.memory_space<semaphore_mem>>) src(%534 : memref<128xf32, #tpu.memory_space<any>>) dst(%536 : memref<128xf32, #tpu.memory_space<vmem>>)
    %c4_i32_444 = arith.constant 4 : i32
    %c3_i32_445 = arith.constant 3 : i32
    %c4_i32_446 = arith.constant 4 : i32
    %c3_i32_447 = arith.constant 3 : i32
    %c0_i32_448 = arith.constant 0 : i32
    %539 = tpu.memref_slice %arg3[%234, %c0_i32_448] : memref<50x128xf32, #tpu.memory_space<any>> -> memref<1x128xf32, #tpu.memory_space<any>>
    %540 = tpu.memref_squeeze %539 : memref<1x128xf32, #tpu.memory_space<any>> -> memref<128xf32, #tpu.memory_space<any>>
    %c0_i32_449 = arith.constant 0 : i32
    %541 = tpu.memref_slice %arg5[%c4_i32_444, %c3_i32_445, %c0_i32_449] : memref<8x5x128xf32, #tpu.memory_space<vmem>> -> memref<1x1x128xf32, #tpu.memory_space<vmem>>
    %542 = tpu.memref_squeeze %541 : memref<1x1x128xf32, #tpu.memory_space<vmem>> -> memref<128xf32, #tpu.memory_space<vmem>>
    %543 = tpu.memref_slice %arg6[%c4_i32_446, %c3_i32_447] : memref<8x5x!tpu.dma_semaphore, #tpu.memory_space<semaphore_mem>> -> memref<1x1x!tpu.dma_semaphore, #tpu.memory_space<semaphore_mem>>
    %544 = tpu.memref_squeeze %543 : memref<1x1x!tpu.dma_semaphore, #tpu.memory_space<semaphore_mem>> -> memref<!tpu.dma_semaphore, #tpu.memory_space<semaphore_mem>>
    tpu.wait_dma2 semaphore(%544 : memref<!tpu.dma_semaphore, #tpu.memory_space<semaphore_mem>>) src(%540 : memref<128xf32, #tpu.memory_space<any>>) dst(%542 : memref<128xf32, #tpu.memory_space<vmem>>)
    %c4_i32_450 = arith.constant 4 : i32
    %c4_i32_451 = arith.constant 4 : i32
    %c4_i32_452 = arith.constant 4 : i32
    %c4_i32_453 = arith.constant 4 : i32
    %c0_i32_454 = arith.constant 0 : i32
    %545 = tpu.memref_slice %arg3[%244, %c0_i32_454] : memref<50x128xf32, #tpu.memory_space<any>> -> memref<1x128xf32, #tpu.memory_space<any>>
    %546 = tpu.memref_squeeze %545 : memref<1x128xf32, #tpu.memory_space<any>> -> memref<128xf32, #tpu.memory_space<any>>
    %c0_i32_455 = arith.constant 0 : i32
    %547 = tpu.memref_slice %arg5[%c4_i32_450, %c4_i32_451, %c0_i32_455] : memref<8x5x128xf32, #tpu.memory_space<vmem>> -> memref<1x1x128xf32, #tpu.memory_space<vmem>>
    %548 = tpu.memref_squeeze %547 : memref<1x1x128xf32, #tpu.memory_space<vmem>> -> memref<128xf32, #tpu.memory_space<vmem>>
    %549 = tpu.memref_slice %arg6[%c4_i32_452, %c4_i32_453] : memref<8x5x!tpu.dma_semaphore, #tpu.memory_space<semaphore_mem>> -> memref<1x1x!tpu.dma_semaphore, #tpu.memory_space<semaphore_mem>>
    %550 = tpu.memref_squeeze %549 : memref<1x1x!tpu.dma_semaphore, #tpu.memory_space<semaphore_mem>> -> memref<!tpu.dma_semaphore, #tpu.memory_space<semaphore_mem>>
    tpu.wait_dma2 semaphore(%550 : memref<!tpu.dma_semaphore, #tpu.memory_space<semaphore_mem>>) src(%546 : memref<128xf32, #tpu.memory_space<any>>) dst(%548 : memref<128xf32, #tpu.memory_space<vmem>>)
    %c5_i32_456 = arith.constant 5 : i32
    %c0_i32_457 = arith.constant 0 : i32
    %c5_i32_458 = arith.constant 5 : i32
    %c0_i32_459 = arith.constant 0 : i32
    %c0_i32_460 = arith.constant 0 : i32
    %551 = tpu.memref_slice %arg3[%254, %c0_i32_460] : memref<50x128xf32, #tpu.memory_space<any>> -> memref<1x128xf32, #tpu.memory_space<any>>
    %552 = tpu.memref_squeeze %551 : memref<1x128xf32, #tpu.memory_space<any>> -> memref<128xf32, #tpu.memory_space<any>>
    %c0_i32_461 = arith.constant 0 : i32
    %553 = tpu.memref_slice %arg5[%c5_i32_456, %c0_i32_457, %c0_i32_461] : memref<8x5x128xf32, #tpu.memory_space<vmem>> -> memref<1x1x128xf32, #tpu.memory_space<vmem>>
    %554 = tpu.memref_squeeze %553 : memref<1x1x128xf32, #tpu.memory_space<vmem>> -> memref<128xf32, #tpu.memory_space<vmem>>
    %555 = tpu.memref_slice %arg6[%c5_i32_458, %c0_i32_459] : memref<8x5x!tpu.dma_semaphore, #tpu.memory_space<semaphore_mem>> -> memref<1x1x!tpu.dma_semaphore, #tpu.memory_space<semaphore_mem>>
    %556 = tpu.memref_squeeze %555 : memref<1x1x!tpu.dma_semaphore, #tpu.memory_space<semaphore_mem>> -> memref<!tpu.dma_semaphore, #tpu.memory_space<semaphore_mem>>
    tpu.wait_dma2 semaphore(%556 : memref<!tpu.dma_semaphore, #tpu.memory_space<semaphore_mem>>) src(%552 : memref<128xf32, #tpu.memory_space<any>>) dst(%554 : memref<128xf32, #tpu.memory_space<vmem>>)
    %c5_i32_462 = arith.constant 5 : i32
    %c1_i32_463 = arith.constant 1 : i32
    %c5_i32_464 = arith.constant 5 : i32
    %c1_i32_465 = arith.constant 1 : i32
    %c0_i32_466 = arith.constant 0 : i32
    %557 = tpu.memref_slice %arg3[%264, %c0_i32_466] : memref<50x128xf32, #tpu.memory_space<any>> -> memref<1x128xf32, #tpu.memory_space<any>>
    %558 = tpu.memref_squeeze %557 : memref<1x128xf32, #tpu.memory_space<any>> -> memref<128xf32, #tpu.memory_space<any>>
    %c0_i32_467 = arith.constant 0 : i32
    %559 = tpu.memref_slice %arg5[%c5_i32_462, %c1_i32_463, %c0_i32_467] : memref<8x5x128xf32, #tpu.memory_space<vmem>> -> memref<1x1x128xf32, #tpu.memory_space<vmem>>
    %560 = tpu.memref_squeeze %559 : memref<1x1x128xf32, #tpu.memory_space<vmem>> -> memref<128xf32, #tpu.memory_space<vmem>>
    %561 = tpu.memref_slice %arg6[%c5_i32_464, %c1_i32_465] : memref<8x5x!tpu.dma_semaphore, #tpu.memory_space<semaphore_mem>> -> memref<1x1x!tpu.dma_semaphore, #tpu.memory_space<semaphore_mem>>
    %562 = tpu.memref_squeeze %561 : memref<1x1x!tpu.dma_semaphore, #tpu.memory_space<semaphore_mem>> -> memref<!tpu.dma_semaphore, #tpu.memory_space<semaphore_mem>>
    tpu.wait_dma2 semaphore(%562 : memref<!tpu.dma_semaphore, #tpu.memory_space<semaphore_mem>>) src(%558 : memref<128xf32, #tpu.memory_space<any>>) dst(%560 : memref<128xf32, #tpu.memory_space<vmem>>)
    %c5_i32_468 = arith.constant 5 : i32
    %c2_i32_469 = arith.constant 2 : i32
    %c5_i32_470 = arith.constant 5 : i32
    %c2_i32_471 = arith.constant 2 : i32
    %c0_i32_472 = arith.constant 0 : i32
    %563 = tpu.memref_slice %arg3[%274, %c0_i32_472] : memref<50x128xf32, #tpu.memory_space<any>> -> memref<1x128xf32, #tpu.memory_space<any>>
    %564 = tpu.memref_squeeze %563 : memref<1x128xf32, #tpu.memory_space<any>> -> memref<128xf32, #tpu.memory_space<any>>
    %c0_i32_473 = arith.constant 0 : i32
    %565 = tpu.memref_slice %arg5[%c5_i32_468, %c2_i32_469, %c0_i32_473] : memref<8x5x128xf32, #tpu.memory_space<vmem>> -> memref<1x1x128xf32, #tpu.memory_space<vmem>>
    %566 = tpu.memref_squeeze %565 : memref<1x1x128xf32, #tpu.memory_space<vmem>> -> memref<128xf32, #tpu.memory_space<vmem>>
    %567 = tpu.memref_slice %arg6[%c5_i32_470, %c2_i32_471] : memref<8x5x!tpu.dma_semaphore, #tpu.memory_space<semaphore_mem>> -> memref<1x1x!tpu.dma_semaphore, #tpu.memory_space<semaphore_mem>>
    %568 = tpu.memref_squeeze %567 : memref<1x1x!tpu.dma_semaphore, #tpu.memory_space<semaphore_mem>> -> memref<!tpu.dma_semaphore, #tpu.memory_space<semaphore_mem>>
    tpu.wait_dma2 semaphore(%568 : memref<!tpu.dma_semaphore, #tpu.memory_space<semaphore_mem>>) src(%564 : memref<128xf32, #tpu.memory_space<any>>) dst(%566 : memref<128xf32, #tpu.memory_space<vmem>>)
    %c5_i32_474 = arith.constant 5 : i32
    %c3_i32_475 = arith.constant 3 : i32
    %c5_i32_476 = arith.constant 5 : i32
    %c3_i32_477 = arith.constant 3 : i32
    %c0_i32_478 = arith.constant 0 : i32
    %569 = tpu.memref_slice %arg3[%284, %c0_i32_478] : memref<50x128xf32, #tpu.memory_space<any>> -> memref<1x128xf32, #tpu.memory_space<any>>
    %570 = tpu.memref_squeeze %569 : memref<1x128xf32, #tpu.memory_space<any>> -> memref<128xf32, #tpu.memory_space<any>>
    %c0_i32_479 = arith.constant 0 : i32
    %571 = tpu.memref_slice %arg5[%c5_i32_474, %c3_i32_475, %c0_i32_479] : memref<8x5x128xf32, #tpu.memory_space<vmem>> -> memref<1x1x128xf32, #tpu.memory_space<vmem>>
    %572 = tpu.memref_squeeze %571 : memref<1x1x128xf32, #tpu.memory_space<vmem>> -> memref<128xf32, #tpu.memory_space<vmem>>
    %573 = tpu.memref_slice %arg6[%c5_i32_476, %c3_i32_477] : memref<8x5x!tpu.dma_semaphore, #tpu.memory_space<semaphore_mem>> -> memref<1x1x!tpu.dma_semaphore, #tpu.memory_space<semaphore_mem>>
    %574 = tpu.memref_squeeze %573 : memref<1x1x!tpu.dma_semaphore, #tpu.memory_space<semaphore_mem>> -> memref<!tpu.dma_semaphore, #tpu.memory_space<semaphore_mem>>
    tpu.wait_dma2 semaphore(%574 : memref<!tpu.dma_semaphore, #tpu.memory_space<semaphore_mem>>) src(%570 : memref<128xf32, #tpu.memory_space<any>>) dst(%572 : memref<128xf32, #tpu.memory_space<vmem>>)
    %c5_i32_480 = arith.constant 5 : i32
    %c4_i32_481 = arith.constant 4 : i32
    %c5_i32_482 = arith.constant 5 : i32
    %c4_i32_483 = arith.constant 4 : i32
    %c0_i32_484 = arith.constant 0 : i32
    %575 = tpu.memref_slice %arg3[%294, %c0_i32_484] : memref<50x128xf32, #tpu.memory_space<any>> -> memref<1x128xf32, #tpu.memory_space<any>>
    %576 = tpu.memref_squeeze %575 : memref<1x128xf32, #tpu.memory_space<any>> -> memref<128xf32, #tpu.memory_space<any>>
    %c0_i32_485 = arith.constant 0 : i32
    %577 = tpu.memref_slice %arg5[%c5_i32_480, %c4_i32_481, %c0_i32_485] : memref<8x5x128xf32, #tpu.memory_space<vmem>> -> memref<1x1x128xf32, #tpu.memory_space<vmem>>
    %578 = tpu.memref_squeeze %577 : memref<1x1x128xf32, #tpu.memory_space<vmem>> -> memref<128xf32, #tpu.memory_space<vmem>>
    %579 = tpu.memref_slice %arg6[%c5_i32_482, %c4_i32_483] : memref<8x5x!tpu.dma_semaphore, #tpu.memory_space<semaphore_mem>> -> memref<1x1x!tpu.dma_semaphore, #tpu.memory_space<semaphore_mem>>
    %580 = tpu.memref_squeeze %579 : memref<1x1x!tpu.dma_semaphore, #tpu.memory_space<semaphore_mem>> -> memref<!tpu.dma_semaphore, #tpu.memory_space<semaphore_mem>>
    tpu.wait_dma2 semaphore(%580 : memref<!tpu.dma_semaphore, #tpu.memory_space<semaphore_mem>>) src(%576 : memref<128xf32, #tpu.memory_space<any>>) dst(%578 : memref<128xf32, #tpu.memory_space<vmem>>)
    %c6_i32_486 = arith.constant 6 : i32
    %c0_i32_487 = arith.constant 0 : i32
    %c6_i32_488 = arith.constant 6 : i32
    %c0_i32_489 = arith.constant 0 : i32
    %c0_i32_490 = arith.constant 0 : i32
    %581 = tpu.memref_slice %arg3[%304, %c0_i32_490] : memref<50x128xf32, #tpu.memory_space<any>> -> memref<1x128xf32, #tpu.memory_space<any>>
    %582 = tpu.memref_squeeze %581 : memref<1x128xf32, #tpu.memory_space<any>> -> memref<128xf32, #tpu.memory_space<any>>
    %c0_i32_491 = arith.constant 0 : i32
    %583 = tpu.memref_slice %arg5[%c6_i32_486, %c0_i32_487, %c0_i32_491] : memref<8x5x128xf32, #tpu.memory_space<vmem>> -> memref<1x1x128xf32, #tpu.memory_space<vmem>>
    %584 = tpu.memref_squeeze %583 : memref<1x1x128xf32, #tpu.memory_space<vmem>> -> memref<128xf32, #tpu.memory_space<vmem>>
    %585 = tpu.memref_slice %arg6[%c6_i32_488, %c0_i32_489] : memref<8x5x!tpu.dma_semaphore, #tpu.memory_space<semaphore_mem>> -> memref<1x1x!tpu.dma_semaphore, #tpu.memory_space<semaphore_mem>>
    %586 = tpu.memref_squeeze %585 : memref<1x1x!tpu.dma_semaphore, #tpu.memory_space<semaphore_mem>> -> memref<!tpu.dma_semaphore, #tpu.memory_space<semaphore_mem>>
    tpu.wait_dma2 semaphore(%586 : memref<!tpu.dma_semaphore, #tpu.memory_space<semaphore_mem>>) src(%582 : memref<128xf32, #tpu.memory_space<any>>) dst(%584 : memref<128xf32, #tpu.memory_space<vmem>>)
    %c6_i32_492 = arith.constant 6 : i32
    %c1_i32_493 = arith.constant 1 : i32
    %c6_i32_494 = arith.constant 6 : i32
    %c1_i32_495 = arith.constant 1 : i32
    %c0_i32_496 = arith.constant 0 : i32
    %587 = tpu.memref_slice %arg3[%314, %c0_i32_496] : memref<50x128xf32, #tpu.memory_space<any>> -> memref<1x128xf32, #tpu.memory_space<any>>
    %588 = tpu.memref_squeeze %587 : memref<1x128xf32, #tpu.memory_space<any>> -> memref<128xf32, #tpu.memory_space<any>>
    %c0_i32_497 = arith.constant 0 : i32
    %589 = tpu.memref_slice %arg5[%c6_i32_492, %c1_i32_493, %c0_i32_497] : memref<8x5x128xf32, #tpu.memory_space<vmem>> -> memref<1x1x128xf32, #tpu.memory_space<vmem>>
    %590 = tpu.memref_squeeze %589 : memref<1x1x128xf32, #tpu.memory_space<vmem>> -> memref<128xf32, #tpu.memory_space<vmem>>
    %591 = tpu.memref_slice %arg6[%c6_i32_494, %c1_i32_495] : memref<8x5x!tpu.dma_semaphore, #tpu.memory_space<semaphore_mem>> -> memref<1x1x!tpu.dma_semaphore, #tpu.memory_space<semaphore_mem>>
    %592 = tpu.memref_squeeze %591 : memref<1x1x!tpu.dma_semaphore, #tpu.memory_space<semaphore_mem>> -> memref<!tpu.dma_semaphore, #tpu.memory_space<semaphore_mem>>
    tpu.wait_dma2 semaphore(%592 : memref<!tpu.dma_semaphore, #tpu.memory_space<semaphore_mem>>) src(%588 : memref<128xf32, #tpu.memory_space<any>>) dst(%590 : memref<128xf32, #tpu.memory_space<vmem>>)
    %c6_i32_498 = arith.constant 6 : i32
    %c2_i32_499 = arith.constant 2 : i32
    %c6_i32_500 = arith.constant 6 : i32
    %c2_i32_501 = arith.constant 2 : i32
    %c0_i32_502 = arith.constant 0 : i32
    %593 = tpu.memref_slice %arg3[%324, %c0_i32_502] : memref<50x128xf32, #tpu.memory_space<any>> -> memref<1x128xf32, #tpu.memory_space<any>>
    %594 = tpu.memref_squeeze %593 : memref<1x128xf32, #tpu.memory_space<any>> -> memref<128xf32, #tpu.memory_space<any>>
    %c0_i32_503 = arith.constant 0 : i32
    %595 = tpu.memref_slice %arg5[%c6_i32_498, %c2_i32_499, %c0_i32_503] : memref<8x5x128xf32, #tpu.memory_space<vmem>> -> memref<1x1x128xf32, #tpu.memory_space<vmem>>
    %596 = tpu.memref_squeeze %595 : memref<1x1x128xf32, #tpu.memory_space<vmem>> -> memref<128xf32, #tpu.memory_space<vmem>>
    %597 = tpu.memref_slice %arg6[%c6_i32_500, %c2_i32_501] : memref<8x5x!tpu.dma_semaphore, #tpu.memory_space<semaphore_mem>> -> memref<1x1x!tpu.dma_semaphore, #tpu.memory_space<semaphore_mem>>
    %598 = tpu.memref_squeeze %597 : memref<1x1x!tpu.dma_semaphore, #tpu.memory_space<semaphore_mem>> -> memref<!tpu.dma_semaphore, #tpu.memory_space<semaphore_mem>>
    tpu.wait_dma2 semaphore(%598 : memref<!tpu.dma_semaphore, #tpu.memory_space<semaphore_mem>>) src(%594 : memref<128xf32, #tpu.memory_space<any>>) dst(%596 : memref<128xf32, #tpu.memory_space<vmem>>)
    %c6_i32_504 = arith.constant 6 : i32
    %c3_i32_505 = arith.constant 3 : i32
    %c6_i32_506 = arith.constant 6 : i32
    %c3_i32_507 = arith.constant 3 : i32
    %c0_i32_508 = arith.constant 0 : i32
    %599 = tpu.memref_slice %arg3[%334, %c0_i32_508] : memref<50x128xf32, #tpu.memory_space<any>> -> memref<1x128xf32, #tpu.memory_space<any>>
    %600 = tpu.memref_squeeze %599 : memref<1x128xf32, #tpu.memory_space<any>> -> memref<128xf32, #tpu.memory_space<any>>
    %c0_i32_509 = arith.constant 0 : i32
    %601 = tpu.memref_slice %arg5[%c6_i32_504, %c3_i32_505, %c0_i32_509] : memref<8x5x128xf32, #tpu.memory_space<vmem>> -> memref<1x1x128xf32, #tpu.memory_space<vmem>>
    %602 = tpu.memref_squeeze %601 : memref<1x1x128xf32, #tpu.memory_space<vmem>> -> memref<128xf32, #tpu.memory_space<vmem>>
    %603 = tpu.memref_slice %arg6[%c6_i32_506, %c3_i32_507] : memref<8x5x!tpu.dma_semaphore, #tpu.memory_space<semaphore_mem>> -> memref<1x1x!tpu.dma_semaphore, #tpu.memory_space<semaphore_mem>>
    %604 = tpu.memref_squeeze %603 : memref<1x1x!tpu.dma_semaphore, #tpu.memory_space<semaphore_mem>> -> memref<!tpu.dma_semaphore, #tpu.memory_space<semaphore_mem>>
    tpu.wait_dma2 semaphore(%604 : memref<!tpu.dma_semaphore, #tpu.memory_space<semaphore_mem>>) src(%600 : memref<128xf32, #tpu.memory_space<any>>) dst(%602 : memref<128xf32, #tpu.memory_space<vmem>>)
    %c6_i32_510 = arith.constant 6 : i32
    %c4_i32_511 = arith.constant 4 : i32
    %c6_i32_512 = arith.constant 6 : i32
    %c4_i32_513 = arith.constant 4 : i32
    %c0_i32_514 = arith.constant 0 : i32
    %605 = tpu.memref_slice %arg3[%344, %c0_i32_514] : memref<50x128xf32, #tpu.memory_space<any>> -> memref<1x128xf32, #tpu.memory_space<any>>
    %606 = tpu.memref_squeeze %605 : memref<1x128xf32, #tpu.memory_space<any>> -> memref<128xf32, #tpu.memory_space<any>>
    %c0_i32_515 = arith.constant 0 : i32
    %607 = tpu.memref_slice %arg5[%c6_i32_510, %c4_i32_511, %c0_i32_515] : memref<8x5x128xf32, #tpu.memory_space<vmem>> -> memref<1x1x128xf32, #tpu.memory_space<vmem>>
    %608 = tpu.memref_squeeze %607 : memref<1x1x128xf32, #tpu.memory_space<vmem>> -> memref<128xf32, #tpu.memory_space<vmem>>
    %609 = tpu.memref_slice %arg6[%c6_i32_512, %c4_i32_513] : memref<8x5x!tpu.dma_semaphore, #tpu.memory_space<semaphore_mem>> -> memref<1x1x!tpu.dma_semaphore, #tpu.memory_space<semaphore_mem>>
    %610 = tpu.memref_squeeze %609 : memref<1x1x!tpu.dma_semaphore, #tpu.memory_space<semaphore_mem>> -> memref<!tpu.dma_semaphore, #tpu.memory_space<semaphore_mem>>
    tpu.wait_dma2 semaphore(%610 : memref<!tpu.dma_semaphore, #tpu.memory_space<semaphore_mem>>) src(%606 : memref<128xf32, #tpu.memory_space<any>>) dst(%608 : memref<128xf32, #tpu.memory_space<vmem>>)
    %c7_i32_516 = arith.constant 7 : i32
    %c0_i32_517 = arith.constant 0 : i32
    %c7_i32_518 = arith.constant 7 : i32
    %c0_i32_519 = arith.constant 0 : i32
    %c0_i32_520 = arith.constant 0 : i32
    %611 = tpu.memref_slice %arg3[%354, %c0_i32_520] : memref<50x128xf32, #tpu.memory_space<any>> -> memref<1x128xf32, #tpu.memory_space<any>>
    %612 = tpu.memref_squeeze %611 : memref<1x128xf32, #tpu.memory_space<any>> -> memref<128xf32, #tpu.memory_space<any>>
    %c0_i32_521 = arith.constant 0 : i32
    %613 = tpu.memref_slice %arg5[%c7_i32_516, %c0_i32_517, %c0_i32_521] : memref<8x5x128xf32, #tpu.memory_space<vmem>> -> memref<1x1x128xf32, #tpu.memory_space<vmem>>
    %614 = tpu.memref_squeeze %613 : memref<1x1x128xf32, #tpu.memory_space<vmem>> -> memref<128xf32, #tpu.memory_space<vmem>>
    %615 = tpu.memref_slice %arg6[%c7_i32_518, %c0_i32_519] : memref<8x5x!tpu.dma_semaphore, #tpu.memory_space<semaphore_mem>> -> memref<1x1x!tpu.dma_semaphore, #tpu.memory_space<semaphore_mem>>
    %616 = tpu.memref_squeeze %615 : memref<1x1x!tpu.dma_semaphore, #tpu.memory_space<semaphore_mem>> -> memref<!tpu.dma_semaphore, #tpu.memory_space<semaphore_mem>>
    tpu.wait_dma2 semaphore(%616 : memref<!tpu.dma_semaphore, #tpu.memory_space<semaphore_mem>>) src(%612 : memref<128xf32, #tpu.memory_space<any>>) dst(%614 : memref<128xf32, #tpu.memory_space<vmem>>)
    %c7_i32_522 = arith.constant 7 : i32
    %c1_i32_523 = arith.constant 1 : i32
    %c7_i32_524 = arith.constant 7 : i32
    %c1_i32_525 = arith.constant 1 : i32
    %c0_i32_526 = arith.constant 0 : i32
    %617 = tpu.memref_slice %arg3[%364, %c0_i32_526] : memref<50x128xf32, #tpu.memory_space<any>> -> memref<1x128xf32, #tpu.memory_space<any>>
    %618 = tpu.memref_squeeze %617 : memref<1x128xf32, #tpu.memory_space<any>> -> memref<128xf32, #tpu.memory_space<any>>
    %c0_i32_527 = arith.constant 0 : i32
    %619 = tpu.memref_slice %arg5[%c7_i32_522, %c1_i32_523, %c0_i32_527] : memref<8x5x128xf32, #tpu.memory_space<vmem>> -> memref<1x1x128xf32, #tpu.memory_space<vmem>>
    %620 = tpu.memref_squeeze %619 : memref<1x1x128xf32, #tpu.memory_space<vmem>> -> memref<128xf32, #tpu.memory_space<vmem>>
    %621 = tpu.memref_slice %arg6[%c7_i32_524, %c1_i32_525] : memref<8x5x!tpu.dma_semaphore, #tpu.memory_space<semaphore_mem>> -> memref<1x1x!tpu.dma_semaphore, #tpu.memory_space<semaphore_mem>>
    %622 = tpu.memref_squeeze %621 : memref<1x1x!tpu.dma_semaphore, #tpu.memory_space<semaphore_mem>> -> memref<!tpu.dma_semaphore, #tpu.memory_space<semaphore_mem>>
    tpu.wait_dma2 semaphore(%622 : memref<!tpu.dma_semaphore, #tpu.memory_space<semaphore_mem>>) src(%618 : memref<128xf32, #tpu.memory_space<any>>) dst(%620 : memref<128xf32, #tpu.memory_space<vmem>>)
    %c7_i32_528 = arith.constant 7 : i32
    %c2_i32_529 = arith.constant 2 : i32
    %c7_i32_530 = arith.constant 7 : i32
    %c2_i32_531 = arith.constant 2 : i32
    %c0_i32_532 = arith.constant 0 : i32
    %623 = tpu.memref_slice %arg3[%374, %c0_i32_532] : memref<50x128xf32, #tpu.memory_space<any>> -> memref<1x128xf32, #tpu.memory_space<any>>
    %624 = tpu.memref_squeeze %623 : memref<1x128xf32, #tpu.memory_space<any>> -> memref<128xf32, #tpu.memory_space<any>>
    %c0_i32_533 = arith.constant 0 : i32
    %625 = tpu.memref_slice %arg5[%c7_i32_528, %c2_i32_529, %c0_i32_533] : memref<8x5x128xf32, #tpu.memory_space<vmem>> -> memref<1x1x128xf32, #tpu.memory_space<vmem>>
    %626 = tpu.memref_squeeze %625 : memref<1x1x128xf32, #tpu.memory_space<vmem>> -> memref<128xf32, #tpu.memory_space<vmem>>
    %627 = tpu.memref_slice %arg6[%c7_i32_530, %c2_i32_531] : memref<8x5x!tpu.dma_semaphore, #tpu.memory_space<semaphore_mem>> -> memref<1x1x!tpu.dma_semaphore, #tpu.memory_space<semaphore_mem>>
    %628 = tpu.memref_squeeze %627 : memref<1x1x!tpu.dma_semaphore, #tpu.memory_space<semaphore_mem>> -> memref<!tpu.dma_semaphore, #tpu.memory_space<semaphore_mem>>
    tpu.wait_dma2 semaphore(%628 : memref<!tpu.dma_semaphore, #tpu.memory_space<semaphore_mem>>) src(%624 : memref<128xf32, #tpu.memory_space<any>>) dst(%626 : memref<128xf32, #tpu.memory_space<vmem>>)
    %c7_i32_534 = arith.constant 7 : i32
    %c3_i32_535 = arith.constant 3 : i32
    %c7_i32_536 = arith.constant 7 : i32
    %c3_i32_537 = arith.constant 3 : i32
    %c0_i32_538 = arith.constant 0 : i32
    %629 = tpu.memref_slice %arg3[%384, %c0_i32_538] : memref<50x128xf32, #tpu.memory_space<any>> -> memref<1x128xf32, #tpu.memory_space<any>>
    %630 = tpu.memref_squeeze %629 : memref<1x128xf32, #tpu.memory_space<any>> -> memref<128xf32, #tpu.memory_space<any>>
    %c0_i32_539 = arith.constant 0 : i32
    %631 = tpu.memref_slice %arg5[%c7_i32_534, %c3_i32_535, %c0_i32_539] : memref<8x5x128xf32, #tpu.memory_space<vmem>> -> memref<1x1x128xf32, #tpu.memory_space<vmem>>
    %632 = tpu.memref_squeeze %631 : memref<1x1x128xf32, #tpu.memory_space<vmem>> -> memref<128xf32, #tpu.memory_space<vmem>>
    %633 = tpu.memref_slice %arg6[%c7_i32_536, %c3_i32_537] : memref<8x5x!tpu.dma_semaphore, #tpu.memory_space<semaphore_mem>> -> memref<1x1x!tpu.dma_semaphore, #tpu.memory_space<semaphore_mem>>
    %634 = tpu.memref_squeeze %633 : memref<1x1x!tpu.dma_semaphore, #tpu.memory_space<semaphore_mem>> -> memref<!tpu.dma_semaphore, #tpu.memory_space<semaphore_mem>>
    tpu.wait_dma2 semaphore(%634 : memref<!tpu.dma_semaphore, #tpu.memory_space<semaphore_mem>>) src(%630 : memref<128xf32, #tpu.memory_space<any>>) dst(%632 : memref<128xf32, #tpu.memory_space<vmem>>)
    %c7_i32_540 = arith.constant 7 : i32
    %c4_i32_541 = arith.constant 4 : i32
    %c7_i32_542 = arith.constant 7 : i32
    %c4_i32_543 = arith.constant 4 : i32
    %c0_i32_544 = arith.constant 0 : i32
    %635 = tpu.memref_slice %arg3[%394, %c0_i32_544] : memref<50x128xf32, #tpu.memory_space<any>> -> memref<1x128xf32, #tpu.memory_space<any>>
    %636 = tpu.memref_squeeze %635 : memref<1x128xf32, #tpu.memory_space<any>> -> memref<128xf32, #tpu.memory_space<any>>
    %c0_i32_545 = arith.constant 0 : i32
    %637 = tpu.memref_slice %arg5[%c7_i32_540, %c4_i32_541, %c0_i32_545] : memref<8x5x128xf32, #tpu.memory_space<vmem>> -> memref<1x1x128xf32, #tpu.memory_space<vmem>>
    %638 = tpu.memref_squeeze %637 : memref<1x1x128xf32, #tpu.memory_space<vmem>> -> memref<128xf32, #tpu.memory_space<vmem>>
    %639 = tpu.memref_slice %arg6[%c7_i32_542, %c4_i32_543] : memref<8x5x!tpu.dma_semaphore, #tpu.memory_space<semaphore_mem>> -> memref<1x1x!tpu.dma_semaphore, #tpu.memory_space<semaphore_mem>>
    %640 = tpu.memref_squeeze %639 : memref<1x1x!tpu.dma_semaphore, #tpu.memory_space<semaphore_mem>> -> memref<!tpu.dma_semaphore, #tpu.memory_space<semaphore_mem>>
    tpu.wait_dma2 semaphore(%640 : memref<!tpu.dma_semaphore, #tpu.memory_space<semaphore_mem>>) src(%636 : memref<128xf32, #tpu.memory_space<any>>) dst(%638 : memref<128xf32, #tpu.memory_space<vmem>>)
    %c0 = arith.constant 0 : index
    %c0_546 = arith.constant 0 : index
    %641 = vector.load %arg2[%c0, %c0_546] : memref<8x128xf32, #tpu.memory_space<vmem>>, vector<8x128xf32>
    %c0_547 = arith.constant 0 : index
    %c0_548 = arith.constant 0 : index
    %c0_549 = arith.constant 0 : index
    %642 = vector.load %arg5[%c0_547, %c0_548, %c0_549] : memref<8x5x128xf32, #tpu.memory_space<vmem>>, vector<8x5x128xf32>
    %643 = vector.shape_cast %641 : vector<8x128xf32> to vector<8x1x128xf32>
    "tpu.trace_start"() <{level = 10 : i32, message = "bqd,bkd->bqk"}> : () -> ()
    %cst = arith.constant dense<0.000000e+00> : vector<8x1x5xf32>
    %644 = tpu.matmul %643, %642, %cst {dimension_numbers = #tpu.dot_dimension_numbers<[2], [2], [1], [1], [0, 0, 0, 1, 1, 1], [0], [0]>} : vector<8x1x128xf32>, vector<8x5x128xf32>, vector<8x1x5xf32> -> vector<8x1x5xf32>
    "tpu.trace_stop"() : () -> ()
    %645 = tpu.iota {dimensions = array<i32: 2>} : vector<1x1x5xi32>
    %c0_i32_550 = arith.constant 0 : i32
    %646 = vector.broadcast %c0_i32_550 : i32 to vector<1x1x5xi32>
    %647 = arith.cmpi eq, %645, %646 : vector<1x1x5xi32>
    %cst_551 = arith.constant 1.000000e+00 : f32
    %cst_552 = arith.constant -1.000000e+00 : f32
    %648 = vector.broadcast %cst_551 : f32 to vector<1x1x5xf32>
    %649 = vector.broadcast %cst_552 : f32 to vector<1x1x5xf32>
    %650 = arith.select %647, %648, %649 : vector<1x1x5xi1>, vector<1x1x5xf32>
    %651 = vector.broadcast %650 : vector<1x1x5xf32> to vector<8x1x5xf32>
    %652 = arith.mulf %644, %651 : vector<8x1x5xf32>
    %cst_553 = arith.constant 0.000000e+00 : f32
    %653 = vector.broadcast %cst_553 : f32 to vector<8x1x5xf32>
    %654 = arith.minimumf %652, %653 : vector<8x1x5xf32>
    %655 = math.absf %652 : vector<8x1x5xf32>
    %cst_554 = arith.constant 0.000000e+00 : f32
    %656 = vector.broadcast %cst_554 : f32 to vector<8x1x5xf32>
    %657 = arith.subf %656, %655 : vector<8x1x5xf32>
    %658 = math.exp %657 : vector<8x1x5xf32>
    %cst_555 = arith.constant 1.000000e+00 : f32
    %659 = vector.broadcast %cst_555 : f32 to vector<8x1x5xf32>
    %660 = arith.addf %659, %658 : vector<8x1x5xf32>
    %661 = math.log %660 : vector<8x1x5xf32>
    %662 = arith.subf %654, %661 : vector<8x1x5xf32>
    %c8_i32 = arith.constant 8 : i32
    %663 = arith.muli %arg0, %c8_i32 : i32
    %664 = tpu.iota {dimensions = array<i32: 0>} : vector<8x1x1xi32>
    %665 = vector.broadcast %663 : i32 to vector<8x1x1xi32>
    %666 = arith.addi %665, %664 : vector<8x1x1xi32>
    %c16_i32 = arith.constant 16 : i32
    %667 = vector.broadcast %c16_i32 : i32 to vector<8x1x1xi32>
    %668 = arith.cmpi slt, %666, %667 : vector<8x1x1xi32>
    %cst_556 = arith.constant 0.000000e+00 : f32
    %669 = vector.shape_cast %668 : vector<8x1x1xi1> to vector<8x1x1xi1>
    %670 = vector.broadcast %669 : vector<8x1x1xi1> to vector<8x1x5xi1>
    %671 = vector.broadcast %cst_556 : f32 to vector<8x1x5xf32>
    %672 = arith.select %670, %662, %671 : vector<8x1x5xi1>, vector<8x1x5xf32>
    %673 = vector.shape_cast %672 : vector<8x1x5xf32> to vector<1x8x1x5xf32>
    %cst_557 = arith.constant dense<0.000000e+00> : vector<1xf32>
    %674 = vector.multi_reduction <add>, %673, %cst_557 [1, 2, 3] : vector<1x8x1x5xf32> to vector<1xf32>
    %675 = vector.shape_cast %674 : vector<1xf32> to vector<1x1x1x1xf32>
    %676 = vector.extract %675[0, 0, 0, 0] : f32 from vector<1x1x1x1xf32>
    %677 = vector.broadcast %676 : f32 to vector<1x8x128xf32>
    %c0_558 = arith.constant 0 : index
    %c0_559 = arith.constant 0 : index
    %c0_560 = arith.constant 0 : index
    %678 = vector.load %arg4[%c0_558, %c0_559, %c0_560] : memref<1x8x128xf32, #tpu.memory_space<vmem>>, vector<1x8x128xf32>
    tpu.vector_store %arg4[%c0_558, %c0_559, %c0_560], %677 {strides = array<i32>} : memref<1x8x128xf32, #tpu.memory_space<vmem>>, vector<1x8x128xf32>,
    return
  }
  func.func @transform_0(%arg0: i32, %arg1: memref<80xi32, #tpu.memory_space<smem>>) -> (i32, i32) {
    %c0_i32 = arith.constant 0 : i32
    %c0_i32_0 = arith.constant 0 : i32
    return %arg0, %c0_i32 : i32, i32
  }
  func.func @transform_2(%arg0: i32, %arg1: memref<80xi32, #tpu.memory_space<smem>>) -> (i32, i32, i32) {
    %c0_i32 = arith.constant 0 : i32
    %c0_i32_0 = arith.constant 0 : i32
    %c0_i32_1 = arith.constant 0 : i32
    return %arg0, %c0_i32, %c0_i32_0 : i32, i32, i32
  }
}

</mosaic_0001>

<llo_original>
// kernel: tpu_custom_call.1
$region0: #{tpu_custom_call.1}
  #allocation0 [shape = 'u32[]', space=smem, size = 0x4, offset = 0x4, fixed_abs, tag = 'smem constant byte address 0x4 - core index']
  #allocation1 [shape = 'u32[144,128]{1,0:T(1,128)}', space=vmem, size = 0x12000, scoped, tag = 'internal scratch']
  #allocation2 [shape = 'f32[8,5,128]{2,1,0:T(8,128)}', space=vmem, size = 0x8000, scoped, tag = 'scratch operand']
  #allocation3 [shape = 's32[40]{0}', space=sflag, size = 0xa0, scoped, tag = 'scratch operand']
  #allocation4 [shape = 's32[1]{0}', space=sflag, size = 0x4, scoped, tag = 'scoped memory for tpu_custom_call.1']
  #allocation5 [shape = 'u8[512]{0}', space=smem, size = 0x200, scoped, tag = 'prefetched SMEM operand 0']
  #allocation10 [shape = 's32[]', space=sflag, size = 0x4, offset = 0, fixed_abs, tag = 'sflag constant byte address 0x0 - dummy sync flag']
  #allocation11 [shape = 's32[]', space=sflag, size = 0x4, offset = 0, fixed_abs, tag = 'sflag constant byte address 0x0 - dummy sync flag']
  #allocation12 [shape = 'u32[]', space=smem, size = 0x4, offset = 0x44, fixed_abs, tag = 'smem constant byte address 0x44 - assertion arg 0']
  #allocation13 [shape = 'u32[]', space=smem, size = 0x4, offset = 0x48, fixed_abs, tag = 'smem constant byte address 0x48 - assertion arg 1']
  #allocation14 [shape = 's32[]', space=sflag, size = 0x4, offset = 0, fixed_abs, tag = 'sflag constant byte address 0x0 - dummy sync flag']
  #allocation15 [shape = 's32[]', space=sflag, size = 0x4, offset = 0, fixed_abs, tag = 'sflag constant byte address 0x0 - dummy sync flag']
  #allocation16 [shape = 's32[]', space=sflag, size = 0x4, offset = 0, fixed_abs, tag = 'sflag constant byte address 0x0 - dummy sync flag']
  #allocation17 [shape = 's32[]', space=sflag, size = 0x4, offset = 0, fixed_abs, tag = 'sflag constant byte address 0x0 - dummy sync flag']
  #allocation18 [shape = 's32[]', space=sflag, size = 0x4, offset = 0, fixed_abs, tag = 'sflag constant byte address 0x0 - dummy sync flag']
  #allocation19 [shape = 's32[]', space=sflag, size = 0x4, offset = 0, fixed_abs, tag = 'sflag constant byte address 0x0 - dummy sync flag']
  #allocation20 [shape = 's32[]', space=sflag, size = 0x4, offset = 0, fixed_abs, tag = 'sflag constant byte address 0x0 - dummy sync flag']
  #allocation21 [shape = 's32[]', space=sflag, size = 0x4, offset = 0, fixed_abs, tag = 'sflag constant byte address 0x0 - dummy sync flag']
  #allocation22 [shape = 's32[]', space=sflag, size = 0x4, offset = 0, fixed_abs, tag = 'sflag constant byte address 0x0 - dummy sync flag']
  #allocation23 [shape = 's32[]', space=sflag, size = 0x4, offset = 0, fixed_abs, tag = 'sflag constant byte address 0x0 - dummy sync flag']
  #allocation24 [shape = 's32[]', space=sflag, size = 0x4, offset = 0, fixed_abs, tag = 'sflag constant byte address 0x0 - dummy sync flag']
  #allocation25 [shape = 's32[]', space=sflag, size = 0x4, offset = 0, fixed_abs, tag = 'sflag constant byte address 0x0 - dummy sync flag']
  #allocation26 [shape = 's32[]', space=sflag, size = 0x4, offset = 0, fixed_abs, tag = 'sflag constant byte address 0x0 - dummy sync flag']
  #allocation27 [shape = 's32[]', space=sflag, size = 0x4, offset = 0, fixed_abs, tag = 'sflag constant byte address 0x0 - dummy sync flag']
  #allocation28 [shape = 's32[]', space=sflag, size = 0x4, offset = 0, fixed_abs, tag = 'sflag constant byte address 0x0 - dummy sync flag']
  #allocation29 [shape = 's32[]', space=sflag, size = 0x4, offset = 0, fixed_abs, tag = 'sflag constant byte address 0x0 - dummy sync flag']
  #allocation30 [shape = 's32[]', space=sflag, size = 0x4, offset = 0, fixed_abs, tag = 'sflag constant byte address 0x0 - dummy sync flag']
  #allocation31 [shape = 's32[]', space=sflag, size = 0x4, offset = 0, fixed_abs, tag = 'sflag constant byte address 0x0 - dummy sync flag']
  #allocation32 [shape = 's32[]', space=sflag, size = 0x4, offset = 0, fixed_abs, tag = 'sflag constant byte address 0x0 - dummy sync flag']
  #allocation33 [shape = 's32[]', space=sflag, size = 0x4, offset = 0, fixed_abs, tag = 'sflag constant byte address 0x0 - dummy sync flag']
  #allocation34 [shape = 's32[]', space=sflag, size = 0x4, offset = 0, fixed_abs, tag = 'sflag constant byte address 0x0 - dummy sync flag']
  #allocation35 [shape = 's32[]', space=sflag, size = 0x4, offset = 0, fixed_abs, tag = 'sflag constant byte address 0x0 - dummy sync flag']
  #allocation36 [shape = 's32[]', space=sflag, size = 0x4, offset = 0, fixed_abs, tag = 'sflag constant byte address 0x0 - dummy sync flag']
  #allocation37 [shape = 's32[]', space=sflag, size = 0x4, offset = 0, fixed_abs, tag = 'sflag constant byte address 0x0 - dummy sync flag']
  #allocation38 [shape = 's32[]', space=sflag, size = 0x4, offset = 0, fixed_abs, tag = 'sflag constant byte address 0x0 - dummy sync flag']
  #allocation39 [shape = 's32[]', space=sflag, size = 0x4, offset = 0, fixed_abs, tag = 'sflag constant byte address 0x0 - dummy sync flag']
  #allocation40 [shape = 's32[]', space=sflag, size = 0x4, offset = 0, fixed_abs, tag = 'sflag constant byte address 0x0 - dummy sync flag']
  #allocation41 [shape = 's32[]', space=sflag, size = 0x4, offset = 0, fixed_abs, tag = 'sflag constant byte address 0x0 - dummy sync flag']
  #allocation42 [shape = 's32[]', space=sflag, size = 0x4, offset = 0, fixed_abs, tag = 'sflag constant byte address 0x0 - dummy sync flag']
  #allocation43 [shape = 's32[]', space=sflag, size = 0x4, offset = 0, fixed_abs, tag = 'sflag constant byte address 0x0 - dummy sync flag']
  #allocation44 [shape = 's32[]', space=sflag, size = 0x4, offset = 0, fixed_abs, tag = 'sflag constant byte address 0x0 - dummy sync flag']
  #allocation45 [shape = 's32[]', space=sflag, size = 0x4, offset = 0, fixed_abs, tag = 'sflag constant byte address 0x0 - dummy sync flag']
  #allocation46 [shape = 's32[]', space=sflag, size = 0x4, offset = 0, fixed_abs, tag = 'sflag constant byte address 0x0 - dummy sync flag']
  #allocation47 [shape = 's32[]', space=sflag, size = 0x4, offset = 0, fixed_abs, tag = 'sflag constant byte address 0x0 - dummy sync flag']
  #allocation48 [shape = 's32[]', space=sflag, size = 0x4, offset = 0, fixed_abs, tag = 'sflag constant byte address 0x0 - dummy sync flag']
  #allocation49 [shape = 's32[]', space=sflag, size = 0x4, offset = 0, fixed_abs, tag = 'sflag constant byte address 0x0 - dummy sync flag']
  #allocation50 [shape = 's32[]', space=sflag, size = 0x4, offset = 0, fixed_abs, tag = 'sflag constant byte address 0x0 - dummy sync flag']
  #allocation51 [shape = 's32[]', space=sflag, size = 0x4, offset = 0, fixed_abs, tag = 'sflag constant byte address 0x0 - dummy sync flag']
  #allocation52 [shape = 's32[]', space=sflag, size = 0x4, offset = 0, fixed_abs, tag = 'sflag constant byte address 0x0 - dummy sync flag']
  #allocation53 [shape = 's32[]', space=sflag, size = 0x4, offset = 0, fixed_abs, tag = 'sflag constant byte address 0x0 - dummy sync flag']
  #allocation54 [shape = 's32[]', space=sflag, size = 0x4, offset = 0, fixed_abs, tag = 'sflag constant byte address 0x0 - dummy sync flag']
  #allocation55 [shape = 's32[]', space=sflag, size = 0x4, offset = 0, fixed_abs, tag = 'sflag constant byte address 0x0 - dummy sync flag']
  #allocation56 [shape = 's32[]', space=sflag, size = 0x4, offset = 0, fixed_abs, tag = 'sflag constant byte address 0x0 - dummy sync flag']
  #allocation57 [shape = 's32[]', space=sflag, size = 0x4, offset = 0, fixed_abs, tag = 'sflag constant byte address 0x0 - dummy sync flag']
  #allocation58 [shape = 's32[]', space=sflag, size = 0x4, offset = 0, fixed_abs, tag = 'sflag constant byte address 0x0 - dummy sync flag']
  #allocation59 [shape = 's32[]', space=sflag, size = 0x4, offset = 0, fixed_abs, tag = 'sflag constant byte address 0x0 - dummy sync flag']
  #allocation60 [shape = 's32[]', space=sflag, size = 0x4, offset = 0, fixed_abs, tag = 'sflag constant byte address 0x0 - dummy sync flag']
  #allocation61 [shape = 's32[]', space=sflag, size = 0x4, offset = 0, fixed_abs, tag = 'sflag constant byte address 0x0 - dummy sync flag']
  #allocation62 [shape = 's32[]', space=sflag, size = 0x4, offset = 0, fixed_abs, tag = 'sflag constant byte address 0x0 - dummy sync flag']
  #allocation63 [shape = 's32[]', space=sflag, size = 0x4, offset = 0, fixed_abs, tag = 'sflag constant byte address 0x0 - dummy sync flag']
  #allocation64 [shape = 's32[]', space=sflag, size = 0x4, offset = 0, fixed_abs, tag = 'sflag constant byte address 0x0 - dummy sync flag']
  #allocation65 [shape = 's32[]', space=sflag, size = 0x4, offset = 0, fixed_abs, tag = 'sflag constant byte address 0x0 - dummy sync flag']
  #allocation66 [shape = 's32[]', space=sflag, size = 0x4, offset = 0, fixed_abs, tag = 'sflag constant byte address 0x0 - dummy sync flag']
  #allocation67 [shape = 's32[]', space=sflag, size = 0x4, offset = 0, fixed_abs, tag = 'sflag constant byte address 0x0 - dummy sync flag']
  #allocation68 [shape = 's32[]', space=sflag, size = 0x4, offset = 0, fixed_abs, tag = 'sflag constant byte address 0x0 - dummy sync flag']
  #allocation69 [shape = 's32[]', space=sflag, size = 0x4, offset = 0, fixed_abs, tag = 'sflag constant byte address 0x0 - dummy sync flag']
  #allocation70 [shape = 's32[]', space=sflag, size = 0x4, offset = 0, fixed_abs, tag = 'sflag constant byte address 0x0 - dummy sync flag']
  #allocation71 [shape = 's32[]', space=sflag, size = 0x4, offset = 0, fixed_abs, tag = 'sflag constant byte address 0x0 - dummy sync flag']
  #allocation72 [shape = 's32[]', space=sflag, size = 0x4, offset = 0, fixed_abs, tag = 'sflag constant byte address 0x0 - dummy sync flag']
  #allocation73 [shape = 's32[]', space=sflag, size = 0x4, offset = 0, fixed_abs, tag = 'sflag constant byte address 0x0 - dummy sync flag']
  #allocation74 [shape = 's32[]', space=sflag, size = 0x4, offset = 0, fixed_abs, tag = 'sflag constant byte address 0x0 - dummy sync flag']
  #allocation75 [shape = 's32[]', space=sflag, size = 0x4, offset = 0, fixed_abs, tag = 'sflag constant byte address 0x0 - dummy sync flag']
  #allocation76 [shape = 's32[]', space=sflag, size = 0x4, offset = 0, fixed_abs, tag = 'sflag constant byte address 0x0 - dummy sync flag']
  #allocation77 [shape = 's32[]', space=sflag, size = 0x4, offset = 0, fixed_abs, tag = 'sflag constant byte address 0x0 - dummy sync flag']
  #allocation78 [shape = 's32[]', space=sflag, size = 0x4, offset = 0, fixed_abs, tag = 'sflag constant byte address 0x0 - dummy sync flag']
  #allocation79 [shape = 's32[]', space=sflag, size = 0x4, offset = 0, fixed_abs, tag = 'sflag constant byte address 0x0 - dummy sync flag']
  #allocation80 [shape = 's32[]', space=sflag, size = 0x4, offset = 0, fixed_abs, tag = 'sflag constant byte address 0x0 - dummy sync flag']
  #allocation81 [shape = 's32[]', space=sflag, size = 0x4, offset = 0, fixed_abs, tag = 'sflag constant byte address 0x0 - dummy sync flag']
  #allocation82 [shape = 's32[]', space=sflag, size = 0x4, offset = 0, fixed_abs, tag = 'sflag constant byte address 0x0 - dummy sync flag']
  #allocation83 [shape = 's32[]', space=sflag, size = 0x4, offset = 0, fixed_abs, tag = 'sflag constant byte address 0x0 - dummy sync flag']
  #allocation84 [shape = 's32[]', space=sflag, size = 0x4, offset = 0, fixed_abs, tag = 'sflag constant byte address 0x0 - dummy sync flag']
  #allocation85 [shape = 's32[]', space=sflag, size = 0x4, offset = 0, fixed_abs, tag = 'sflag constant byte address 0x0 - dummy sync flag']
  #allocation86 [shape = 's32[]', space=sflag, size = 0x4, offset = 0, fixed_abs, tag = 'sflag constant byte address 0x0 - dummy sync flag']
  #allocation87 [shape = 's32[]', space=sflag, size = 0x4, offset = 0, fixed_abs, tag = 'sflag constant byte address 0x0 - dummy sync flag']
  #allocation88 [shape = 's32[]', space=sflag, size = 0x4, offset = 0, fixed_abs, tag = 'sflag constant byte address 0x0 - dummy sync flag']
  #allocation89 [shape = 's32[]', space=sflag, size = 0x4, offset = 0, fixed_abs, tag = 'sflag constant byte address 0x0 - dummy sync flag']
  #allocation90 [shape = 's32[]', space=sflag, size = 0x4, offset = 0, fixed_abs, tag = 'sflag constant byte address 0x0 - dummy sync flag']
  #allocation91 [shape = 's32[]', space=sflag, size = 0x4, offset = 0, fixed_abs, tag = 'sflag constant byte address 0x0 - dummy sync flag']
  %s0 = inlined_call_operand.hbm [shape: s32[80], index: 0, kind: input, shape index: {}]
  %s1 = inlined_call_operand.hbm [shape: f32[16,128], index: 1, kind: input, shape index: {}]
  %s2 = inlined_call_operand.hbm [shape: f32[50,128], index: 2, kind: input, shape index: {}]
  %s3 = inlined_call_operand.hbm [shape: f32[2,8,128], index: 3, kind: output, shape index: {}]
  %s4 = sld [smem:[#allocation0]]
  $region201: #{tpu_custom_call.1} parent=0
    _
  %s6 = ssub.s32 1, %s4
  %s7 = scalar_select 0, %s6, %s4
  %9 = dma.hbm_to_smem %s0, 16, [#allocation5], [#allocation4]
  %10 = dma.done [#allocation4], 16
  %11 = sfence
  $region1: #{tpu_custom_call.1} parent=0
    #allocation6 [shape = 'u8[8192]{0}', space=vmem, size = 0x2000, scoped, tag = 'input window, operand 1']
    #allocation7 [shape = 's32[2]{0}', space=sflag, size = 0x8, scoped, tag = 'scoped memory for tpu_custom_call.1']
    #allocation8 [shape = 's32[2]{0}', space=sflag, size = 0x8, scoped, tag = 'scoped memory for tpu_custom_call.1']
    #allocation9 [shape = 'u8[8192]{0}', space=vmem, size = 0x2000, scoped, tag = 'output window, operand 0']
    %12 = vsyncpa [#allocation7], 0
    %s13 = scalar_lea.sflag [#allocation7], 1
    %14 = vsyncpa %s13, 0
    %15 = vsyncpa [#allocation8], 0
    %s16 = scalar_lea.sflag [#allocation8], 1
    %17 = vsyncpa %s16, 0
    loop: start=0, step=1, limit=4
    $region2: #{tpu_custom_call.1} parent=1 // loop_pre_header
      _
    $region3: #{tpu_custom_call.1} parent=1 // loop_header
      %s19 = sphi 0, %s23
      %p20 = scmp.ge.s32.totalorder %s19, 4
      %s29 = sphi 0, %s31
      %s32 = sphi 0, %s29
      %s33 = sphi 0, %s32
      %s49 = sphi 0, %s33
      %s55 = sphi 0, %s57
      %s58 = sphi 0, %s55
      %s59 = sphi 0, %s58
      %s75 = sphi 0, %s59
    $region4: #{tpu_custom_call.1} parent=1 // loop_header_branch
      %22 = sbr.rel (%p20) target = $region8
    $region5: #{tpu_custom_call.1} parent=1 // loop_body
      %s24 = ssub.s32 %s19, 1
      %s25 = ssub.s32 %s19, 2
      %s26 = sadd.s32 %s19, 1
      %s27 = ssub.s32 %s19, %s26
      %p28 = scmp.eq.s32.totalorder %s27, 0
      %s30 = sadd.s32 %s29, 1
      %s31 = scalar_select %p28, %s29, %s30
      %p34 = pneg %p28
      %p35 = scmp.eq.s32.totalorder %s19, 1
      %p36 = por %p34, %p35
      %p37 = scmp.ne.s32.totalorder %s29, %s32
      %p38 = scmp.eq.s32.totalorder %s19, 0
      %p39 = por %p37, %p38
      %p40 = scmp.ne.s32.totalorder %s29, %s32
      %p41 = scmp.eq.s32.totalorder %s24, 1
      %p42 = por %p40, %p41
      %p43 = scmp.ne.s32.totalorder %s32, %s33
      %p44 = scmp.eq.s32.totalorder %s24, 0
      %p45 = por %p43, %p44
      %p46 = scmp.ne.s32.totalorder %s32, %s33
      %p47 = scmp.eq.s32.totalorder %s25, 1
      %p48 = por %p46, %p47
      %p50 = scmp.ne.s32.totalorder %s33, %s49
      %p51 = scmp.eq.s32.totalorder %s25, 0
      %p52 = por %p50, %p51
      %s53 = ssub.s32 %s19, %s26
      %p54 = scmp.eq.s32.totalorder %s53, 0
      %s56 = sadd.s32 %s55, 1
      %s57 = scalar_select %p54, %s55, %s56
      %p60 = pneg %p54
      %p61 = scmp.eq.s32.totalorder %s19, 1
      %p62 = por %p60, %p61
      %p63 = scmp.ne.s32.totalorder %s55, %s58
      %p64 = scmp.eq.s32.totalorder %s19, 0
      %p65 = por %p63, %p64
      %p66 = scmp.ne.s32.totalorder %s55, %s58
      %p67 = scmp.eq.s32.totalorder %s24, 1
      %p68 = por %p66, %p67
      %p69 = scmp.ne.s32.totalorder %s58, %s59
      %p70 = scmp.eq.s32.totalorder %s24, 0
      %p71 = por %p69, %p70
      %p72 = scmp.ne.s32.totalorder %s58, %s59
      %p73 = scmp.eq.s32.totalorder %s25, 1
      %p74 = por %p72, %p73
      %p76 = scmp.ne.s32.totalorder %s59, %s75
      %p77 = scmp.eq.s32.totalorder %s25, 0
      %p78 = por %p76, %p77
      %p79 = scmp.le.s32.totalorder 1, %s19
      %p80 = scmp.lt.s32.totalorder %s19, 3
      %p81 = pnand %p79, %p80
      %p82 = pneg %p81
      // Predicated region
      $region9: #{tpu_custom_call.1} parent=5 // pred_check
        _
      $region10: #{tpu_custom_call.1} parent=5 // pred_check_branch
        %84 = sbr.rel (%p81) target = $region12
      $region11: #{tpu_custom_call.1} parent=5 // pred_region
        %s85 = ssub.s32 %s19, 1
      $region12: #{tpu_custom_call.1} parent=5 // pred_fallthru
        _
      %p86 = scmp.lt.s32.totalorder %s19, 2
      // Predicated region
      $region13: #{tpu_custom_call.1} parent=5 // pred_check
        %p87 = pneg %p86
      $region14: #{tpu_custom_call.1} parent=5 // pred_check_branch
        %89 = sbr.rel (%p87) target = $region16
      $region15: #{tpu_custom_call.1} parent=5 // pred_region
        // Predicated region
        $region17: #{tpu_custom_call.1} parent=15 // pred_check
          %p90 = pneg %p39
        $region18: #{tpu_custom_call.1} parent=15 // pred_check_branch
          %92 = sbr.rel (%p90) target = $region20
        $region19: #{tpu_custom_call.1} parent=15 // pred_region
          %s93 = sand.u32 %s29, 1
          %s94 = scalar_lea.sflag [#allocation7], %s93
          %s95 = sand.u32 %s29, 1
          %s96 = smul.addr %s95, 8
          %s97 = scalar_lea.vmem [#allocation6], %s96
          %s99 = ssub.s32 128, 128
          %100 = vsyncadd %s94, %s99
          %s101 = smul.addr %s19, 128
          %s102 = scalar_lea.hbm %s1, %s101
          %s104 = sshll.u32 %s97, 4
          %s105 = int_to_ptr.vmem [resolvable:$true] %s104
          %107 = dma.hbm_to_vmem [thread:$0]  %s102, 128, %s105, %s94
        $region20: #{tpu_custom_call.1} parent=15 // pred_fallthru
          _
      $region16: #{tpu_custom_call.1} parent=5 // pred_fallthru
        _
      %p108 = scmp.le.s32.totalorder 1, %s19
      %p109 = scmp.lt.s32.totalorder %s19, 3
      %p110 = pnand %p108, %p109
      %p111 = pneg %p110
      // Predicated region
      $region21: #{tpu_custom_call.1} parent=5 // pred_check
        _
      $region22: #{tpu_custom_call.1} parent=5 // pred_check_branch
        %113 = sbr.rel (%p110) target = $region24
      $region23: #{tpu_custom_call.1} parent=5 // pred_region
        %s114 = ssub.s32 %s19, 1
        %s115 = sand.u32 %s32, 1
        %s116 = scalar_lea.sflag [#allocation7], %s115
        %s117 = sand.u32 %s32, 1
        %s118 = smul.addr %s117, 8
        %s119 = scalar_lea.vmem [#allocation6], %s118
        // Predicated region
        $region25: #{tpu_custom_call.1} parent=23 // pred_check
          %p120 = pneg %p45
        $region26: #{tpu_custom_call.1} parent=23 // pred_check_branch
          %122 = sbr.rel (%p120) target = $region28
        $region27: #{tpu_custom_call.1} parent=23 // pred_region
          %123 = dma.done %s116, 128
        $region28: #{tpu_custom_call.1} parent=23 // pred_fallthru
          _
        %s124 = sand.u32 %s32, 1
        %s125 = scalar_lea.sflag [#allocation7], %s124
        %s126 = sand.u32 %s32, 1
        %s127 = smul.addr %s126, 8
        %s128 = scalar_lea.vmem [#allocation6], %s127
        %p129 = pneg %p45
        %p130 = pneg %p42
        %p131 = pneg %p71
        %p132 = pneg %p68
        %s133 = sand.u32 %s58, 1
        %s134 = scalar_lea.sflag [#allocation8], %s133
        %s135 = sand.u32 %s58, 1
        %s136 = smul.addr %s135, 8
        %s137 = scalar_lea.vmem [#allocation9], %s136
        %s138 = smul.u32 %s24, 40
        %s139 = sld [smem:[#allocation5 + %s138]]
        %s140 = smul.addr %s139, 16
        %s141 = scalar_lea.hbm %s2, %s140
        // Predicated region
        $region29: #{tpu_custom_call.1} parent=23 // pred_check
          _
        $region30: #{tpu_custom_call.1} parent=23 // pred_check_branch
          %143 = sbr.rel target = $region32
        $region31: #{tpu_custom_call.1} parent=23 // pred_region
          %144 = sst [smem:[#allocation12]] [#allocation11]
          %145 = sst [smem:[#allocation13]] [#allocation10]
        $region32: #{tpu_custom_call.1} parent=23 // pred_fallthru
          _
        %147 = shalt.err (0)
        %s149 = sshll.u32 [#allocation2], 4
        %s150 = int_to_ptr.vmem [resolvable:$true] %s149
        %152 = dma.hbm_to_vmem [thread:$0]  %s141, 16, %s150, [#allocation3]
        %s153 = sadd.s32 %s138, 1
        %s154 = sld [smem:[#allocation5 + %s153]]
        %s155 = smul.addr %s154, 16
        %s156 = scalar_lea.hbm %s2, %s155
        %s157 = scalar_lea.vmem [#allocation2], 1
        %s158 = scalar_lea.sflag [#allocation3], 1
        // Predicated region
        $region33: #{tpu_custom_call.1} parent=23 // pred_check
          _
        $region34: #{tpu_custom_call.1} parent=23 // pred_check_branch
          %160 = sbr.rel target = $region36
        $region35: #{tpu_custom_call.1} parent=23 // pred_region
          %161 = sst [smem:[#allocation12]] [#allocation15]
          %162 = sst [smem:[#allocation13]] [#allocation14]
        $region36: #{tpu_custom_call.1} parent=23 // pred_fallthru
          _
        %164 = shalt.err (0)
        %s166 = sshll.u32 %s157, 4
        %s167 = int_to_ptr.vmem [resolvable:$true] %s166
        %169 = dma.hbm_to_vmem [thread:$0]  %s156, 16, %s167, %s158
        %s170 = sadd.s32 %s138, 2
        %s171 = sld [smem:[#allocation5 + %s170]]
        %s172 = smul.addr %s171, 16
        %s173 = scalar_lea.hbm %s2, %s172
        %s174 = scalar_lea.vmem [#allocation2], 2
        %s175 = scalar_lea.sflag [#allocation3], 2
        // Predicated region
        $region37: #{tpu_custom_call.1} parent=23 // pred_check
          _
        $region38: #{tpu_custom_call.1} parent=23 // pred_check_branch
          %177 = sbr.rel target = $region40
        $region39: #{tpu_custom_call.1} parent=23 // pred_region
          %178 = sst [smem:[#allocation12]] [#allocation17]
          %179 = sst [smem:[#allocation13]] [#allocation16]
        $region40: #{tpu_custom_call.1} parent=23 // pred_fallthru
          _
        %181 = shalt.err (0)
        %s183 = sshll.u32 %s174, 4
        %s184 = int_to_ptr.vmem [resolvable:$true] %s183
        %186 = dma.hbm_to_vmem [thread:$0]  %s173, 16, %s184, %s175
        %s187 = sadd.s32 %s138, 3
        %s188 = sld [smem:[#allocation5 + %s187]]
        %s189 = smul.addr %s188, 16
        %s190 = scalar_lea.hbm %s2, %s189
        %s191 = scalar_lea.vmem [#allocation2], 3
        %s192 = scalar_lea.sflag [#allocation3], 3
        // Predicated region
        $region41: #{tpu_custom_call.1} parent=23 // pred_check
          _
        $region42: #{tpu_custom_call.1} parent=23 // pred_check_branch
          %194 = sbr.rel target = $region44
        $region43: #{tpu_custom_call.1} parent=23 // pred_region
          %195 = sst [smem:[#allocation12]] [#allocation19]
          %196 = sst [smem:[#allocation13]] [#allocation18]
        $region44: #{tpu_custom_call.1} parent=23 // pred_fallthru
          _
        %198 = shalt.err (0)
        %s200 = sshll.u32 %s191, 4
        %s201 = int_to_ptr.vmem [resolvable:$true] %s200
        %203 = dma.hbm_to_vmem [thread:$0]  %s190, 16, %s201, %s192
        %s204 = sadd.s32 %s138, 4
        %s205 = sld [smem:[#allocation5 + %s204]]
        %s206 = smul.addr %s205, 16
        %s207 = scalar_lea.hbm %s2, %s206
        %s208 = scalar_lea.vmem [#allocation2], 4
        %s209 = scalar_lea.sflag [#allocation3], 4
        // Predicated region
        $region45: #{tpu_custom_call.1} parent=23 // pred_check
          _
        $region46: #{tpu_custom_call.1} parent=23 // pred_check_branch
          %211 = sbr.rel target = $region48
        $region47: #{tpu_custom_call.1} parent=23 // pred_region
          %212 = sst [smem:[#allocation12]] [#allocation21]
          %213 = sst [smem:[#allocation13]] [#allocation20]
        $region48: #{tpu_custom_call.1} parent=23 // pred_fallthru
          _
        %215 = shalt.err (0)
        %s217 = sshll.u32 %s208, 4
        %s218 = int_to_ptr.vmem [resolvable:$true] %s217
        %220 = dma.hbm_to_vmem [thread:$0]  %s207, 16, %s218, %s209
        %s221 = sadd.s32 %s138, 5
        %s222 = sld [smem:[#allocation5 + %s221]]
        %s223 = smul.addr %s222, 16
        %s224 = scalar_lea.hbm %s2, %s223
        %s225 = scalar_lea.vmem [#allocation2], 8
        %s226 = scalar_lea.sflag [#allocation3], 5
        // Predicated region
        $region49: #{tpu_custom_call.1} parent=23 // pred_check
          _
        $region50: #{tpu_custom_call.1} parent=23 // pred_check_branch
          %228 = sbr.rel target = $region52
        $region51: #{tpu_custom_call.1} parent=23 // pred_region
          %229 = sst [smem:[#allocation12]] [#allocation23]
          %230 = sst [smem:[#allocation13]] [#allocation22]
        $region52: #{tpu_custom_call.1} parent=23 // pred_fallthru
          _
        %232 = shalt.err (0)
        %s234 = sshll.u32 %s225, 4
        %s235 = int_to_ptr.vmem [resolvable:$true] %s234
        %237 = dma.hbm_to_vmem [thread:$0]  %s224, 16, %s235, %s226
        %s238 = sadd.s32 %s138, 6
        %s239 = sld [smem:[#allocation5 + %s238]]
        %s240 = smul.addr %s239, 16
        %s241 = scalar_lea.hbm %s2, %s240
        %s242 = scalar_lea.vmem [#allocation2], 9
        %s243 = scalar_lea.sflag [#allocation3], 6
        // Predicated region
        $region53: #{tpu_custom_call.1} parent=23 // pred_check
          _
        $region54: #{tpu_custom_call.1} parent=23 // pred_check_branch
          %245 = sbr.rel target = $region56
        $region55: #{tpu_custom_call.1} parent=23 // pred_region
          %246 = sst [smem:[#allocation12]] [#allocation25]
          %247 = sst [smem:[#allocation13]] [#allocation24]
        $region56: #{tpu_custom_call.1} parent=23 // pred_fallthru
          _
        %249 = shalt.err (0)
        %s251 = sshll.u32 %s242, 4
        %s252 = int_to_ptr.vmem [resolvable:$true] %s251
        %254 = dma.hbm_to_vmem [thread:$0]  %s241, 16, %s252, %s243
        %s255 = sadd.s32 %s138, 7
        %s256 = sld [smem:[#allocation5 + %s255]]
        %s257 = smul.addr %s256, 16
        %s258 = scalar_lea.hbm %s2, %s257
        %s259 = scalar_lea.vmem [#allocation2], 10
        %s260 = scalar_lea.sflag [#allocation3], 7
        // Predicated region
        $region57: #{tpu_custom_call.1} parent=23 // pred_check
          _
        $region58: #{tpu_custom_call.1} parent=23 // pred_check_branch
          %262 = sbr.rel target = $region60
        $region59: #{tpu_custom_call.1} parent=23 // pred_region
          %263 = sst [smem:[#allocation12]] [#allocation27]
          %264 = sst [smem:[#allocation13]] [#allocation26]
        $region60: #{tpu_custom_call.1} parent=23 // pred_fallthru
          _
        %266 = shalt.err (0)
        %s268 = sshll.u32 %s259, 4
        %s269 = int_to_ptr.vmem [resolvable:$true] %s268
        %271 = dma.hbm_to_vmem [thread:$0]  %s258, 16, %s269, %s260
        %s272 = sadd.s32 %s138, 8
        %s273 = sld [smem:[#allocation5 + %s272]]
        %s274 = smul.addr %s273, 16
        %s275 = scalar_lea.hbm %s2, %s274
        %s276 = scalar_lea.vmem [#allocation2], 11
        %s277 = scalar_lea.sflag [#allocation3], 8
        // Predicated region
        $region61: #{tpu_custom_call.1} parent=23 // pred_check
          _
        $region62: #{tpu_custom_call.1} parent=23 // pred_check_branch
          %279 = sbr.rel target = $region64
        $region63: #{tpu_custom_call.1} parent=23 // pred_region
          %280 = sst [smem:[#allocation12]] [#allocation29]
          %281 = sst [smem:[#allocation13]] [#allocation28]
        $region64: #{tpu_custom_call.1} parent=23 // pred_fallthru
          _
        %283 = shalt.err (0)
        %s285 = sshll.u32 %s276, 4
        %s286 = int_to_ptr.vmem [resolvable:$true] %s285
        %288 = dma.hbm_to_vmem [thread:$0]  %s275, 16, %s286, %s277
        %s289 = sadd.s32 %s138, 9
        %s290 = sld [smem:[#allocation5 + %s289]]
        %s291 = smul.addr %s290, 16
        %s292 = scalar_lea.hbm %s2, %s291
        %s293 = scalar_lea.vmem [#allocation2], 12
        %s294 = scalar_lea.sflag [#allocation3], 9
        // Predicated region
        $region65: #{tpu_custom_call.1} parent=23 // pred_check
          _
        $region66: #{tpu_custom_call.1} parent=23 // pred_check_branch
          %296 = sbr.rel target = $region68
        $region67: #{tpu_custom_call.1} parent=23 // pred_region
          %297 = sst [smem:[#allocation12]] [#allocation31]
          %298 = sst [smem:[#allocation13]] [#allocation30]
        $region68: #{tpu_custom_call.1} parent=23 // pred_fallthru
          _
        %300 = shalt.err (0)
        %s302 = sshll.u32 %s293, 4
        %s303 = int_to_ptr.vmem [resolvable:$true] %s302
        %305 = dma.hbm_to_vmem [thread:$0]  %s292, 16, %s303, %s294
        %s306 = sadd.s32 %s138, 10
        %s307 = sld [smem:[#allocation5 + %s306]]
        %s308 = smul.addr %s307, 16
        %s309 = scalar_lea.hbm %s2, %s308
        %s310 = scalar_lea.vmem [#allocation2], 16
        %s311 = scalar_lea.sflag [#allocation3], 10
        // Predicated region
        $region69: #{tpu_custom_call.1} parent=23 // pred_check
          _
        $region70: #{tpu_custom_call.1} parent=23 // pred_check_branch
          %313 = sbr.rel target = $region72
        $region71: #{tpu_custom_call.1} parent=23 // pred_region
          %314 = sst [smem:[#allocation12]] [#allocation33]
          %315 = sst [smem:[#allocation13]] [#allocation32]
        $region72: #{tpu_custom_call.1} parent=23 // pred_fallthru
          _
        %317 = shalt.err (0)
        %s319 = sshll.u32 %s310, 4
        %s320 = int_to_ptr.vmem [resolvable:$true] %s319
        %322 = dma.hbm_to_vmem [thread:$0]  %s309, 16, %s320, %s311
        %s323 = sadd.s32 %s138, 11
        %s324 = sld [smem:[#allocation5 + %s323]]
        %s325 = smul.addr %s324, 16
        %s326 = scalar_lea.hbm %s2, %s325
        %s327 = scalar_lea.vmem [#allocation2], 17
        %s328 = scalar_lea.sflag [#allocation3], 11
        // Predicated region
        $region73: #{tpu_custom_call.1} parent=23 // pred_check
          _
        $region74: #{tpu_custom_call.1} parent=23 // pred_check_branch
          %330 = sbr.rel target = $region76
        $region75: #{tpu_custom_call.1} parent=23 // pred_region
          %331 = sst [smem:[#allocation12]] [#allocation35]
          %332 = sst [smem:[#allocation13]] [#allocation34]
        $region76: #{tpu_custom_call.1} parent=23 // pred_fallthru
          _
        %334 = shalt.err (0)
        %s336 = sshll.u32 %s327, 4
        %s337 = int_to_ptr.vmem [resolvable:$true] %s336
        %339 = dma.hbm_to_vmem [thread:$0]  %s326, 16, %s337, %s328
        %s340 = sadd.s32 %s138, 12
        %s341 = sld [smem:[#allocation5 + %s340]]
        %s342 = smul.addr %s341, 16
        %s343 = scalar_lea.hbm %s2, %s342
        %s344 = scalar_lea.vmem [#allocation2], 18
        %s345 = scalar_lea.sflag [#allocation3], 12
        // Predicated region
        $region77: #{tpu_custom_call.1} parent=23 // pred_check
          _
        $region78: #{tpu_custom_call.1} parent=23 // pred_check_branch
          %347 = sbr.rel target = $region80
        $region79: #{tpu_custom_call.1} parent=23 // pred_region
          %348 = sst [smem:[#allocation12]] [#allocation37]
          %349 = sst [smem:[#allocation13]] [#allocation36]
        $region80: #{tpu_custom_call.1} parent=23 // pred_fallthru
          _
        %351 = shalt.err (0)
        %s353 = sshll.u32 %s344, 4
        %s354 = int_to_ptr.vmem [resolvable:$true] %s353
        %356 = dma.hbm_to_vmem [thread:$0]  %s343, 16, %s354, %s345
        %s357 = sadd.s32 %s138, 13
        %s358 = sld [smem:[#allocation5 + %s357]]
        %s359 = smul.addr %s358, 16
        %s360 = scalar_lea.hbm %s2, %s359
        %s361 = scalar_lea.vmem [#allocation2], 19
        %s362 = scalar_lea.sflag [#allocation3], 13
        // Predicated region
        $region81: #{tpu_custom_call.1} parent=23 // pred_check
          _
        $region82: #{tpu_custom_call.1} parent=23 // pred_check_branch
          %364 = sbr.rel target = $region84
        $region83: #{tpu_custom_call.1} parent=23 // pred_region
          %365 = sst [smem:[#allocation12]] [#allocation39]
          %366 = sst [smem:[#allocation13]] [#allocation38]
        $region84: #{tpu_custom_call.1} parent=23 // pred_fallthru
          _
        %368 = shalt.err (0)
        %s370 = sshll.u32 %s361, 4
        %s371 = int_to_ptr.vmem [resolvable:$true] %s370
        %373 = dma.hbm_to_vmem [thread:$0]  %s360, 16, %s371, %s362
        %s374 = sadd.s32 %s138, 14
        %s375 = sld [smem:[#allocation5 + %s374]]
        %s376 = smul.addr %s375, 16
        %s377 = scalar_lea.hbm %s2, %s376
        %s378 = scalar_lea.vmem [#allocation2], 20
        %s379 = scalar_lea.sflag [#allocation3], 14
        // Predicated region
        $region85: #{tpu_custom_call.1} parent=23 // pred_check
          _
        $region86: #{tpu_custom_call.1} parent=23 // pred_check_branch
          %381 = sbr.rel target = $region88
        $region87: #{tpu_custom_call.1} parent=23 // pred_region
          %382 = sst [smem:[#allocation12]] [#allocation41]
          %383 = sst [smem:[#allocation13]] [#allocation40]
        $region88: #{tpu_custom_call.1} parent=23 // pred_fallthru
          _
        %385 = shalt.err (0)
        %s387 = sshll.u32 %s378, 4
        %s388 = int_to_ptr.vmem [resolvable:$true] %s387
        %390 = dma.hbm_to_vmem [thread:$0]  %s377, 16, %s388, %s379
        %s391 = sadd.s32 %s138, 15
        %s392 = sld [smem:[#allocation5 + %s391]]
        %s393 = smul.addr %s392, 16
        %s394 = scalar_lea.hbm %s2, %s393
        %s395 = scalar_lea.vmem [#allocation2], 24
        %s396 = scalar_lea.sflag [#allocation3], 15
        // Predicated region
        $region89: #{tpu_custom_call.1} parent=23 // pred_check
          _
        $region90: #{tpu_custom_call.1} parent=23 // pred_check_branch
          %398 = sbr.rel target = $region92
        $region91: #{tpu_custom_call.1} parent=23 // pred_region
          %399 = sst [smem:[#allocation12]] [#allocation43]
          %400 = sst [smem:[#allocation13]] [#allocation42]
        $region92: #{tpu_custom_call.1} parent=23 // pred_fallthru
          _
        %402 = shalt.err (0)
        %s404 = sshll.u32 %s395, 4
        %s405 = int_to_ptr.vmem [resolvable:$true] %s404
        %407 = dma.hbm_to_vmem [thread:$0]  %s394, 16, %s405, %s396
        %s408 = sadd.s32 %s138, 16
        %s409 = sld [smem:[#allocation5 + %s408]]
        %s410 = smul.addr %s409, 16
        %s411 = scalar_lea.hbm %s2, %s410
        %s412 = scalar_lea.vmem [#allocation2], 25
        %s413 = scalar_lea.sflag [#allocation3], 16
        // Predicated region
        $region93: #{tpu_custom_call.1} parent=23 // pred_check
          _
        $region94: #{tpu_custom_call.1} parent=23 // pred_check_branch
          %415 = sbr.rel target = $region96
        $region95: #{tpu_custom_call.1} parent=23 // pred_region
          %416 = sst [smem:[#allocation12]] [#allocation45]
          %417 = sst [smem:[#allocation13]] [#allocation44]
        $region96: #{tpu_custom_call.1} parent=23 // pred_fallthru
          _
        %419 = shalt.err (0)
        %s421 = sshll.u32 %s412, 4
        %s422 = int_to_ptr.vmem [resolvable:$true] %s421
        %424 = dma.hbm_to_vmem [thread:$0]  %s411, 16, %s422, %s413
        %s425 = sadd.s32 %s138, 17
        %s426 = sld [smem:[#allocation5 + %s425]]
        %s427 = smul.addr %s426, 16
        %s428 = scalar_lea.hbm %s2, %s427
        %s429 = scalar_lea.vmem [#allocation2], 26
        %s430 = scalar_lea.sflag [#allocation3], 17
        // Predicated region
        $region97: #{tpu_custom_call.1} parent=23 // pred_check
          _
        $region98: #{tpu_custom_call.1} parent=23 // pred_check_branch
          %432 = sbr.rel target = $region100
        $region99: #{tpu_custom_call.1} parent=23 // pred_region
          %433 = sst [smem:[#allocation12]] [#allocation47]
          %434 = sst [smem:[#allocation13]] [#allocation46]
        $region100: #{tpu_custom_call.1} parent=23 // pred_fallthru
          _
        %436 = shalt.err (0)
        %s438 = sshll.u32 %s429, 4
        %s439 = int_to_ptr.vmem [resolvable:$true] %s438
        %441 = dma.hbm_to_vmem [thread:$0]  %s428, 16, %s439, %s430
        %s442 = sadd.s32 %s138, 18
        %s443 = sld [smem:[#allocation5 + %s442]]
        %s444 = smul.addr %s443, 16
        %s445 = scalar_lea.hbm %s2, %s444
        %s446 = scalar_lea.vmem [#allocation2], 27
        %s447 = scalar_lea.sflag [#allocation3], 18
        // Predicated region
        $region101: #{tpu_custom_call.1} parent=23 // pred_check
          _
        $region102: #{tpu_custom_call.1} parent=23 // pred_check_branch
          %449 = sbr.rel target = $region104
        $region103: #{tpu_custom_call.1} parent=23 // pred_region
          %450 = sst [smem:[#allocation12]] [#allocation49]
          %451 = sst [smem:[#allocation13]] [#allocation48]
        $region104: #{tpu_custom_call.1} parent=23 // pred_fallthru
          _
        %453 = shalt.err (0)
        %s455 = sshll.u32 %s446, 4
        %s456 = int_to_ptr.vmem [resolvable:$true] %s455
        %458 = dma.hbm_to_vmem [thread:$0]  %s445, 16, %s456, %s447
        %s459 = sadd.s32 %s138, 19
        %s460 = sld [smem:[#allocation5 + %s459]]
        %s461 = smul.addr %s460, 16
        %s462 = scalar_lea.hbm %s2, %s461
        %s463 = scalar_lea.vmem [#allocation2], 28
        %s464 = scalar_lea.sflag [#allocation3], 19
        // Predicated region
        $region105: #{tpu_custom_call.1} parent=23 // pred_check
          _
        $region106: #{tpu_custom_call.1} parent=23 // pred_check_branch
          %466 = sbr.rel target = $region108
        $region107: #{tpu_custom_call.1} parent=23 // pred_region
          %467 = sst [smem:[#allocation12]] [#allocation51]
          %468 = sst [smem:[#allocation13]] [#allocation50]
        $region108: #{tpu_custom_call.1} parent=23 // pred_fallthru
          _
        %470 = shalt.err (0)
        %s472 = sshll.u32 %s463, 4
        %s473 = int_to_ptr.vmem [resolvable:$true] %s472
        %475 = dma.hbm_to_vmem [thread:$0]  %s462, 16, %s473, %s464
        %s476 = sadd.s32 %s138, 20
        %s477 = sld [smem:[#allocation5 + %s476]]
        %s478 = smul.addr %s477, 16
        %s479 = scalar_lea.hbm %s2, %s478
        %s480 = scalar_lea.vmem [#allocation2], 32
        %s481 = scalar_lea.sflag [#allocation3], 20
        // Predicated region
        $region109: #{tpu_custom_call.1} parent=23 // pred_check
          _
        $region110: #{tpu_custom_call.1} parent=23 // pred_check_branch
          %483 = sbr.rel target = $region112
        $region111: #{tpu_custom_call.1} parent=23 // pred_region
          %484 = sst [smem:[#allocation12]] [#allocation53]
          %485 = sst [smem:[#allocation13]] [#allocation52]
        $region112: #{tpu_custom_call.1} parent=23 // pred_fallthru
          _
        %487 = shalt.err (0)
        %s489 = sshll.u32 %s480, 4
        %s490 = int_to_ptr.vmem [resolvable:$true] %s489
        %492 = dma.hbm_to_vmem [thread:$0]  %s479, 16, %s490, %s481
        %s493 = sadd.s32 %s138, 21
        %s494 = sld [smem:[#allocation5 + %s493]]
        %s495 = smul.addr %s494, 16
        %s496 = scalar_lea.hbm %s2, %s495
        %s497 = scalar_lea.vmem [#allocation2], 33
        %s498 = scalar_lea.sflag [#allocation3], 21
        // Predicated region
        $region113: #{tpu_custom_call.1} parent=23 // pred_check
          _
        $region114: #{tpu_custom_call.1} parent=23 // pred_check_branch
          %500 = sbr.rel target = $region116
        $region115: #{tpu_custom_call.1} parent=23 // pred_region
          %501 = sst [smem:[#allocation12]] [#allocation55]
          %502 = sst [smem:[#allocation13]] [#allocation54]
        $region116: #{tpu_custom_call.1} parent=23 // pred_fallthru
          _
        %504 = shalt.err (0)
        %s506 = sshll.u32 %s497, 4
        %s507 = int_to_ptr.vmem [resolvable:$true] %s506
        %509 = dma.hbm_to_vmem [thread:$0]  %s496, 16, %s507, %s498
        %s510 = sadd.s32 %s138, 22
        %s511 = sld [smem:[#allocation5 + %s510]]
        %s512 = smul.addr %s511, 16
        %s513 = scalar_lea.hbm %s2, %s512
        %s514 = scalar_lea.vmem [#allocation2], 34
        %s515 = scalar_lea.sflag [#allocation3], 22
        // Predicated region
        $region117: #{tpu_custom_call.1} parent=23 // pred_check
          _
        $region118: #{tpu_custom_call.1} parent=23 // pred_check_branch
          %517 = sbr.rel target = $region120
        $region119: #{tpu_custom_call.1} parent=23 // pred_region
          %518 = sst [smem:[#allocation12]] [#allocation57]
          %519 = sst [smem:[#allocation13]] [#allocation56]
        $region120: #{tpu_custom_call.1} parent=23 // pred_fallthru
          _
        %521 = shalt.err (0)
        %s523 = sshll.u32 %s514, 4
        %s524 = int_to_ptr.vmem [resolvable:$true] %s523
        %526 = dma.hbm_to_vmem [thread:$0]  %s513, 16, %s524, %s515
        %s527 = sadd.s32 %s138, 23
        %s528 = sld [smem:[#allocation5 + %s527]]
        %s529 = smul.addr %s528, 16
        %s530 = scalar_lea.hbm %s2, %s529
        %s531 = scalar_lea.vmem [#allocation2], 35
        %s532 = scalar_lea.sflag [#allocation3], 23
        // Predicated region
        $region121: #{tpu_custom_call.1} parent=23 // pred_check
          _
        $region122: #{tpu_custom_call.1} parent=23 // pred_check_branch
          %534 = sbr.rel target = $region124
        $region123: #{tpu_custom_call.1} parent=23 // pred_region
          %535 = sst [smem:[#allocation12]] [#allocation59]
          %536 = sst [smem:[#allocation13]] [#allocation58]
        $region124: #{tpu_custom_call.1} parent=23 // pred_fallthru
          _
        %538 = shalt.err (0)
        %s540 = sshll.u32 %s531, 4
        %s541 = int_to_ptr.vmem [resolvable:$true] %s540
        %543 = dma.hbm_to_vmem [thread:$0]  %s530, 16, %s541, %s532
        %s544 = sadd.s32 %s138, 24
        %s545 = sld [smem:[#allocation5 + %s544]]
        %s546 = smul.addr %s545, 16
        %s547 = scalar_lea.hbm %s2, %s546
        %s548 = scalar_lea.vmem [#allocation2], 36
        %s549 = scalar_lea.sflag [#allocation3], 24
        // Predicated region
        $region125: #{tpu_custom_call.1} parent=23 // pred_check
          _
        $region126: #{tpu_custom_call.1} parent=23 // pred_check_branch
          %551 = sbr.rel target = $region128
        $region127: #{tpu_custom_call.1} parent=23 // pred_region
          %552 = sst [smem:[#allocation12]] [#allocation61]
          %553 = sst [smem:[#allocation13]] [#allocation60]
        $region128: #{tpu_custom_call.1} parent=23 // pred_fallthru
          _
        %555 = shalt.err (0)
        %s557 = sshll.u32 %s548, 4
        %s558 = int_to_ptr.vmem [resolvable:$true] %s557
        %560 = dma.hbm_to_vmem [thread:$0]  %s547, 16, %s558, %s549
        %s561 = sadd.s32 %s138, 25
        %s562 = sld [smem:[#allocation5 + %s561]]
        %s563 = smul.addr %s562, 16
        %s564 = scalar_lea.hbm %s2, %s563
        %s565 = scalar_lea.vmem [#allocation2], 40
        %s566 = scalar_lea.sflag [#allocation3], 25
        // Predicated region
        $region129: #{tpu_custom_call.1} parent=23 // pred_check
          _
        $region130: #{tpu_custom_call.1} parent=23 // pred_check_branch
          %568 = sbr.rel target = $region132
        $region131: #{tpu_custom_call.1} parent=23 // pred_region
          %569 = sst [smem:[#allocation12]] [#allocation63]
          %570 = sst [smem:[#allocation13]] [#allocation62]
        $region132: #{tpu_custom_call.1} parent=23 // pred_fallthru
          _
        %572 = shalt.err (0)
        %s574 = sshll.u32 %s565, 4
        %s575 = int_to_ptr.vmem [resolvable:$true] %s574
        %577 = dma.hbm_to_vmem [thread:$0]  %s564, 16, %s575, %s566
        %s578 = sadd.s32 %s138, 26
        %s579 = sld [smem:[#allocation5 + %s578]]
        %s580 = smul.addr %s579, 16
        %s581 = scalar_lea.hbm %s2, %s580
        %s582 = scalar_lea.vmem [#allocation2], 41
        %s583 = scalar_lea.sflag [#allocation3], 26
        // Predicated region
        $region133: #{tpu_custom_call.1} parent=23 // pred_check
          _
        $region134: #{tpu_custom_call.1} parent=23 // pred_check_branch
          %585 = sbr.rel target = $region136
        $region135: #{tpu_custom_call.1} parent=23 // pred_region
          %586 = sst [smem:[#allocation12]] [#allocation65]
          %587 = sst [smem:[#allocation13]] [#allocation64]
        $region136: #{tpu_custom_call.1} parent=23 // pred_fallthru
          _
        %589 = shalt.err (0)
        %s591 = sshll.u32 %s582, 4
        %s592 = int_to_ptr.vmem [resolvable:$true] %s591
        %594 = dma.hbm_to_vmem [thread:$0]  %s581, 16, %s592, %s583
        %s595 = sadd.s32 %s138, 27
        %s596 = sld [smem:[#allocation5 + %s595]]
        %s597 = smul.addr %s596, 16
        %s598 = scalar_lea.hbm %s2, %s597
        %s599 = scalar_lea.vmem [#allocation2], 42
        %s600 = scalar_lea.sflag [#allocation3], 27
        // Predicated region
        $region137: #{tpu_custom_call.1} parent=23 // pred_check
          _
        $region138: #{tpu_custom_call.1} parent=23 // pred_check_branch
          %602 = sbr.rel target = $region140
        $region139: #{tpu_custom_call.1} parent=23 // pred_region
          %603 = sst [smem:[#allocation12]] [#allocation67]
          %604 = sst [smem:[#allocation13]] [#allocation66]
        $region140: #{tpu_custom_call.1} parent=23 // pred_fallthru
          _
        %606 = shalt.err (0)
        %s608 = sshll.u32 %s599, 4
        %s609 = int_to_ptr.vmem [resolvable:$true] %s608
        %611 = dma.hbm_to_vmem [thread:$0]  %s598, 16, %s609, %s600
        %s612 = sadd.s32 %s138, 28
        %s613 = sld [smem:[#allocation5 + %s612]]
        %s614 = smul.addr %s613, 16
        %s615 = scalar_lea.hbm %s2, %s614
        %s616 = scalar_lea.vmem [#allocation2], 43
        %s617 = scalar_lea.sflag [#allocation3], 28
        // Predicated region
        $region141: #{tpu_custom_call.1} parent=23 // pred_check
          _
        $region142: #{tpu_custom_call.1} parent=23 // pred_check_branch
          %619 = sbr.rel target = $region144
        $region143: #{tpu_custom_call.1} parent=23 // pred_region
          %620 = sst [smem:[#allocation12]] [#allocation69]
          %621 = sst [smem:[#allocation13]] [#allocation68]
        $region144: #{tpu_custom_call.1} parent=23 // pred_fallthru
          _
        %623 = shalt.err (0)
        %s625 = sshll.u32 %s616, 4
        %s626 = int_to_ptr.vmem [resolvable:$true] %s625
        %628 = dma.hbm_to_vmem [thread:$0]  %s615, 16, %s626, %s617
        %s629 = sadd.s32 %s138, 29
        %s630 = sld [smem:[#allocation5 + %s629]]
        %s631 = smul.addr %s630, 16
        %s632 = scalar_lea.hbm %s2, %s631
        %s633 = scalar_lea.vmem [#allocation2], 44
        %s634 = scalar_lea.sflag [#allocation3], 29
        // Predicated region
        $region145: #{tpu_custom_call.1} parent=23 // pred_check
          _
        $region146: #{tpu_custom_call.1} parent=23 // pred_check_branch
          %636 = sbr.rel target = $region148
        $region147: #{tpu_custom_call.1} parent=23 // pred_region
          %637 = sst [smem:[#allocation12]] [#allocation71]
          %638 = sst [smem:[#allocation13]] [#allocation70]
        $region148: #{tpu_custom_call.1} parent=23 // pred_fallthru
          _
        %640 = shalt.err (0)
        %s642 = sshll.u32 %s633, 4
        %s643 = int_to_ptr.vmem [resolvable:$true] %s642
        %645 = dma.hbm_to_vmem [thread:$0]  %s632, 16, %s643, %s634
        %s646 = sadd.s32 %s138, 30
        %s647 = sld [smem:[#allocation5 + %s646]]
        %s648 = smul.addr %s647, 16
        %s649 = scalar_lea.hbm %s2, %s648
        %s650 = scalar_lea.vmem [#allocation2], 48
        %s651 = scalar_lea.sflag [#allocation3], 30
        // Predicated region
        $region149: #{tpu_custom_call.1} parent=23 // pred_check
          _
        $region150: #{tpu_custom_call.1} parent=23 // pred_check_branch
          %653 = sbr.rel target = $region152
        $region151: #{tpu_custom_call.1} parent=23 // pred_region
          %654 = sst [smem:[#allocation12]] [#allocation73]
          %655 = sst [smem:[#allocation13]] [#allocation72]
        $region152: #{tpu_custom_call.1} parent=23 // pred_fallthru
          _
        %657 = shalt.err (0)
        %s659 = sshll.u32 %s650, 4
        %s660 = int_to_ptr.vmem [resolvable:$true] %s659
        %662 = dma.hbm_to_vmem [thread:$0]  %s649, 16, %s660, %s651
        %s663 = sadd.s32 %s138, 31
        %s664 = sld [smem:[#allocation5 + %s663]]
        %s665 = smul.addr %s664, 16
        %s666 = scalar_lea.hbm %s2, %s665
        %s667 = scalar_lea.vmem [#allocation2], 49
        %s668 = scalar_lea.sflag [#allocation3], 31
        // Predicated region
        $region153: #{tpu_custom_call.1} parent=23 // pred_check
          _
        $region154: #{tpu_custom_call.1} parent=23 // pred_check_branch
          %670 = sbr.rel target = $region156
        $region155: #{tpu_custom_call.1} parent=23 // pred_region
          %671 = sst [smem:[#allocation12]] [#allocation75]
          %672 = sst [smem:[#allocation13]] [#allocation74]
        $region156: #{tpu_custom_call.1} parent=23 // pred_fallthru
          _
        %674 = shalt.err (0)
        %s676 = sshll.u32 %s667, 4
        %s677 = int_to_ptr.vmem [resolvable:$true] %s676
        %679 = dma.hbm_to_vmem [thread:$0]  %s666, 16, %s677, %s668
        %s680 = sadd.s32 %s138, 32
        %s681 = sld [smem:[#allocation5 + %s680]]
        %s682 = smul.addr %s681, 16
        %s683 = scalar_lea.hbm %s2, %s682
        %s684 = scalar_lea.vmem [#allocation2], 50
        %s685 = scalar_lea.sflag [#allocation3], 32
        // Predicated region
        $region157: #{tpu_custom_call.1} parent=23 // pred_check
          _
        $region158: #{tpu_custom_call.1} parent=23 // pred_check_branch
          %687 = sbr.rel target = $region160
        $region159: #{tpu_custom_call.1} parent=23 // pred_region
          %688 = sst [smem:[#allocation12]] [#allocation77]
          %689 = sst [smem:[#allocation13]] [#allocation76]
        $region160: #{tpu_custom_call.1} parent=23 // pred_fallthru
          _
        %691 = shalt.err (0)
        %s693 = sshll.u32 %s684, 4
        %s694 = int_to_ptr.vmem [resolvable:$true] %s693
        %696 = dma.hbm_to_vmem [thread:$0]  %s683, 16, %s694, %s685
        %s697 = sadd.s32 %s138, 33
        %s698 = sld [smem:[#allocation5 + %s697]]
        %s699 = smul.addr %s698, 16
        %s700 = scalar_lea.hbm %s2, %s699
        %s701 = scalar_lea.vmem [#allocation2], 51
        %s702 = scalar_lea.sflag [#allocation3], 33
        // Predicated region
        $region161: #{tpu_custom_call.1} parent=23 // pred_check
          _
        $region162: #{tpu_custom_call.1} parent=23 // pred_check_branch
          %704 = sbr.rel target = $region164
        $region163: #{tpu_custom_call.1} parent=23 // pred_region
          %705 = sst [smem:[#allocation12]] [#allocation79]
          %706 = sst [smem:[#allocation13]] [#allocation78]
        $region164: #{tpu_custom_call.1} parent=23 // pred_fallthru
          _
        %708 = shalt.err (0)
        %s710 = sshll.u32 %s701, 4
        %s711 = int_to_ptr.vmem [resolvable:$true] %s710
        %713 = dma.hbm_to_vmem [thread:$0]  %s700, 16, %s711, %s702
        %s714 = sadd.s32 %s138, 34
        %s715 = sld [smem:[#allocation5 + %s714]]
        %s716 = smul.addr %s715, 16
        %s717 = scalar_lea.hbm %s2, %s716
        %s718 = scalar_lea.vmem [#allocation2], 52
        %s719 = scalar_lea.sflag [#allocation3], 34
        // Predicated region
        $region165: #{tpu_custom_call.1} parent=23 // pred_check
          _
        $region166: #{tpu_custom_call.1} parent=23 // pred_check_branch
          %721 = sbr.rel target = $region168
        $region167: #{tpu_custom_call.1} parent=23 // pred_region
          %722 = sst [smem:[#allocation12]] [#allocation81]
          %723 = sst [smem:[#allocation13]] [#allocation80]
        $region168: #{tpu_custom_call.1} parent=23 // pred_fallthru
          _
        %725 = shalt.err (0)
        %s727 = sshll.u32 %s718, 4
        %s728 = int_to_ptr.vmem [resolvable:$true] %s727
        %730 = dma.hbm_to_vmem [thread:$0]  %s717, 16, %s728, %s719
        %s731 = sadd.s32 %s138, 35
        %s732 = sld [smem:[#allocation5 + %s731]]
        %s733 = smul.addr %s732, 16
        %s734 = scalar_lea.hbm %s2, %s733
        %s735 = scalar_lea.vmem [#allocation2], 56
        %s736 = scalar_lea.sflag [#allocation3], 35
        // Predicated region
        $region169: #{tpu_custom_call.1} parent=23 // pred_check
          _
        $region170: #{tpu_custom_call.1} parent=23 // pred_check_branch
          %738 = sbr.rel target = $region172
        $region171: #{tpu_custom_call.1} parent=23 // pred_region
          %739 = sst [smem:[#allocation12]] [#allocation83]
          %740 = sst [smem:[#allocation13]] [#allocation82]
        $region172: #{tpu_custom_call.1} parent=23 // pred_fallthru
          _
        %742 = shalt.err (0)
        %s744 = sshll.u32 %s735, 4
        %s745 = int_to_ptr.vmem [resolvable:$true] %s744
        %747 = dma.hbm_to_vmem [thread:$0]  %s734, 16, %s745, %s736
        %s748 = sadd.s32 %s138, 36
        %s749 = sld [smem:[#allocation5 + %s748]]
        %s750 = smul.addr %s749, 16
        %s751 = scalar_lea.hbm %s2, %s750
        %s752 = scalar_lea.vmem [#allocation2], 57
        %s753 = scalar_lea.sflag [#allocation3], 36
        // Predicated region
        $region173: #{tpu_custom_call.1} parent=23 // pred_check
          _
        $region174: #{tpu_custom_call.1} parent=23 // pred_check_branch
          %755 = sbr.rel target = $region176
        $region175: #{tpu_custom_call.1} parent=23 // pred_region
          %756 = sst [smem:[#allocation12]] [#allocation85]
          %757 = sst [smem:[#allocation13]] [#allocation84]
        $region176: #{tpu_custom_call.1} parent=23 // pred_fallthru
          _
        %759 = shalt.err (0)
        %s761 = sshll.u32 %s752, 4
        %s762 = int_to_ptr.vmem [resolvable:$true] %s761
        %764 = dma.hbm_to_vmem [thread:$0]  %s751, 16, %s762, %s753
        %s765 = sadd.s32 %s138, 37
        %s766 = sld [smem:[#allocation5 + %s765]]
        %s767 = smul.addr %s766, 16
        %s768 = scalar_lea.hbm %s2, %s767
        %s769 = scalar_lea.vmem [#allocation2], 58
        %s770 = scalar_lea.sflag [#allocation3], 37
        // Predicated region
        $region177: #{tpu_custom_call.1} parent=23 // pred_check
          _
        $region178: #{tpu_custom_call.1} parent=23 // pred_check_branch
          %772 = sbr.rel target = $region180
        $region179: #{tpu_custom_call.1} parent=23 // pred_region
          %773 = sst [smem:[#allocation12]] [#allocation87]
          %774 = sst [smem:[#allocation13]] [#allocation86]
        $region180: #{tpu_custom_call.1} parent=23 // pred_fallthru
          _
        %776 = shalt.err (0)
        %s778 = sshll.u32 %s769, 4
        %s779 = int_to_ptr.vmem [resolvable:$true] %s778
        %781 = dma.hbm_to_vmem [thread:$0]  %s768, 16, %s779, %s770
        %s782 = sadd.s32 %s138, 38
        %s783 = sld [smem:[#allocation5 + %s782]]
        %s784 = smul.addr %s783, 16
        %s785 = scalar_lea.hbm %s2, %s784
        %s786 = scalar_lea.vmem [#allocation2], 59
        %s787 = scalar_lea.sflag [#allocation3], 38
        // Predicated region
        $region181: #{tpu_custom_call.1} parent=23 // pred_check
          _
        $region182: #{tpu_custom_call.1} parent=23 // pred_check_branch
          %789 = sbr.rel target = $region184
        $region183: #{tpu_custom_call.1} parent=23 // pred_region
          %790 = sst [smem:[#allocation12]] [#allocation89]
          %791 = sst [smem:[#allocation13]] [#allocation88]
        $region184: #{tpu_custom_call.1} parent=23 // pred_fallthru
          _
        %793 = shalt.err (0)
        %s795 = sshll.u32 %s786, 4
        %s796 = int_to_ptr.vmem [resolvable:$true] %s795
        %798 = dma.hbm_to_vmem [thread:$0]  %s785, 16, %s796, %s787
        %s799 = sadd.s32 %s138, 39
        %s800 = sld [smem:[#allocation5 + %s799]]
        %s801 = smul.addr %s800, 16
        %s802 = scalar_lea.hbm %s2, %s801
        %s803 = scalar_lea.vmem [#allocation2], 60
        %s804 = scalar_lea.sflag [#allocation3], 39
        // Predicated region
        $region185: #{tpu_custom_call.1} parent=23 // pred_check
          _
        $region186: #{tpu_custom_call.1} parent=23 // pred_check_branch
          %806 = sbr.rel target = $region188
        $region187: #{tpu_custom_call.1} parent=23 // pred_region
          %807 = sst [smem:[#allocation12]] [#allocation91]
          %808 = sst [smem:[#allocation13]] [#allocation90]
        $region188: #{tpu_custom_call.1} parent=23 // pred_fallthru
          _
        %810 = shalt.err (0)
        %s812 = sshll.u32 %s803, 4
        %s813 = int_to_ptr.vmem [resolvable:$true] %s812
        %815 = dma.hbm_to_vmem [thread:$0]  %s802, 16, %s813, %s804
        %817 = dma.done [#allocation3], 16
        %819 = dma.done %s158, 16
        %821 = dma.done %s175, 16
        %823 = dma.done %s192, 16
        %825 = dma.done %s209, 16
        %827 = dma.done %s226, 16
        %829 = dma.done %s243, 16
        %831 = dma.done %s260, 16
        %833 = dma.done %s277, 16
        %835 = dma.done %s294, 16
        %837 = dma.done %s311, 16
        %839 = dma.done %s328, 16
        %841 = dma.done %s345, 16
        %843 = dma.done %s362, 16
        %845 = dma.done %s379, 16
        %847 = dma.done %s396, 16
        %849 = dma.done %s413, 16
        %851 = dma.done %s430, 16
        %853 = dma.done %s447, 16
        %855 = dma.done %s464, 16
        %857 = dma.done %s481, 16
        %859 = dma.done %s498, 16
        %861 = dma.done %s515, 16
        %863 = dma.done %s532, 16
        %865 = dma.done %s549, 16
        %867 = dma.done %s566, 16
        %869 = dma.done %s583, 16
        %871 = dma.done %s600, 16
        %873 = dma.done %s617, 16
        %875 = dma.done %s634, 16
        %877 = dma.done %s651, 16
        %879 = dma.done %s668, 16
        %881 = dma.done %s685, 16
        %883 = dma.done %s702, 16
        %885 = dma.done %s719, 16
        %887 = dma.done %s736, 16
        %889 = dma.done %s753, 16
        %891 = dma.done %s770, 16
        %893 = dma.done %s787, 16
        %895 = dma.done %s804, 16
        %v896 = vld [vmem:[%s119] sm:$0xff]
        %v897 = vld [vmem:[#allocation2] sm:$0x1f]
        %v898 = vld [vmem:[#allocation2 + $0x8] sm:$0x1f]
        %v899 = vld [vmem:[#allocation2 + $0x10] sm:$0x1f]
        %v900 = vld [vmem:[#allocation2 + $0x18] sm:$0x1f]
        %v901 = vld [vmem:[#allocation2 + $0x20] sm:$0x1f]
        %v902 = vld [vmem:[#allocation2 + $0x28] sm:$0x1f]
        %v903 = vld [vmem:[#allocation2 + $0x30] sm:$0x1f]
        %v904 = vld [vmem:[#allocation2 + $0x38] sm:$0x1f]
        %v906 = vcombine.high %v896, %v896
        %v908 = vunpack.c.l.s4 1966171168
        %v909 = vunpack.c.0.s8 %v908
        %v910 = vlaneseq
        %v911 = vshrl.u32 %v910, 7
        %v912 = vsub.s32 %v909, %v911
        %v913 = vrot.slane %v896, %v912
        %v915 = vunpack.c.l.s4 1966171168
        %v916 = vunpack.c.0.s8 %v915
        %v917 = vlaneseq
        %v918 = vshrl.u32 %v917, 7
        %v919 = vsub.s32 %v916, %v918
        %v920 = vrot.slane %v906, %v919
        %v921 = vcombine.high %v913, %v913
        %v922 = vcombine.high %v920, %v920
        %v924 = vunpack.c.l.s4 1966171168
        %v925 = vunpack.c.0.s8 %v924
        %v926 = vlaneseq
        %v927 = vshrl.u32 %v926, 7
        %v928 = vsub.s32 %v925, %v927
        %v929 = vrot.slane %v913, %v928
        %v931 = vunpack.c.l.s4 1966171168
        %v932 = vunpack.c.0.s8 %v931
        %v933 = vlaneseq
        %v934 = vshrl.u32 %v933, 7
        %v935 = vsub.s32 %v932, %v934
        %v936 = vrot.slane %v920, %v935
        %v938 = vunpack.c.l.s4 1966171168
        %v939 = vunpack.c.0.s8 %v938
        %v940 = vlaneseq
        %v941 = vshrl.u32 %v940, 7
        %v942 = vsub.s32 %v939, %v941
        %v943 = vrot.slane %v921, %v942
        %v945 = vunpack.c.l.s4 1966171168
        %v946 = vunpack.c.0.s8 %v945
        %v947 = vlaneseq
        %v948 = vshrl.u32 %v947, 7
        %v949 = vsub.s32 %v946, %v948
        %v950 = vrot.slane %v922, %v949
        %v951 = vcombine.high %v929, %v929
        %v952 = vcombine.high %v936, %v936
        %v953 = vcombine.high %v943, %v943
        %v954 = vcombine.high %v950, %v950
        %963 = vmatprep.subr.mxu0 0.0
        %964 = vmatpush1.xpose.msra.mxu0 %v897
        %965 = vmatprep.subr.mxu0 0.0
        %966 = vmatpush1.xpose.msra.mxu0 0.0
        %967 = vmatprep.subr.mxu0 0.0
        %968 = vmatpush1.xpose.msra.mxu0 0.0
        %969 = vmatprep.subr.mxu0 0.0
        %970 = vmatpush1.xpose.msra.mxu0 0.0
        %971 = vmatprep.subr.mxu0 0.0
        %972 = vmatpush1.xpose.msra.mxu0 0.0
        %973 = vmatprep.subr.mxu0 0.0
        %974 = vmatpush1.xpose.msra.mxu0 0.0
        %975 = vmatprep.subr.mxu0 0.0
        %976 = vmatpush1.xpose.msra.mxu0 0.0
        %977 = vmatprep.subr.mxu0 0.0
        %978 = vmatpush1.xpose.msra.mxu0 0.0
        %979 = vmatprep.subr.mxu0 0.0
        %980 = vmatpush1.xpose.msra.mxu0 0.0
        %981 = vmatprep.subr.mxu0 0.0
        %982 = vmatpush1.xpose.msra.mxu0 0.0
        %983 = vmatprep.subr.mxu0 0.0
        %984 = vmatpush1.xpose.msra.mxu0 0.0
        %985 = vmatprep.subr.mxu0 0.0
        %986 = vmatpush1.xpose.msra.mxu0 0.0
        %987 = vmatprep.subr.mxu0 0.0
        %988 = vmatpush1.xpose.msra.mxu0 0.0
        %989 = vmatprep.subr.mxu0 0.0
        %990 = vmatpush1.xpose.msra.mxu0 0.0
        %991 = vmatprep.subr.mxu0 0.0
        %992 = vmatpush1.xpose.msra.mxu0 0.0
        %993 = vmatprep.subr.mxu0 0.0
        %994 = vmatpush1.xpose.msra.mxu0 0.0
        %995 = vmatprep.subr.mxu0 0.0
        %996 = vmatpush1.xpose.msra.mxu0 0.0
        %997 = vmatprep.subr.mxu0 0.0
        %998 = vmatpush1.xpose.msra.mxu0 0.0
        %999 = vmatprep.subr.mxu0 0.0
        %1000 = vmatpush1.xpose.msra.mxu0 0.0
        %1001 = vmatprep.subr.mxu0 0.0
        %1002 = vmatpush1.xpose.msra.mxu0 0.0
        %1003 = vmatprep.subr.mxu0 0.0
        %1004 = vmatpush1.xpose.msra.mxu0 0.0
        %1005 = vmatprep.subr.mxu0 0.0
        %1006 = vmatpush1.xpose.msra.mxu0 0.0
        %1007 = vmatprep.subr.mxu0 0.0
        %1008 = vmatpush1.xpose.msra.mxu0 0.0
        %1009 = vmatprep.subr.mxu0 0.0
        %1010 = vmatpush1.xpose.msra.mxu0 0.0
        %1011 = vmatprep.subr.mxu0 0.0
        %1012 = vmatpush1.xpose.msra.mxu0 0.0
        %1013 = vmatprep.subr.mxu0 0.0
        %1014 = vmatpush1.xpose.msra.mxu0 0.0
        %1015 = vmatprep.subr.mxu0 0.0
        %1016 = vmatpush1.xpose.msra.mxu0 0.0
        %1017 = vmatprep.subr.mxu0 0.0
        %1018 = vmatpush1.xpose.msra.mxu0 0.0
        %1019 = vmatprep.subr.mxu0 0.0
        %1020 = vmatpush1.xpose.msra.mxu0 0.0
        %1021 = vmatprep.subr.mxu0 0.0
        %1022 = vmatpush1.xpose.msra.mxu0 0.0
        %1023 = vmatprep.subr.mxu0 0.0
        %1024 = vmatpush1.xpose.msra.mxu0 0.0
        %1025 = vmatprep.subr.mxu0 0.0
        %1026 = vmatpush1.xpose.msra.mxu0 0.0
        %1027 = vmatprep.mubr.f32.mxu0 0.0
        %1028 = vmatmul.mubr.f32.gmra.mrb[0].mxu0 %v929
        %v1029 = vpop.f32.mrb[0].mxu0
        %v1030 = vadd.f32 0.0, %v1029
        %v1031 = vpop.f32.mrb[0].mxu0
        %1032 = vdwg.mxu0
        %1033 = vmatprep.subr.mxu0 0.0
        %1034 = vmatpush1.xpose.msra.mxu0 %v898
        %1035 = vmatprep.subr.mxu0 0.0
        %1036 = vmatpush1.xpose.msra.mxu0 0.0
        %1037 = vmatprep.subr.mxu0 0.0
        %1038 = vmatpush1.xpose.msra.mxu0 0.0
        %1039 = vmatprep.subr.mxu0 0.0
        %1040 = vmatpush1.xpose.msra.mxu0 0.0
        %1041 = vmatprep.subr.mxu0 0.0
        %1042 = vmatpush1.xpose.msra.mxu0 0.0
        %1043 = vmatprep.subr.mxu0 0.0
        %1044 = vmatpush1.xpose.msra.mxu0 0.0
        %1045 = vmatprep.subr.mxu0 0.0
        %1046 = vmatpush1.xpose.msra.mxu0 0.0
        %1047 = vmatprep.subr.mxu0 0.0
        %1048 = vmatpush1.xpose.msra.mxu0 0.0
        %1049 = vmatprep.subr.mxu0 0.0
        %1050 = vmatpush1.xpose.msra.mxu0 0.0
        %1051 = vmatprep.subr.mxu0 0.0
        %1052 = vmatpush1.xpose.msra.mxu0 0.0
        %1053 = vmatprep.subr.mxu0 0.0
        %1054 = vmatpush1.xpose.msra.mxu0 0.0
        %1055 = vmatprep.subr.mxu0 0.0
        %1056 = vmatpush1.xpose.msra.mxu0 0.0
        %1057 = vmatprep.subr.mxu0 0.0
        %1058 = vmatpush1.xpose.msra.mxu0 0.0
        %1059 = vmatprep.subr.mxu0 0.0
        %1060 = vmatpush1.xpose.msra.mxu0 0.0
        %1061 = vmatprep.subr.mxu0 0.0
        %1062 = vmatpush1.xpose.msra.mxu0 0.0
        %1063 = vmatprep.subr.mxu0 0.0
        %1064 = vmatpush1.xpose.msra.mxu0 0.0
        %1065 = vmatprep.subr.mxu0 0.0
        %1066 = vmatpush1.xpose.msra.mxu0 0.0
        %1067 = vmatprep.subr.mxu0 0.0
        %1068 = vmatpush1.xpose.msra.mxu0 0.0
        %1069 = vmatprep.subr.mxu0 0.0
        %1070 = vmatpush1.xpose.msra.mxu0 0.0
        %1071 = vmatprep.subr.mxu0 0.0
        %1072 = vmatpush1.xpose.msra.mxu0 0.0
        %1073 = vmatprep.subr.mxu0 0.0
        %1074 = vmatpush1.xpose.msra.mxu0 0.0
        %1075 = vmatprep.subr.mxu0 0.0
        %1076 = vmatpush1.xpose.msra.mxu0 0.0
        %1077 = vmatprep.subr.mxu0 0.0
        %1078 = vmatpush1.xpose.msra.mxu0 0.0
        %1079 = vmatprep.subr.mxu0 0.0
        %1080 = vmatpush1.xpose.msra.mxu0 0.0
        %1081 = vmatprep.subr.mxu0 0.0
        %1082 = vmatpush1.xpose.msra.mxu0 0.0
        %1083 = vmatprep.subr.mxu0 0.0
        %1084 = vmatpush1.xpose.msra.mxu0 0.0
        %1085 = vmatprep.subr.mxu0 0.0
        %1086 = vmatpush1.xpose.msra.mxu0 0.0
        %1087 = vmatprep.subr.mxu0 0.0
        %1088 = vmatpush1.xpose.msra.mxu0 0.0
        %1089 = vmatprep.subr.mxu0 0.0
        %1090 = vmatpush1.xpose.msra.mxu0 0.0
        %1091 = vmatprep.subr.mxu0 0.0
        %1092 = vmatpush1.xpose.msra.mxu0 0.0
        %1093 = vmatprep.subr.mxu0 0.0
        %1094 = vmatpush1.xpose.msra.mxu0 0.0
        %1095 = vmatprep.subr.mxu0 0.0
        %1096 = vmatpush1.xpose.msra.mxu0 0.0
        %1097 = vmatprep.mubr.f32.mxu0 0.0
        %1098 = vmatmul.mubr.f32.gmra.mrb[0].mxu0 %v943
        %v1099 = vpop.f32.mrb[0].mxu0
        %v1100 = vadd.f32 0.0, %v1099
        %v1101 = vpop.f32.mrb[0].mxu0
        %1102 = vdwg.mxu0
        %1103 = vmatprep.subr.mxu0 0.0
        %1104 = vmatpush1.xpose.msra.mxu0 %v899
        %1105 = vmatprep.subr.mxu0 0.0
        %1106 = vmatpush1.xpose.msra.mxu0 0.0
        %1107 = vmatprep.subr.mxu0 0.0
        %1108 = vmatpush1.xpose.msra.mxu0 0.0
        %1109 = vmatprep.subr.mxu0 0.0
        %1110 = vmatpush1.xpose.msra.mxu0 0.0
        %1111 = vmatprep.subr.mxu0 0.0
        %1112 = vmatpush1.xpose.msra.mxu0 0.0
        %1113 = vmatprep.subr.mxu0 0.0
        %1114 = vmatpush1.xpose.msra.mxu0 0.0
        %1115 = vmatprep.subr.mxu0 0.0
        %1116 = vmatpush1.xpose.msra.mxu0 0.0
        %1117 = vmatprep.subr.mxu0 0.0
        %1118 = vmatpush1.xpose.msra.mxu0 0.0
        %1119 = vmatprep.subr.mxu0 0.0
        %1120 = vmatpush1.xpose.msra.mxu0 0.0
        %1121 = vmatprep.subr.mxu0 0.0
        %1122 = vmatpush1.xpose.msra.mxu0 0.0
        %1123 = vmatprep.subr.mxu0 0.0
        %1124 = vmatpush1.xpose.msra.mxu0 0.0
        %1125 = vmatprep.subr.mxu0 0.0
        %1126 = vmatpush1.xpose.msra.mxu0 0.0
        %1127 = vmatprep.subr.mxu0 0.0
        %1128 = vmatpush1.xpose.msra.mxu0 0.0
        %1129 = vmatprep.subr.mxu0 0.0
        %1130 = vmatpush1.xpose.msra.mxu0 0.0
        %1131 = vmatprep.subr.mxu0 0.0
        %1132 = vmatpush1.xpose.msra.mxu0 0.0
        %1133 = vmatprep.subr.mxu0 0.0
        %1134 = vmatpush1.xpose.msra.mxu0 0.0
        %1135 = vmatprep.subr.mxu0 0.0
        %1136 = vmatpush1.xpose.msra.mxu0 0.0
        %1137 = vmatprep.subr.mxu0 0.0
        %1138 = vmatpush1.xpose.msra.mxu0 0.0
        %1139 = vmatprep.subr.mxu0 0.0
        %1140 = vmatpush1.xpose.msra.mxu0 0.0
        %1141 = vmatprep.subr.mxu0 0.0
        %1142 = vmatpush1.xpose.msra.mxu0 0.0
        %1143 = vmatprep.subr.mxu0 0.0
        %1144 = vmatpush1.xpose.msra.mxu0 0.0
        %1145 = vmatprep.subr.mxu0 0.0
        %1146 = vmatpush1.xpose.msra.mxu0 0.0
        %1147 = vmatprep.subr.mxu0 0.0
        %1148 = vmatpush1.xpose.msra.mxu0 0.0
        %1149 = vmatprep.subr.mxu0 0.0
        %1150 = vmatpush1.xpose.msra.mxu0 0.0
        %1151 = vmatprep.subr.mxu0 0.0
        %1152 = vmatpush1.xpose.msra.mxu0 0.0
        %1153 = vmatprep.subr.mxu0 0.0
        %1154 = vmatpush1.xpose.msra.mxu0 0.0
        %1155 = vmatprep.subr.mxu0 0.0
        %1156 = vmatpush1.xpose.msra.mxu0 0.0
        %1157 = vmatprep.subr.mxu0 0.0
        %1158 = vmatpush1.xpose.msra.mxu0 0.0
        %1159 = vmatprep.subr.mxu0 0.0
        %1160 = vmatpush1.xpose.msra.mxu0 0.0
        %1161 = vmatprep.subr.mxu0 0.0
        %1162 = vmatpush1.xpose.msra.mxu0 0.0
        %1163 = vmatprep.subr.mxu0 0.0
        %1164 = vmatpush1.xpose.msra.mxu0 0.0
        %1165 = vmatprep.subr.mxu0 0.0
        %1166 = vmatpush1.xpose.msra.mxu0 0.0
        %1167 = vmatprep.mubr.f32.mxu0 0.0
        %1168 = vmatmul.mubr.f32.gmra.mrb[0].mxu0 %v951
        %v1169 = vpop.f32.mrb[0].mxu0
        %v1170 = vadd.f32 0.0, %v1169
        %v1171 = vpop.f32.mrb[0].mxu0
        %1172 = vdwg.mxu0
        %1173 = vmatprep.subr.mxu0 0.0
        %1174 = vmatpush1.xpose.msra.mxu0 %v900
        %1175 = vmatprep.subr.mxu0 0.0
        %1176 = vmatpush1.xpose.msra.mxu0 0.0
        %1177 = vmatprep.subr.mxu0 0.0
        %1178 = vmatpush1.xpose.msra.mxu0 0.0
        %1179 = vmatprep.subr.mxu0 0.0
        %1180 = vmatpush1.xpose.msra.mxu0 0.0
        %1181 = vmatprep.subr.mxu0 0.0
        %1182 = vmatpush1.xpose.msra.mxu0 0.0
        %1183 = vmatprep.subr.mxu0 0.0
        %1184 = vmatpush1.xpose.msra.mxu0 0.0
        %1185 = vmatprep.subr.mxu0 0.0
        %1186 = vmatpush1.xpose.msra.mxu0 0.0
        %1187 = vmatprep.subr.mxu0 0.0
        %1188 = vmatpush1.xpose.msra.mxu0 0.0
        %1189 = vmatprep.subr.mxu0 0.0
        %1190 = vmatpush1.xpose.msra.mxu0 0.0
        %1191 = vmatprep.subr.mxu0 0.0
        %1192 = vmatpush1.xpose.msra.mxu0 0.0
        %1193 = vmatprep.subr.mxu0 0.0
        %1194 = vmatpush1.xpose.msra.mxu0 0.0
        %1195 = vmatprep.subr.mxu0 0.0
        %1196 = vmatpush1.xpose.msra.mxu0 0.0
        %1197 = vmatprep.subr.mxu0 0.0
        %1198 = vmatpush1.xpose.msra.mxu0 0.0
        %1199 = vmatprep.subr.mxu0 0.0
        %1200 = vmatpush1.xpose.msra.mxu0 0.0
        %1201 = vmatprep.subr.mxu0 0.0
        %1202 = vmatpush1.xpose.msra.mxu0 0.0
        %1203 = vmatprep.subr.mxu0 0.0
        %1204 = vmatpush1.xpose.msra.mxu0 0.0
        %1205 = vmatprep.subr.mxu0 0.0
        %1206 = vmatpush1.xpose.msra.mxu0 0.0
        %1207 = vmatprep.subr.mxu0 0.0
        %1208 = vmatpush1.xpose.msra.mxu0 0.0
        %1209 = vmatprep.subr.mxu0 0.0
        %1210 = vmatpush1.xpose.msra.mxu0 0.0
        %1211 = vmatprep.subr.mxu0 0.0
        %1212 = vmatpush1.xpose.msra.mxu0 0.0
        %1213 = vmatprep.subr.mxu0 0.0
        %1214 = vmatpush1.xpose.msra.mxu0 0.0
        %1215 = vmatprep.subr.mxu0 0.0
        %1216 = vmatpush1.xpose.msra.mxu0 0.0
        %1217 = vmatprep.subr.mxu0 0.0
        %1218 = vmatpush1.xpose.msra.mxu0 0.0
        %1219 = vmatprep.subr.mxu0 0.0
        %1220 = vmatpush1.xpose.msra.mxu0 0.0
        %1221 = vmatprep.subr.mxu0 0.0
        %1222 = vmatpush1.xpose.msra.mxu0 0.0
        %1223 = vmatprep.subr.mxu0 0.0
        %1224 = vmatpush1.xpose.msra.mxu0 0.0
        %1225 = vmatprep.subr.mxu0 0.0
        %1226 = vmatpush1.xpose.msra.mxu0 0.0
        %1227 = vmatprep.subr.mxu0 0.0
        %1228 = vmatpush1.xpose.msra.mxu0 0.0
        %1229 = vmatprep.subr.mxu0 0.0
        %1230 = vmatpush1.xpose.msra.mxu0 0.0
        %1231 = vmatprep.subr.mxu0 0.0
        %1232 = vmatpush1.xpose.msra.mxu0 0.0
        %1233 = vmatprep.subr.mxu0 0.0
        %1234 = vmatpush1.xpose.msra.mxu0 0.0
        %1235 = vmatprep.subr.mxu0 0.0
        %1236 = vmatpush1.xpose.msra.mxu0 0.0
        %1237 = vmatprep.mubr.f32.mxu0 0.0
        %1238 = vmatmul.mubr.f32.gmra.mrb[0].mxu0 %v953
        %v1239 = vpop.f32.mrb[0].mxu0
        %v1240 = vadd.f32 0.0, %v1239
        %v1241 = vpop.f32.mrb[0].mxu0
        %1242 = vdwg.mxu0
        %1243 = vmatprep.subr.mxu0 0.0
        %1244 = vmatpush1.xpose.msra.mxu0 %v901
        %1245 = vmatprep.subr.mxu0 0.0
        %1246 = vmatpush1.xpose.msra.mxu0 0.0
        %1247 = vmatprep.subr.mxu0 0.0
        %1248 = vmatpush1.xpose.msra.mxu0 0.0
        %1249 = vmatprep.subr.mxu0 0.0
        %1250 = vmatpush1.xpose.msra.mxu0 0.0
        %1251 = vmatprep.subr.mxu0 0.0
        %1252 = vmatpush1.xpose.msra.mxu0 0.0
        %1253 = vmatprep.subr.mxu0 0.0
        %1254 = vmatpush1.xpose.msra.mxu0 0.0
        %1255 = vmatprep.subr.mxu0 0.0
        %1256 = vmatpush1.xpose.msra.mxu0 0.0
        %1257 = vmatprep.subr.mxu0 0.0
        %1258 = vmatpush1.xpose.msra.mxu0 0.0
        %1259 = vmatprep.subr.mxu0 0.0
        %1260 = vmatpush1.xpose.msra.mxu0 0.0
        %1261 = vmatprep.subr.mxu0 0.0
        %1262 = vmatpush1.xpose.msra.mxu0 0.0
        %1263 = vmatprep.subr.mxu0 0.0
        %1264 = vmatpush1.xpose.msra.mxu0 0.0
        %1265 = vmatprep.subr.mxu0 0.0
        %1266 = vmatpush1.xpose.msra.mxu0 0.0
        %1267 = vmatprep.subr.mxu0 0.0
        %1268 = vmatpush1.xpose.msra.mxu0 0.0
        %1269 = vmatprep.subr.mxu0 0.0
        %1270 = vmatpush1.xpose.msra.mxu0 0.0
        %1271 = vmatprep.subr.mxu0 0.0
        %1272 = vmatpush1.xpose.msra.mxu0 0.0
        %1273 = vmatprep.subr.mxu0 0.0
        %1274 = vmatpush1.xpose.msra.mxu0 0.0
        %1275 = vmatprep.subr.mxu0 0.0
        %1276 = vmatpush1.xpose.msra.mxu0 0.0
        %1277 = vmatprep.subr.mxu0 0.0
        %1278 = vmatpush1.xpose.msra.mxu0 0.0
        %1279 = vmatprep.subr.mxu0 0.0
        %1280 = vmatpush1.xpose.msra.mxu0 0.0
        %1281 = vmatprep.subr.mxu0 0.0
        %1282 = vmatpush1.xpose.msra.mxu0 0.0
        %1283 = vmatprep.subr.mxu0 0.0
        %1284 = vmatpush1.xpose.msra.mxu0 0.0
        %1285 = vmatprep.subr.mxu0 0.0
        %1286 = vmatpush1.xpose.msra.mxu0 0.0
        %1287 = vmatprep.subr.mxu0 0.0
        %1288 = vmatpush1.xpose.msra.mxu0 0.0
        %1289 = vmatprep.subr.mxu0 0.0
        %1290 = vmatpush1.xpose.msra.mxu0 0.0
        %1291 = vmatprep.subr.mxu0 0.0
        %1292 = vmatpush1.xpose.msra.mxu0 0.0
        %1293 = vmatprep.subr.mxu0 0.0
        %1294 = vmatpush1.xpose.msra.mxu0 0.0
        %1295 = vmatprep.subr.mxu0 0.0
        %1296 = vmatpush1.xpose.msra.mxu0 0.0
        %1297 = vmatprep.subr.mxu0 0.0
        %1298 = vmatpush1.xpose.msra.mxu0 0.0
        %1299 = vmatprep.subr.mxu0 0.0
        %1300 = vmatpush1.xpose.msra.mxu0 0.0
        %1301 = vmatprep.subr.mxu0 0.0
        %1302 = vmatpush1.xpose.msra.mxu0 0.0
        %1303 = vmatprep.subr.mxu0 0.0
        %1304 = vmatpush1.xpose.msra.mxu0 0.0
        %1305 = vmatprep.subr.mxu0 0.0
        %1306 = vmatpush1.xpose.msra.mxu0 0.0
        %1307 = vmatprep.mubr.f32.mxu0 0.0
        %1308 = vmatmul.mubr.f32.gmra.mrb[0].mxu0 %v936
        %v1309 = vpop.f32.mrb[0].mxu0
        %v1310 = vadd.f32 0.0, %v1309
        %v1311 = vpop.f32.mrb[0].mxu0
        %1312 = vdwg.mxu0
        %1313 = vmatprep.subr.mxu0 0.0
        %1314 = vmatpush1.xpose.msra.mxu0 %v902
        %1315 = vmatprep.subr.mxu0 0.0
        %1316 = vmatpush1.xpose.msra.mxu0 0.0
        %1317 = vmatprep.subr.mxu0 0.0
        %1318 = vmatpush1.xpose.msra.mxu0 0.0
        %1319 = vmatprep.subr.mxu0 0.0
        %1320 = vmatpush1.xpose.msra.mxu0 0.0
        %1321 = vmatprep.subr.mxu0 0.0
        %1322 = vmatpush1.xpose.msra.mxu0 0.0
        %1323 = vmatprep.subr.mxu0 0.0
        %1324 = vmatpush1.xpose.msra.mxu0 0.0
        %1325 = vmatprep.subr.mxu0 0.0
        %1326 = vmatpush1.xpose.msra.mxu0 0.0
        %1327 = vmatprep.subr.mxu0 0.0
        %1328 = vmatpush1.xpose.msra.mxu0 0.0
        %1329 = vmatprep.subr.mxu0 0.0
        %1330 = vmatpush1.xpose.msra.mxu0 0.0
        %1331 = vmatprep.subr.mxu0 0.0
        %1332 = vmatpush1.xpose.msra.mxu0 0.0
        %1333 = vmatprep.subr.mxu0 0.0
        %1334 = vmatpush1.xpose.msra.mxu0 0.0
        %1335 = vmatprep.subr.mxu0 0.0
        %1336 = vmatpush1.xpose.msra.mxu0 0.0
        %1337 = vmatprep.subr.mxu0 0.0
        %1338 = vmatpush1.xpose.msra.mxu0 0.0
        %1339 = vmatprep.subr.mxu0 0.0
        %1340 = vmatpush1.xpose.msra.mxu0 0.0
        %1341 = vmatprep.subr.mxu0 0.0
        %1342 = vmatpush1.xpose.msra.mxu0 0.0
        %1343 = vmatprep.subr.mxu0 0.0
        %1344 = vmatpush1.xpose.msra.mxu0 0.0
        %1345 = vmatprep.subr.mxu0 0.0
        %1346 = vmatpush1.xpose.msra.mxu0 0.0
        %1347 = vmatprep.subr.mxu0 0.0
        %1348 = vmatpush1.xpose.msra.mxu0 0.0
        %1349 = vmatprep.subr.mxu0 0.0
        %1350 = vmatpush1.xpose.msra.mxu0 0.0
        %1351 = vmatprep.subr.mxu0 0.0
        %1352 = vmatpush1.xpose.msra.mxu0 0.0
        %1353 = vmatprep.subr.mxu0 0.0
        %1354 = vmatpush1.xpose.msra.mxu0 0.0
        %1355 = vmatprep.subr.mxu0 0.0
        %1356 = vmatpush1.xpose.msra.mxu0 0.0
        %1357 = vmatprep.subr.mxu0 0.0
        %1358 = vmatpush1.xpose.msra.mxu0 0.0
        %1359 = vmatprep.subr.mxu0 0.0
        %1360 = vmatpush1.xpose.msra.mxu0 0.0
        %1361 = vmatprep.subr.mxu0 0.0
        %1362 = vmatpush1.xpose.msra.mxu0 0.0
        %1363 = vmatprep.subr.mxu0 0.0
        %1364 = vmatpush1.xpose.msra.mxu0 0.0
        %1365 = vmatprep.subr.mxu0 0.0
        %1366 = vmatpush1.xpose.msra.mxu0 0.0
        %1367 = vmatprep.subr.mxu0 0.0
        %1368 = vmatpush1.xpose.msra.mxu0 0.0
        %1369 = vmatprep.subr.mxu0 0.0
        %1370 = vmatpush1.xpose.msra.mxu0 0.0
        %1371 = vmatprep.subr.mxu0 0.0
        %1372 = vmatpush1.xpose.msra.mxu0 0.0
        %1373 = vmatprep.subr.mxu0 0.0
        %1374 = vmatpush1.xpose.msra.mxu0 0.0
        %1375 = vmatprep.subr.mxu0 0.0
        %1376 = vmatpush1.xpose.msra.mxu0 0.0
        %1377 = vmatprep.mubr.f32.mxu0 0.0
        %1378 = vmatmul.mubr.f32.gmra.mrb[0].mxu0 %v950
        %v1379 = vpop.f32.mrb[0].mxu0
        %v1380 = vadd.f32 0.0, %v1379
        %v1381 = vpop.f32.mrb[0].mxu0
        %1382 = vdwg.mxu0
        %1383 = vmatprep.subr.mxu0 0.0
        %1384 = vmatpush1.xpose.msra.mxu0 %v903
        %1385 = vmatprep.subr.mxu0 0.0
        %1386 = vmatpush1.xpose.msra.mxu0 0.0
        %1387 = vmatprep.subr.mxu0 0.0
        %1388 = vmatpush1.xpose.msra.mxu0 0.0
        %1389 = vmatprep.subr.mxu0 0.0
        %1390 = vmatpush1.xpose.msra.mxu0 0.0
        %1391 = vmatprep.subr.mxu0 0.0
        %1392 = vmatpush1.xpose.msra.mxu0 0.0
        %1393 = vmatprep.subr.mxu0 0.0
        %1394 = vmatpush1.xpose.msra.mxu0 0.0
        %1395 = vmatprep.subr.mxu0 0.0
        %1396 = vmatpush1.xpose.msra.mxu0 0.0
        %1397 = vmatprep.subr.mxu0 0.0
        %1398 = vmatpush1.xpose.msra.mxu0 0.0
        %1399 = vmatprep.subr.mxu0 0.0
        %1400 = vmatpush1.xpose.msra.mxu0 0.0
        %1401 = vmatprep.subr.mxu0 0.0
        %1402 = vmatpush1.xpose.msra.mxu0 0.0
        %1403 = vmatprep.subr.mxu0 0.0
        %1404 = vmatpush1.xpose.msra.mxu0 0.0
        %1405 = vmatprep.subr.mxu0 0.0
        %1406 = vmatpush1.xpose.msra.mxu0 0.0
        %1407 = vmatprep.subr.mxu0 0.0
        %1408 = vmatpush1.xpose.msra.mxu0 0.0
        %1409 = vmatprep.subr.mxu0 0.0
        %1410 = vmatpush1.xpose.msra.mxu0 0.0
        %1411 = vmatprep.subr.mxu0 0.0
        %1412 = vmatpush1.xpose.msra.mxu0 0.0
        %1413 = vmatprep.subr.mxu0 0.0
        %1414 = vmatpush1.xpose.msra.mxu0 0.0
        %1415 = vmatprep.subr.mxu0 0.0
        %1416 = vmatpush1.xpose.msra.mxu0 0.0
        %1417 = vmatprep.subr.mxu0 0.0
        %1418 = vmatpush1.xpose.msra.mxu0 0.0
        %1419 = vmatprep.subr.mxu0 0.0
        %1420 = vmatpush1.xpose.msra.mxu0 0.0
        %1421 = vmatprep.subr.mxu0 0.0
        %1422 = vmatpush1.xpose.msra.mxu0 0.0
        %1423 = vmatprep.subr.mxu0 0.0
        %1424 = vmatpush1.xpose.msra.mxu0 0.0
        %1425 = vmatprep.subr.mxu0 0.0
        %1426 = vmatpush1.xpose.msra.mxu0 0.0
        %1427 = vmatprep.subr.mxu0 0.0
        %1428 = vmatpush1.xpose.msra.mxu0 0.0
        %1429 = vmatprep.subr.mxu0 0.0
        %1430 = vmatpush1.xpose.msra.mxu0 0.0
        %1431 = vmatprep.subr.mxu0 0.0
        %1432 = vmatpush1.xpose.msra.mxu0 0.0
        %1433 = vmatprep.subr.mxu0 0.0
        %1434 = vmatpush1.xpose.msra.mxu0 0.0
        %1435 = vmatprep.subr.mxu0 0.0
        %1436 = vmatpush1.xpose.msra.mxu0 0.0
        %1437 = vmatprep.subr.mxu0 0.0
        %1438 = vmatpush1.xpose.msra.mxu0 0.0
        %1439 = vmatprep.subr.mxu0 0.0
        %1440 = vmatpush1.xpose.msra.mxu0 0.0
        %1441 = vmatprep.subr.mxu0 0.0
        %1442 = vmatpush1.xpose.msra.mxu0 0.0
        %1443 = vmatprep.subr.mxu0 0.0
        %1444 = vmatpush1.xpose.msra.mxu0 0.0
        %1445 = vmatprep.subr.mxu0 0.0
        %1446 = vmatpush1.xpose.msra.mxu0 0.0
        %1447 = vmatprep.mubr.f32.mxu0 0.0
        %1448 = vmatmul.mubr.f32.gmra.mrb[0].mxu0 %v952
        %v1449 = vpop.f32.mrb[0].mxu0
        %v1450 = vadd.f32 0.0, %v1449
        %v1451 = vpop.f32.mrb[0].mxu0
        %1452 = vdwg.mxu0
        %1453 = vmatprep.subr.mxu0 0.0
        %1454 = vmatpush1.xpose.msra.mxu0 %v904
        %1455 = vmatprep.subr.mxu0 0.0
        %1456 = vmatpush1.xpose.msra.mxu0 0.0
        %1457 = vmatprep.subr.mxu0 0.0
        %1458 = vmatpush1.xpose.msra.mxu0 0.0
        %1459 = vmatprep.subr.mxu0 0.0
        %1460 = vmatpush1.xpose.msra.mxu0 0.0
        %1461 = vmatprep.subr.mxu0 0.0
        %1462 = vmatpush1.xpose.msra.mxu0 0.0
        %1463 = vmatprep.subr.mxu0 0.0
        %1464 = vmatpush1.xpose.msra.mxu0 0.0
        %1465 = vmatprep.subr.mxu0 0.0
        %1466 = vmatpush1.xpose.msra.mxu0 0.0
        %1467 = vmatprep.subr.mxu0 0.0
        %1468 = vmatpush1.xpose.msra.mxu0 0.0
        %1469 = vmatprep.subr.mxu0 0.0
        %1470 = vmatpush1.xpose.msra.mxu0 0.0
        %1471 = vmatprep.subr.mxu0 0.0
        %1472 = vmatpush1.xpose.msra.mxu0 0.0
        %1473 = vmatprep.subr.mxu0 0.0
        %1474 = vmatpush1.xpose.msra.mxu0 0.0
        %1475 = vmatprep.subr.mxu0 0.0
        %1476 = vmatpush1.xpose.msra.mxu0 0.0
        %1477 = vmatprep.subr.mxu0 0.0
        %1478 = vmatpush1.xpose.msra.mxu0 0.0
        %1479 = vmatprep.subr.mxu0 0.0
        %1480 = vmatpush1.xpose.msra.mxu0 0.0
        %1481 = vmatprep.subr.mxu0 0.0
        %1482 = vmatpush1.xpose.msra.mxu0 0.0
        %1483 = vmatprep.subr.mxu0 0.0
        %1484 = vmatpush1.xpose.msra.mxu0 0.0
        %1485 = vmatprep.subr.mxu0 0.0
        %1486 = vmatpush1.xpose.msra.mxu0 0.0
        %1487 = vmatprep.subr.mxu0 0.0
        %1488 = vmatpush1.xpose.msra.mxu0 0.0
        %1489 = vmatprep.subr.mxu0 0.0
        %1490 = vmatpush1.xpose.msra.mxu0 0.0
        %1491 = vmatprep.subr.mxu0 0.0
        %1492 = vmatpush1.xpose.msra.mxu0 0.0
        %1493 = vmatprep.subr.mxu0 0.0
        %1494 = vmatpush1.xpose.msra.mxu0 0.0
        %1495 = vmatprep.subr.mxu0 0.0
        %1496 = vmatpush1.xpose.msra.mxu0 0.0
        %1497 = vmatprep.subr.mxu0 0.0
        %1498 = vmatpush1.xpose.msra.mxu0 0.0
        %1499 = vmatprep.subr.mxu0 0.0
        %1500 = vmatpush1.xpose.msra.mxu0 0.0
        %1501 = vmatprep.subr.mxu0 0.0
        %1502 = vmatpush1.xpose.msra.mxu0 0.0
        %1503 = vmatprep.subr.mxu0 0.0
        %1504 = vmatpush1.xpose.msra.mxu0 0.0
        %1505 = vmatprep.subr.mxu0 0.0
        %1506 = vmatpush1.xpose.msra.mxu0 0.0
        %1507 = vmatprep.subr.mxu0 0.0
        %1508 = vmatpush1.xpose.msra.mxu0 0.0
        %1509 = vmatprep.subr.mxu0 0.0
        %1510 = vmatpush1.xpose.msra.mxu0 0.0
        %1511 = vmatprep.subr.mxu0 0.0
        %1512 = vmatpush1.xpose.msra.mxu0 0.0
        %1513 = vmatprep.subr.mxu0 0.0
        %1514 = vmatpush1.xpose.msra.mxu0 0.0
        %1515 = vmatprep.subr.mxu0 0.0
        %1516 = vmatpush1.xpose.msra.mxu0 0.0
        %1517 = vmatprep.mubr.f32.mxu0 0.0
        %1518 = vmatmul.mubr.f32.gmra.mrb[0].mxu0 %v954
        %v1519 = vpop.f32.mrb[0].mxu0
        %v1520 = vadd.f32 0.0, %v1519
        %v1521 = vpop.f32.mrb[0].mxu0
        %1522 = vdwg.mxu0
        %v1523 = vlaneseq
        %v1524 = vand.u32 %v1523, 127
        %vm1525 = vcmp.eq.s32.totalorder %v1524, 0
        %v1526 = vsel %vm1525, 1.0, -1.0
        %v1527 = vmul.f32 %v1030, %v1526
        %v1528 = vmul.f32 %v1100, %v1526
        %v1529 = vmul.f32 %v1170, %v1526
        %v1530 = vmul.f32 %v1240, %v1526
        %v1531 = vmul.f32 %v1310, %v1526
        %v1532 = vmul.f32 %v1380, %v1526
        %v1533 = vmul.f32 %v1450, %v1526
        %v1534 = vmul.f32 %v1520, %v1526
        %v1535 = vmin.f32 %v1527, 0.0
        %v1536 = vmin.f32 %v1528, 0.0
        %v1537 = vmin.f32 %v1529, 0.0
        %v1538 = vmin.f32 %v1530, 0.0
        %v1539 = vmin.f32 %v1531, 0.0
        %v1540 = vmin.f32 %v1532, 0.0
        %v1541 = vmin.f32 %v1533, 0.0
        %v1542 = vmin.f32 %v1534, 0.0
        %v1543 = vand.u32 2147483647, %v1527
        %v1544 = vand.u32 2147483647, %v1528
        %v1545 = vand.u32 2147483647, %v1529
        %v1546 = vand.u32 2147483647, %v1530
        %v1547 = vand.u32 2147483647, %v1531
        %v1548 = vand.u32 2147483647, %v1532
        %v1549 = vand.u32 2147483647, %v1533
        %v1550 = vand.u32 2147483647, %v1534
        %v1551 = vsub.f32 0.0, %v1543
        %v1552 = vsub.f32 0.0, %v1544
        %v1553 = vsub.f32 0.0, %v1545
        %v1554 = vsub.f32 0.0, %v1546
        %v1555 = vsub.f32 0.0, %v1547
        %v1556 = vsub.f32 0.0, %v1548
        %v1557 = vsub.f32 0.0, %v1549
        %v1558 = vsub.f32 0.0, %v1550
        %v1559 = vmul.f32 %v1551, 1.442695
        %v1560 = vpow.pop %v1559
        %v1561 = vmul.f32 %v1552, 1.442695
        %v1562 = vpow.pop %v1561
        %v1563 = vmul.f32 %v1553, 1.442695
        %v1564 = vpow.pop %v1563
        %v1565 = vmul.f32 %v1554, 1.442695
        %v1566 = vpow.pop %v1565
        %v1567 = vmul.f32 %v1555, 1.442695
        %v1568 = vpow.pop %v1567
        %v1569 = vmul.f32 %v1556, 1.442695
        %v1570 = vpow.pop %v1569
        %v1571 = vmul.f32 %v1557, 1.442695
        %v1572 = vpow.pop %v1571
        %v1573 = vmul.f32 %v1558, 1.442695
        %v1574 = vpow.pop %v1573
        %v1575 = vadd.f32 %v1560, 1.0
        %v1576 = vadd.f32 %v1562, 1.0
        %v1577 = vadd.f32 %v1564, 1.0
        %v1578 = vadd.f32 %v1566, 1.0
        %v1579 = vadd.f32 %v1568, 1.0
        %v1580 = vadd.f32 %v1570, 1.0
        %v1581 = vadd.f32 %v1572, 1.0
        %v1582 = vadd.f32 %v1574, 1.0
        %v1583 = vlog2.pop %v1575
        %v1584 = vmul.f32 %v1583, 0.6931472
        %v1585 = vlog2.pop %v1576
        %v1586 = vmul.f32 %v1585, 0.6931472
        %v1587 = vlog2.pop %v1577
        %v1588 = vmul.f32 %v1587, 0.6931472
        %v1589 = vlog2.pop %v1578
        %v1590 = vmul.f32 %v1589, 0.6931472
        %v1591 = vlog2.pop %v1579
        %v1592 = vmul.f32 %v1591, 0.6931472
        %v1593 = vlog2.pop %v1580
        %v1594 = vmul.f32 %v1593, 0.6931472
        %v1595 = vlog2.pop %v1581
        %v1596 = vmul.f32 %v1595, 0.6931472
        %v1597 = vlog2.pop %v1582
        %v1598 = vmul.f32 %v1597, 0.6931472
        %v1599 = vsub.f32 %v1535, %v1584
        %v1600 = vsub.f32 %v1536, %v1586
        %v1601 = vsub.f32 %v1537, %v1588
        %v1602 = vsub.f32 %v1538, %v1590
        %v1603 = vsub.f32 %v1539, %v1592
        %v1604 = vsub.f32 %v1540, %v1594
        %v1605 = vsub.f32 %v1541, %v1596
        %v1606 = vsub.f32 %v1542, %v1598
        %s1607 = smul.u32 %s24, 8
        %v1608 = vstv %s1607
        %v1609 = vadd.s32 %v1608, 1
        %v1610 = vadd.s32 %v1608, 2
        %v1611 = vadd.s32 %v1608, 3
        %v1612 = vadd.s32 %v1608, 4
        %v1613 = vadd.s32 %v1608, 5
        %v1614 = vadd.s32 %v1608, 6
        %v1615 = vadd.s32 %v1608, 7
        %vm1616 = vcmp.lt.s32.totalorder %v1608, 16
        %vm1617 = vcmp.lt.s32.totalorder %v1609, 16
        %vm1618 = vcmp.lt.s32.totalorder %v1610, 16
        %vm1619 = vcmp.lt.s32.totalorder %v1611, 16
        %vm1620 = vcmp.lt.s32.totalorder %v1612, 16
        %vm1621 = vcmp.lt.s32.totalorder %v1613, 16
        %vm1622 = vcmp.lt.s32.totalorder %v1614, 16
        %vm1623 = vcmp.lt.s32.totalorder %v1615, 16
        %v1624 = vsel %vm1616, 1, 0
        %v1625 = vsel %vm1617, 1, 0
        %v1626 = vsel %vm1618, 1, 0
        %v1627 = vsel %vm1619, 1, 0
        %v1628 = vsel %vm1620, 1, 0
        %v1629 = vsel %vm1621, 1, 0
        %v1630 = vsel %vm1622, 1, 0
        %v1631 = vsel %vm1623, 1, 0
        %vm1632 = vcmp.eq.s32.totalorder %v1624, 1
        %vm1633 = vcmp.eq.s32.totalorder %v1625, 1
        %vm1634 = vcmp.eq.s32.totalorder %v1626, 1
        %vm1635 = vcmp.eq.s32.totalorder %v1627, 1
        %vm1636 = vcmp.eq.s32.totalorder %v1628, 1
        %vm1637 = vcmp.eq.s32.totalorder %v1629, 1
        %vm1638 = vcmp.eq.s32.totalorder %v1630, 1
        %vm1639 = vcmp.eq.s32.totalorder %v1631, 1
        %v1640 = vsel %vm1632, %v1599, 0.0
        %v1641 = vsel %vm1633, %v1600, 0.0
        %v1642 = vsel %vm1634, %v1601, 0.0
        %v1643 = vsel %vm1635, %v1602, 0.0
        %v1644 = vsel %vm1636, %v1603, 0.0
        %v1645 = vsel %vm1637, %v1604, 0.0
        %v1646 = vsel %vm1638, %v1605, 0.0
        %v1647 = vsel %vm1639, %v1606, 0.0
        %vm1648 = vcmask 32768
        %v1649 = vsel %vm1648, %v1640, 0.0
        %v1650 = vsel %vm1648, %v1641, 0.0
        %v1651 = vadd.f32 %v1649, %v1650
        %v1652 = vsel %vm1648, %v1642, 0.0
        %v1653 = vadd.f32 %v1651, %v1652
        %v1654 = vsel %vm1648, %v1643, 0.0
        %v1655 = vadd.f32 %v1653, %v1654
        %v1656 = vsel %vm1648, %v1644, 0.0
        %v1657 = vadd.f32 %v1655, %v1656
        %v1658 = vsel %vm1648, %v1645, 0.0
        %v1659 = vadd.f32 %v1657, %v1658
        %v1660 = vsel %vm1648, %v1646, 0.0
        %v1661 = vadd.f32 %v1659, %v1660
        %v1662 = vsel %vm1648, %v1647, 0.0
        %v1663 = vadd.f32 %v1661, %v1662
        %1664 = vadd.xlane.f32.xlu0 %v1663
        %v1665 = vpop.xlane.xlu0 %1664
        %v1666 = vrot.slane %v1665, 4
        %v1667 = vadd.f32 %v1665, %v1666
        %v1668 = vrot.slane %v1667, 2
        %v1669 = vadd.f32 %v1667, %v1668
        %v1670 = vrot.slane %v1669, 1
        %v1671 = vadd.f32 %v1669, %v1670
        %s1672 = vtos %v1671
        %v1673 = vstv %s1672
        %1674 = vst [vmem:[%s137] sm:$0xff] %v1673
        %s1675 = sand.u32 %s58, 1
        %s1676 = scalar_lea.sflag [#allocation8], %s1675
        %s1677 = sand.u32 %s58, 1
        %s1678 = smul.addr %s1677, 8
        %s1679 = scalar_lea.vmem [#allocation9], %s1678
        // Predicated region
        $region189: #{tpu_custom_call.1} parent=23 // pred_check
          %p1680 = pneg %p68
        $region190: #{tpu_custom_call.1} parent=23 // pred_check_branch
          %1682 = sbr.rel (%p1680) target = $region192
        $region191: #{tpu_custom_call.1} parent=23 // pred_region
          %s1684 = ssub.s32 128, 128
          %1685 = vsyncadd %s1676, %s1684
          %s1686 = smul.addr %s24, 128
          %s1687 = scalar_lea.hbm %s3, %s1686
          %s1689 = sshll.u32 %s1679, 4
          %s1690 = int_to_ptr.vmem [resolvable:$true] %s1689
          %1692 = dma.vmem_to_hbm [thread:$0]  %s1690, 128, %s1687, %s1676
        $region192: #{tpu_custom_call.1} parent=23 // pred_fallthru
          _
      $region24: #{tpu_custom_call.1} parent=5 // pred_fallthru
        _
      %p1693 = scmp.le.s32.totalorder 2, %s19
      // Predicated region
      $region193: #{tpu_custom_call.1} parent=5 // pred_check
        %p1694 = pneg %p1693
      $region194: #{tpu_custom_call.1} parent=5 // pred_check_branch
        %1696 = sbr.rel (%p1694) target = $region196
      $region195: #{tpu_custom_call.1} parent=5 // pred_region
        %s1697 = ssub.s32 %s19, 2
        // Predicated region
        $region197: #{tpu_custom_call.1} parent=195 // pred_check
          %p1698 = pneg %p74
        $region198: #{tpu_custom_call.1} parent=195 // pred_check_branch
          %1700 = sbr.rel (%p1698) target = $region200
        $region199: #{tpu_custom_call.1} parent=195 // pred_region
          %s1701 = sand.u32 %s59, 1
          %s1702 = scalar_lea.sflag [#allocation8], %s1701
          %s1703 = sand.u32 %s59, 1
          %s1704 = smul.addr %s1703, 8
          %s1705 = scalar_lea.vmem [#allocation9], %s1704
          %1706 = dma.done %s1702, 128
        $region200: #{tpu_custom_call.1} parent=195 // pred_fallthru
          _
      $region196: #{tpu_custom_call.1} parent=5 // pred_fallthru
        _
    $region6: #{tpu_custom_call.1} parent=1 // loop_footer
      %s23 = sadd.s32 1, %s19
    $region7: #{tpu_custom_call.1} parent=1 // loop_footer_branch
      %18 = sbr.rel target = $region3
    $region8: #{tpu_custom_call.1} parent=1 // loop_exit
      _
    %1707 = vsyncpa [#allocation7], 1
    %s1708 = scalar_lea.sflag [#allocation7], 1
    %1709 = vsyncpa %s1708, 1
    %1710 = vsyncpa [#allocation8], 1
    %s1711 = scalar_lea.sflag [#allocation8], 1
    %1712 = vsyncpa %s1711, 1
  %1713 = vsyncmov [#allocation3]
  %s1714 = vpop.sfrf %1713
  %p1715 = scmp.eq.s32.totalorder %s1714, 0
  %p1716 = pneg %p1715
  %1718 = shalt.err (%p1716)
  %s1719 = scalar_lea.sflag [#allocation3], 1
  %1720 = vsyncmov %s1719
  %s1721 = vpop.sfrf %1720
  %p1722 = scmp.eq.s32.totalorder %s1721, 0
  %p1723 = pneg %p1722
  %1725 = shalt.err (%p1723)
  %s1726 = scalar_lea.sflag [#allocation3], 2
  %1727 = vsyncmov %s1726
  %s1728 = vpop.sfrf %1727
  %p1729 = scmp.eq.s32.totalorder %s1728, 0
  %p1730 = pneg %p1729
  %1732 = shalt.err (%p1730)
  %s1733 = scalar_lea.sflag [#allocation3], 3
  %1734 = vsyncmov %s1733
  %s1735 = vpop.sfrf %1734
  %p1736 = scmp.eq.s32.totalorder %s1735, 0
  %p1737 = pneg %p1736
  %1739 = shalt.err (%p1737)
  %s1740 = scalar_lea.sflag [#allocation3], 4
  %1741 = vsyncmov %s1740
  %s1742 = vpop.sfrf %1741
  %p1743 = scmp.eq.s32.totalorder %s1742, 0
  %p1744 = pneg %p1743
  %1746 = shalt.err (%p1744)
  %s1747 = scalar_lea.sflag [#allocation3], 5
  %1748 = vsyncmov %s1747
  %s1749 = vpop.sfrf %1748
  %p1750 = scmp.eq.s32.totalorder %s1749, 0
  %p1751 = pneg %p1750
  %1753 = shalt.err (%p1751)
  %s1754 = scalar_lea.sflag [#allocation3], 6
  %1755 = vsyncmov %s1754
  %s1756 = vpop.sfrf %1755
  %p1757 = scmp.eq.s32.totalorder %s1756, 0
  %p1758 = pneg %p1757
  %1760 = shalt.err (%p1758)
  %s1761 = scalar_lea.sflag [#allocation3], 7
  %1762 = vsyncmov %s1761
  %s1763 = vpop.sfrf %1762
  %p1764 = scmp.eq.s32.totalorder %s1763, 0
  %p1765 = pneg %p1764
  %1767 = shalt.err (%p1765)
  %s1768 = scalar_lea.sflag [#allocation3], 8
  %1769 = vsyncmov %s1768
  %s1770 = vpop.sfrf %1769
  %p1771 = scmp.eq.s32.totalorder %s1770, 0
  %p1772 = pneg %p1771
  %1774 = shalt.err (%p1772)
  %s1775 = scalar_lea.sflag [#allocation3], 9
  %1776 = vsyncmov %s1775
  %s1777 = vpop.sfrf %1776
  %p1778 = scmp.eq.s32.totalorder %s1777, 0
  %p1779 = pneg %p1778
  %1781 = shalt.err (%p1779)
  %s1782 = scalar_lea.sflag [#allocation3], 10
  %1783 = vsyncmov %s1782
  %s1784 = vpop.sfrf %1783
  %p1785 = scmp.eq.s32.totalorder %s1784, 0
  %p1786 = pneg %p1785
  %1788 = shalt.err (%p1786)
  %s1789 = scalar_lea.sflag [#allocation3], 11
  %1790 = vsyncmov %s1789
  %s1791 = vpop.sfrf %1790
  %p1792 = scmp.eq.s32.totalorder %s1791, 0
  %p1793 = pneg %p1792
  %1795 = shalt.err (%p1793)
  %s1796 = scalar_lea.sflag [#allocation3], 12
  %1797 = vsyncmov %s1796
  %s1798 = vpop.sfrf %1797
  %p1799 = scmp.eq.s32.totalorder %s1798, 0
  %p1800 = pneg %p1799
  %1802 = shalt.err (%p1800)
  %s1803 = scalar_lea.sflag [#allocation3], 13
  %1804 = vsyncmov %s1803
  %s1805 = vpop.sfrf %1804
  %p1806 = scmp.eq.s32.totalorder %s1805, 0
  %p1807 = pneg %p1806
  %1809 = shalt.err (%p1807)
  %s1810 = scalar_lea.sflag [#allocation3], 14
  %1811 = vsyncmov %s1810
  %s1812 = vpop.sfrf %1811
  %p1813 = scmp.eq.s32.totalorder %s1812, 0
  %p1814 = pneg %p1813
  %1816 = shalt.err (%p1814)
  %s1817 = scalar_lea.sflag [#allocation3], 15
  %1818 = vsyncmov %s1817
  %s1819 = vpop.sfrf %1818
  %p1820 = scmp.eq.s32.totalorder %s1819, 0
  %p1821 = pneg %p1820
  %1823 = shalt.err (%p1821)
  %s1824 = scalar_lea.sflag [#allocation3], 16
  %1825 = vsyncmov %s1824
  %s1826 = vpop.sfrf %1825
  %p1827 = scmp.eq.s32.totalorder %s1826, 0
  %p1828 = pneg %p1827
  %1830 = shalt.err (%p1828)
  %s1831 = scalar_lea.sflag [#allocation3], 17
  %1832 = vsyncmov %s1831
  %s1833 = vpop.sfrf %1832
  %p1834 = scmp.eq.s32.totalorder %s1833, 0
  %p1835 = pneg %p1834
  %1837 = shalt.err (%p1835)
  %s1838 = scalar_lea.sflag [#allocation3], 18
  %1839 = vsyncmov %s1838
  %s1840 = vpop.sfrf %1839
  %p1841 = scmp.eq.s32.totalorder %s1840, 0
  %p1842 = pneg %p1841
  %1844 = shalt.err (%p1842)
  %s1845 = scalar_lea.sflag [#allocation3], 19
  %1846 = vsyncmov %s1845
  %s1847 = vpop.sfrf %1846
  %p1848 = scmp.eq.s32.totalorder %s1847, 0
  %p1849 = pneg %p1848
  %1851 = shalt.err (%p1849)
  %s1852 = scalar_lea.sflag [#allocation3], 20
  %1853 = vsyncmov %s1852
  %s1854 = vpop.sfrf %1853
  %p1855 = scmp.eq.s32.totalorder %s1854, 0
  %p1856 = pneg %p1855
  %1858 = shalt.err (%p1856)
  %s1859 = scalar_lea.sflag [#allocation3], 21
  %1860 = vsyncmov %s1859
  %s1861 = vpop.sfrf %1860
  %p1862 = scmp.eq.s32.totalorder %s1861, 0
  %p1863 = pneg %p1862
  %1865 = shalt.err (%p1863)
  %s1866 = scalar_lea.sflag [#allocation3], 22
  %1867 = vsyncmov %s1866
  %s1868 = vpop.sfrf %1867
  %p1869 = scmp.eq.s32.totalorder %s1868, 0
  %p1870 = pneg %p1869
  %1872 = shalt.err (%p1870)
  %s1873 = scalar_lea.sflag [#allocation3], 23
  %1874 = vsyncmov %s1873
  %s1875 = vpop.sfrf %1874
  %p1876 = scmp.eq.s32.totalorder %s1875, 0
  %p1877 = pneg %p1876
  %1879 = shalt.err (%p1877)
  %s1880 = scalar_lea.sflag [#allocation3], 24
  %1881 = vsyncmov %s1880
  %s1882 = vpop.sfrf %1881
  %p1883 = scmp.eq.s32.totalorder %s1882, 0
  %p1884 = pneg %p1883
  %1886 = shalt.err (%p1884)
  %s1887 = scalar_lea.sflag [#allocation3], 25
  %1888 = vsyncmov %s1887
  %s1889 = vpop.sfrf %1888
  %p1890 = scmp.eq.s32.totalorder %s1889, 0
  %p1891 = pneg %p1890
  %1893 = shalt.err (%p1891)
  %s1894 = scalar_lea.sflag [#allocation3], 26
  %1895 = vsyncmov %s1894
  %s1896 = vpop.sfrf %1895
  %p1897 = scmp.eq.s32.totalorder %s1896, 0
  %p1898 = pneg %p1897
  %1900 = shalt.err (%p1898)
  %s1901 = scalar_lea.sflag [#allocation3], 27
  %1902 = vsyncmov %s1901
  %s1903 = vpop.sfrf %1902
  %p1904 = scmp.eq.s32.totalorder %s1903, 0
  %p1905 = pneg %p1904
  %1907 = shalt.err (%p1905)
  %s1908 = scalar_lea.sflag [#allocation3], 28
  %1909 = vsyncmov %s1908
  %s1910 = vpop.sfrf %1909
  %p1911 = scmp.eq.s32.totalorder %s1910, 0
  %p1912 = pneg %p1911
  %1914 = shalt.err (%p1912)
  %s1915 = scalar_lea.sflag [#allocation3], 29
  %1916 = vsyncmov %s1915
  %s1917 = vpop.sfrf %1916
  %p1918 = scmp.eq.s32.totalorder %s1917, 0
  %p1919 = pneg %p1918
  %1921 = shalt.err (%p1919)
  %s1922 = scalar_lea.sflag [#allocation3], 30
  %1923 = vsyncmov %s1922
  %s1924 = vpop.sfrf %1923
  %p1925 = scmp.eq.s32.totalorder %s1924, 0
  %p1926 = pneg %p1925
  %1928 = shalt.err (%p1926)
  %s1929 = scalar_lea.sflag [#allocation3], 31
  %1930 = vsyncmov %s1929
  %s1931 = vpop.sfrf %1930
  %p1932 = scmp.eq.s32.totalorder %s1931, 0
  %p1933 = pneg %p1932
  %1935 = shalt.err (%p1933)
  %s1936 = scalar_lea.sflag [#allocation3], 32
  %1937 = vsyncmov %s1936
  %s1938 = vpop.sfrf %1937
  %p1939 = scmp.eq.s32.totalorder %s1938, 0
  %p1940 = pneg %p1939
  %1942 = shalt.err (%p1940)
  %s1943 = scalar_lea.sflag [#allocation3], 33
  %1944 = vsyncmov %s1943
  %s1945 = vpop.sfrf %1944
  %p1946 = scmp.eq.s32.totalorder %s1945, 0
  %p1947 = pneg %p1946
  %1949 = shalt.err (%p1947)
  %s1950 = scalar_lea.sflag [#allocation3], 34
  %1951 = vsyncmov %s1950
  %s1952 = vpop.sfrf %1951
  %p1953 = scmp.eq.s32.totalorder %s1952, 0
  %p1954 = pneg %p1953
  %1956 = shalt.err (%p1954)
  %s1957 = scalar_lea.sflag [#allocation3], 35
  %1958 = vsyncmov %s1957
  %s1959 = vpop.sfrf %1958
  %p1960 = scmp.eq.s32.totalorder %s1959, 0
  %p1961 = pneg %p1960
  %1963 = shalt.err (%p1961)
  %s1964 = scalar_lea.sflag [#allocation3], 36
  %1965 = vsyncmov %s1964
  %s1966 = vpop.sfrf %1965
  %p1967 = scmp.eq.s32.totalorder %s1966, 0
  %p1968 = pneg %p1967
  %1970 = shalt.err (%p1968)
  %s1971 = scalar_lea.sflag [#allocation3], 37
  %1972 = vsyncmov %s1971
  %s1973 = vpop.sfrf %1972
  %p1974 = scmp.eq.s32.totalorder %s1973, 0
  %p1975 = pneg %p1974
  %1977 = shalt.err (%p1975)
  %s1978 = scalar_lea.sflag [#allocation3], 38
  %1979 = vsyncmov %s1978
  %s1980 = vpop.sfrf %1979
  %p1981 = scmp.eq.s32.totalorder %s1980, 0
  %p1982 = pneg %p1981
  %1984 = shalt.err (%p1982)
  %s1985 = scalar_lea.sflag [#allocation3], 39
  %1986 = vsyncmov %s1985
  %s1987 = vpop.sfrf %1986
  %p1988 = scmp.eq.s32.totalorder %s1987, 0
  %p1989 = pneg %p1988
  %1991 = shalt.err (%p1989)

</llo_original>
